<compile_context>
chip_gen: v5e
topology: v5e:2x2
jax: 0.10.0
libtpu: 0.0.40
codegen_flags: <defaults>
</compile_context>

<pallas_src>
import functools

import jax
import jax.numpy as jnp
from jax import lax
from jax.experimental import pallas as pl
from jax.experimental.pallas import tpu as pltpu


PI = 3.141592653589793

_VMEM = pl.BlockSpec(memory_space=pltpu.MemorySpace.VMEM)


# ----------------------------------------------------------------------------
# Pallas kernels
# ----------------------------------------------------------------------------
def _query_kernel(lhs_ref, rhs_ref, rel_ref, time_ref, tphase_ref,
                  hs_ref, rs_ref, ts_ref,
                  qt_ref, qs_ref,
                  reg_lhs_ref, reg_fr_ref, reg_rhs_ref,
                  reg_h_ref, reg_r_ref, reg_t_ref,
                  *, rank, rank_static):
    """Build the temporal query [B, 2R] and the static query [B, 2Rs] once per
       batch, plus the six fused regularizer moduli.  All transcendentals live
       here so the per-entity-tile score loop below is pure MXU + DMA."""
    R = rank
    # --- temporal path (R is a multiple of 128 -> aligned ref slices) ---
    a0 = lhs_ref[:, :R]
    a1 = lhs_ref[:, R:]
    r0 = rel_ref[:, :R] * PI
    r1 = rel_ref[:, R:] * PI
    t0 = time_ref[:, :R]
    t1 = time_ref[:, R:]
    tp = jnp.abs(tphase_ref[...])
    ph0 = jnp.cos(tp[:, :R])
    ph1 = jnp.cos(tp[:, R:])
    rt0 = r0 * t0 + ph0
    rt1 = r1 * t0 + ph0
    rt2 = r0 * t1 + ph1
    rt3 = r1 * t1 + ph1
    amp = jnp.exp(rt0 - rt3)
    fr0 = amp * jnp.cos(rt1 + rt2)
    fr1 = amp * jnp.sin(rt1 + rt2)
    # Two aligned sub-stores (no concatenate / relayout).
    qt_ref[:, :R] = a0 * fr0 - a1 * fr1
    qt_ref[:, R:] = a1 * fr0 + a0 * fr1

    reg_lhs_ref[...] = jnp.sqrt(a0 * a0 + a1 * a1)
    # sqrt(fr0^2 + fr1^2) == amp * sqrt(cos^2 + sin^2) == amp  (amp > 0)
    reg_fr_ref[...] = amp
    b0 = rhs_ref[:, :R]
    b1 = rhs_ref[:, R:]
    reg_rhs_ref[...] = jnp.sqrt(b0 * b0 + b1 * b1)

    # --- static path (Rs is tiny and not lane-aligned: slice values, not refs) ---
    Rs = rank_static
    h = hs_ref[...]
    r = rs_ref[...]
    t = ts_ref[...]
    c0, c1 = h[:, :Rs], h[:, Rs:]
    d0, d1 = r[:, :Rs], r[:, Rs:]
    e0, e1 = t[:, :Rs], t[:, Rs:]
    qs_ref[...] = jnp.concatenate([c0 * d0 - c1 * d1, c1 * d0 + c0 * d1], axis=-1)
    reg_h_ref[...] = jnp.sqrt(c0 * c0 + c1 * c1)
    reg_r_ref[...] = jnp.sqrt(d0 * d0 + d1 * d1)
    reg_t_ref[...] = jnp.sqrt(e0 * e0 + e1 * e1)


def _fused_score_kernel(qt_ref, qs_ref, tab_t_ref, tab_s_ref, ot_ref, os_ref):
    """One entity tile: both scores against the UNtransposed table tiles.
       q [B, K] contracted with tile [TILE_N, K] along the lane axis (q @ tile.T),
       so no HBM transpose of either table is ever needed."""
    ot_ref[...] = lax.dot_general(
        qt_ref[...], tab_t_ref[...],
        dimension_numbers=(((1,), (1,)), ((), ())),
        preferred_element_type=jnp.float32)
    os_ref[...] = lax.dot_general(
        qs_ref[...], tab_s_ref[...],
        dimension_numbers=(((1,), (1,)), ((), ())),
        preferred_element_type=jnp.float32)


# ----------------------------------------------------------------------------
# pallas_call wrappers
# ----------------------------------------------------------------------------
def _build_queries(lhs, rhs, rel, time, tphase, h_s, r_s, t_s, rank, rank_static):
    B = lhs.shape[0]
    kern = functools.partial(_query_kernel, rank=rank, rank_static=rank_static)
    return pl.pallas_call(
        kern,
        out_shape=(jax.ShapeDtypeStruct((B, 2 * rank), jnp.float32),
                   jax.ShapeDtypeStruct((B, 2 * rank_static), jnp.float32),
                   jax.ShapeDtypeStruct((B, rank), jnp.float32),
                   jax.ShapeDtypeStruct((B, rank), jnp.float32),
                   jax.ShapeDtypeStruct((B, rank), jnp.float32),
                   jax.ShapeDtypeStruct((B, rank_static), jnp.float32),
                   jax.ShapeDtypeStruct((B, rank_static), jnp.float32),
                   jax.ShapeDtypeStruct((B, rank_static), jnp.float32)),
        in_specs=[_VMEM] * 8,
        out_specs=(_VMEM,) * 8,
    )(lhs, rhs, rel, time, tphase, h_s, r_s, t_s)


def _choose_tile_n(n, desired=2048):
    """Entity tile: multiple of 128, as large as possible (HBM roofline), but
       <= 2048 so the double-buffered f32 table stays under v5e's 16 MiB scoped
       VMEM default, and split so the grid has >= 2 steps when N allows
       (lets v7x's two TensorCores both stream HBM)."""
    t = min(desired, n)
    t = max(128, (t // 128) * 128)
    if n > 128 and pl.cdiv(n, t) < 2:
        half = (n + 1) // 2
        t = max(128, pl.cdiv(half, 128) * 128)
    return t


def _fused_scores(q_tem, q_st, table_tem, table_st, desired_tile_n=2048):
    """score_tem[B,N], score_static[B,N] in one pass over the entity axis.
       The N grid axis is 'parallel' (megacore sharding on v7x); both table
       tiles are streamed HBM->VMEM with automatic double buffering."""
    B, Kt = q_tem.shape
    _, Ks = q_st.shape
    N = table_tem.shape[0]
    tile_n = _choose_tile_n(N, desired_tile_n)
    grid = (pl.cdiv(N, tile_n),)
    cost = pl.CostEstimate(
        flops=2 * B * N * (Kt + Ks),
        transcendentals=0,
        bytes_accessed=(N * (Kt + Ks) + B * (Kt + Ks) + 2 * B * N) * 4)
    # TODO(synk): on v6e/v7x a bf16 table + pl.Buffered(3) on in_specs[2] cuts
    # the dominant HBM stream ~2x at the cost of the 1e-4 tolerance.
    return pl.pallas_call(
        _fused_score_kernel,
        out_shape=(jax.ShapeDtypeStruct((B, N), jnp.float32),
                   jax.ShapeDtypeStruct((B, N), jnp.float32)),
        grid=grid,
        in_specs=[pl.BlockSpec((B, Kt), lambda j: (0, 0)),
                  pl.BlockSpec((B, Ks), lambda j: (0, 0)),
                  pl.BlockSpec((tile_n, Kt), lambda j: (j, 0)),
                  pl.BlockSpec((tile_n, Ks), lambda j: (j, 0))],
        out_specs=(pl.BlockSpec((B, tile_n), lambda j: (0, j)),
                   pl.BlockSpec((B, tile_n), lambda j: (0, j))),
        compiler_params=pltpu.CompilerParams(
            dimension_semantics=("parallel",)),
        cost_estimate=cost,
    )(q_tem, q_st, table_tem, table_st)


# ----------------------------------------------------------------------------
# SpidER model (parameters + forward)
# ----------------------------------------------------------------------------
def init_params(key, sizes, rank, init_size=0.01):
    """nn.Embedding default init is N(0, 1); embeddings 0..3 and both static
       embeddings are scaled by init_size (embeddings[4] is not)."""
    rank_static = rank // 20
    ks = jax.random.split(key, 7)
    emb_sizes = [sizes[0], sizes[1], sizes[3], sizes[3], sizes[1]]
    embeddings = []
    for i, s in enumerate(emb_sizes):
        w = jax.random.normal(ks[i], (s, 2 * rank), dtype=jnp.float32)
        if i < 4:
            w = w * init_size
        embeddings.append(w)
    static_embeddings = [
        jax.random.normal(ks[5], (sizes[0], 2 * rank_static), jnp.float32) * init_size,
        jax.random.normal(ks[6], (sizes[1], 2 * rank_static), jnp.float32) * init_size,
    ]
    return {"embeddings": embeddings, "static_embeddings": static_embeddings}


def spider_forward(params, x, rank, no_time_emb=False, tile_n=2048):
    """x: int32 [B, 4] quadruples (lhs, rel, rhs, timestamp).
       Returns (score_tem [B,N_ent], score_static [B,N_ent], regularizer(6-tuple),
                time_emb_weight, time_phase_weight) — matching PyTorch forward."""
    rank_static = rank // 20
    emb = params["embeddings"]
    semb = params["static_embeddings"]

    # -------- embedding gathers (glue) --------
    lhs = emb[0][x[:, 0]]
    rel = emb[1][x[:, 1]]
    rhs = emb[0][x[:, 2]]
    time = emb[2][x[:, 3]]
    tphase = emb[3][x[:, 3]]
    h_s = semb[0][x[:, 0]]
    r_s = semb[1][x[:, 1]]
    t_s = semb[0][x[:, 2]]

    # -------- Pallas: queries + fused regularizer terms (one kernel) --------
    (q_tem, q_st, reg_lhs, reg_fr, reg_rhs,
     reg_h, reg_r, reg_t) = _build_queries(
        lhs, rhs, rel, time, tphase, h_s, r_s, t_s, rank, rank_static)

    # -------- Pallas: both scores fused over a single entity-tile grid --------
    score_tem, score_static = _fused_scores(q_tem, q_st, emb[0], semb[0], tile_n)

    regularizer = (reg_lhs, reg_fr, reg_rhs, reg_h, reg_r, reg_t)
    time_w = emb[2][:-1] if no_time_emb else emb[2]
    phase_w = emb[3][:-1] if no_time_emb else emb[3]
    return score_tem, score_static, regularizer, time_w, phase_w


# ----------------------------------------------------------------------------
# Pure-JAX reference (for a quiet correctness check)
# ----------------------------------------------------------------------------
def spider_forward_ref(params, x, rank):
    rank_static = rank // 20
    emb = params["embeddings"]
    semb = params["static_embeddings"]
    lhs = emb[0][x[:, 0]]
    rel = emb[1][x[:, 1]]
    rhs = emb[0][x[:, 2]]
    time = emb[2][x[:, 3]]
    tp = jnp.abs(emb[3][x[:, 3]])
    ph = (jnp.cos(tp[:, :rank]), jnp.cos(tp[:, rank:]))
    lhs = (lhs[:, :rank], lhs[:, rank:])
    rhs_ = (rhs[:, :rank], rhs[:, rank:])
    rel = (rel[:, :rank] * PI, rel[:, rank:] * PI)
    time = (time[:, :rank], time[:, rank:])
    right = (emb[0][:, :rank], emb[0][:, rank:])
    rt = (rel[0] * time[0] + ph[0], rel[1] * time[0] + ph[0],
          rel[0] * time[1] + ph[1], rel[1] * time[1] + ph[1])
    fr = (jnp.exp(rt[0] - rt[3]) * jnp.cos(rt[1] + rt[2]),
          jnp.exp(rt[0] - rt[3]) * jnp.sin(rt[1] + rt[2]))
    h = semb[0][x[:, 0]]
    r = semb[1][x[:, 1]]
    t = semb[0][x[:, 2]]
    h = (h[:, :rank_static], h[:, rank_static:])
    r = (r[:, :rank_static], r[:, rank_static:])
    t = (t[:, :rank_static], t[:, rank_static:])
    right_s = (semb[0][:, :rank_static], semb[0][:, rank_static:])
    reg = (jnp.sqrt(lhs[0]**2 + lhs[1]**2), jnp.sqrt(fr[0]**2 + fr[1]**2),
           jnp.sqrt(rhs_[0]**2 + rhs_[1]**2), jnp.sqrt(h[0]**2 + h[1]**2),
           jnp.sqrt(r[0]**2 + r[1]**2), jnp.sqrt(t[0]**2 + t[1]**2))
    s_tem = ((lhs[0] * fr[0] - lhs[1] * fr[1]) @ right[0].T
             + (lhs[1] * fr[0] + lhs[0] * fr[1]) @ right[1].T)
    s_cs = ((h[0] * r[0] - h[1] * r[1]) @ right_s[0].T
            + (h[1] * r[0] + h[0] * r[1]) @ right_s[1].T)
    return s_tem, s_cs, reg, emb[2], emb[3]


# ----------------------------------------------------------------------------
if __name__ == "__main__":
    # Small synthetic sizes consistent with the module; rank is a multiple of
    # 128 so the re/im halves are lane-aligned; batch is a multiple of 8.
    sizes = (1024, 32, 1024, 16)   # (n_entities, n_relations, n_entities, n_timestamps)
    rank = 256                     # rank_static = rank // 20 = 12
    batch = 8

    key = jax.random.PRNGKey(0)
    pkey, xkey = jax.random.split(key)
    params = init_params(pkey, sizes, rank, init_size=0.01)

    kl, kr, ko, kt = jax.random.split(xkey, 4)
    x = jnp.stack([
        jax.random.randint(kl, (batch,), 0, sizes[0]),
        jax.random.randint(kr, (batch,), 0, sizes[1]),
        jax.random.randint(ko, (batch,), 0, sizes[2]),
        jax.random.randint(kt, (batch,), 0, sizes[3]),
    ], axis=1).astype(jnp.int32)

    fwd = jax.jit(functools.partial(spider_forward, rank=rank, tile_n=2048))
    out = fwd(params, x)
    jax.block_until_ready(out)

    # Quiet correctness check against the pure-JAX reference.
    ref = spider_forward_ref(params, x, rank)
    score_tem, score_cs, reg, tw, pw = out
    rscore_tem, rscore_cs, rreg, rtw, rpw = ref
    ok = True
    ok &= bool(jnp.allclose(score_tem, rscore_tem, rtol=1e-4, atol=1e-5))
    ok &= bool(jnp.allclose(score_cs, rscore_cs, rtol=1e-4, atol=1e-6))
    for a, b in zip(reg, rreg):
        ok &= bool(jnp.allclose(a, b, rtol=1e-4, atol=1e-6))
    ok &= bool(jnp.allclose(tw, rtw)) and bool(jnp.allclose(pw, rpw))

    if ok:
        print("KERNEL_OK")
    else:
        print("MISMATCH")
</pallas_src>

<mosaic_0001>
module attributes {stable_mosaic.version = 11 : i64} {
  func.func @_query_kernel(%arg0: memref<8x512xf32, #tpu.memory_space<vmem>>, %arg1: memref<8x512xf32, #tpu.memory_space<vmem>>, %arg2: memref<8x512xf32, #tpu.memory_space<vmem>>, %arg3: memref<8x512xf32, #tpu.memory_space<vmem>>, %arg4: memref<8x512xf32, #tpu.memory_space<vmem>>, %arg5: memref<8x24xf32, #tpu.memory_space<vmem>>, %arg6: memref<8x24xf32, #tpu.memory_space<vmem>>, %arg7: memref<8x24xf32, #tpu.memory_space<vmem>>, %arg8: memref<8x512xf32, #tpu.memory_space<vmem>>, %arg9: memref<8x24xf32, #tpu.memory_space<vmem>>, %arg10: memref<8x256xf32, #tpu.memory_space<vmem>>, %arg11: memref<8x256xf32, #tpu.memory_space<vmem>>, %arg12: memref<8x256xf32, #tpu.memory_space<vmem>>, %arg13: memref<8x12xf32, #tpu.memory_space<vmem>>, %arg14: memref<8x12xf32, #tpu.memory_space<vmem>>, %arg15: memref<8x12xf32, #tpu.memory_space<vmem>>) attributes {dimension_semantics = [], scalar_prefetch = 0 : i64, scratch_operands = 0 : i64, tpu.core_type = #tpu.core_type<tc>} {
    %c0 = arith.constant 0 : index
    %c0_0 = arith.constant 0 : index
    %0 = vector.load %arg0[%c0, %c0_0] : memref<8x512xf32, #tpu.memory_space<vmem>>, vector<8x256xf32>
    %c0_1 = arith.constant 0 : index
    %c256 = arith.constant 256 : index
    %1 = vector.load %arg0[%c0_1, %c256] : memref<8x512xf32, #tpu.memory_space<vmem>>, vector<8x256xf32>
    %c0_2 = arith.constant 0 : index
    %c0_3 = arith.constant 0 : index
    %2 = vector.load %arg2[%c0_2, %c0_3] : memref<8x512xf32, #tpu.memory_space<vmem>>, vector<8x256xf32>
    %cst = arith.constant 3.14159274 : f32
    %3 = vector.broadcast %cst : f32 to vector<8x256xf32>
    %4 = arith.mulf %2, %3 : vector<8x256xf32>
    %c0_4 = arith.constant 0 : index
    %c256_5 = arith.constant 256 : index
    %5 = vector.load %arg2[%c0_4, %c256_5] : memref<8x512xf32, #tpu.memory_space<vmem>>, vector<8x256xf32>
    %cst_6 = arith.constant 3.14159274 : f32
    %6 = vector.broadcast %cst_6 : f32 to vector<8x256xf32>
    %7 = arith.mulf %5, %6 : vector<8x256xf32>
    %c0_7 = arith.constant 0 : index
    %c0_8 = arith.constant 0 : index
    %8 = vector.load %arg3[%c0_7, %c0_8] : memref<8x512xf32, #tpu.memory_space<vmem>>, vector<8x256xf32>
    %c0_9 = arith.constant 0 : index
    %c256_10 = arith.constant 256 : index
    %9 = vector.load %arg3[%c0_9, %c256_10] : memref<8x512xf32, #tpu.memory_space<vmem>>, vector<8x256xf32>
    %c0_11 = arith.constant 0 : index
    %c0_12 = arith.constant 0 : index
    %10 = vector.load %arg4[%c0_11, %c0_12] : memref<8x512xf32, #tpu.memory_space<vmem>>, vector<8x512xf32>
    %11 = math.absf %10 : vector<8x512xf32>
    %12 = vector.extract_strided_slice %11 {offsets = [0, 0], sizes = [8, 256], strides = [1, 1]} : vector<8x512xf32> to vector<8x256xf32>
    %13 = math.cos %12 : vector<8x256xf32>
    %14 = vector.extract_strided_slice %11 {offsets = [0, 256], sizes = [8, 256], strides = [1, 1]} : vector<8x512xf32> to vector<8x256xf32>
    %15 = math.cos %14 : vector<8x256xf32>
    %16 = arith.mulf %4, %8 : vector<8x256xf32>
    %17 = arith.addf %16, %13 : vector<8x256xf32>
    %18 = arith.mulf %7, %8 : vector<8x256xf32>
    %19 = arith.addf %18, %13 : vector<8x256xf32>
    %20 = arith.mulf %4, %9 : vector<8x256xf32>
    %21 = arith.addf %20, %15 : vector<8x256xf32>
    %22 = arith.mulf %7, %9 : vector<8x256xf32>
    %23 = arith.addf %22, %15 : vector<8x256xf32>
    %24 = arith.subf %17, %23 : vector<8x256xf32>
    %25 = math.exp %24 : vector<8x256xf32>
    %26 = arith.addf %19, %21 : vector<8x256xf32>
    %27 = math.cos %26 : vector<8x256xf32>
    %28 = arith.mulf %25, %27 : vector<8x256xf32>
    %29 = arith.addf %19, %21 : vector<8x256xf32>
    %30 = math.sin %29 : vector<8x256xf32>
    %31 = arith.mulf %25, %30 : vector<8x256xf32>
    %32 = arith.mulf %0, %28 : vector<8x256xf32>
    %33 = arith.mulf %1, %31 : vector<8x256xf32>
    %34 = arith.subf %32, %33 : vector<8x256xf32>
    %c0_13 = arith.constant 0 : index
    %c0_14 = arith.constant 0 : index
    %35 = vector.load %arg8[%c0_13, %c0_14] : memref<8x512xf32, #tpu.memory_space<vmem>>, vector<8x256xf32>
    tpu.vector_store %arg8[%c0_13, %c0_14], %34 {strides = array<i32>} : memref<8x512xf32, #tpu.memory_space<vmem>>, vector<8x256xf32>,
    %36 = arith.mulf %1, %28 : vector<8x256xf32>
    %37 = arith.mulf %0, %31 : vector<8x256xf32>
    %38 = arith.addf %36, %37 : vector<8x256xf32>
    %c0_15 = arith.constant 0 : index
    %c256_16 = arith.constant 256 : index
    %39 = vector.load %arg8[%c0_15, %c256_16] : memref<8x512xf32, #tpu.memory_space<vmem>>, vector<8x256xf32>
    tpu.vector_store %arg8[%c0_15, %c256_16], %38 {strides = array<i32>} : memref<8x512xf32, #tpu.memory_space<vmem>>, vector<8x256xf32>,
    %40 = arith.mulf %0, %0 : vector<8x256xf32>
    %41 = arith.mulf %1, %1 : vector<8x256xf32>
    %42 = arith.addf %40, %41 : vector<8x256xf32>
    %43 = math.sqrt %42 : vector<8x256xf32>
    %c0_17 = arith.constant 0 : index
    %c0_18 = arith.constant 0 : index
    %44 = vector.load %arg10[%c0_17, %c0_18] : memref<8x256xf32, #tpu.memory_space<vmem>>, vector<8x256xf32>
    tpu.vector_store %arg10[%c0_17, %c0_18], %43 {strides = array<i32>} : memref<8x256xf32, #tpu.memory_space<vmem>>, vector<8x256xf32>,
    %c0_19 = arith.constant 0 : index
    %c0_20 = arith.constant 0 : index
    %45 = vector.load %arg11[%c0_19, %c0_20] : memref<8x256xf32, #tpu.memory_space<vmem>>, vector<8x256xf32>
    tpu.vector_store %arg11[%c0_19, %c0_20], %25 {strides = array<i32>} : memref<8x256xf32, #tpu.memory_space<vmem>>, vector<8x256xf32>,
    %c0_21 = arith.constant 0 : index
    %c0_22 = arith.constant 0 : index
    %46 = vector.load %arg1[%c0_21, %c0_22] : memref<8x512xf32, #tpu.memory_space<vmem>>, vector<8x256xf32>
    %c0_23 = arith.constant 0 : index
    %c256_24 = arith.constant 256 : index
    %47 = vector.load %arg1[%c0_23, %c256_24] : memref<8x512xf32, #tpu.memory_space<vmem>>, vector<8x256xf32>
    %48 = arith.mulf %46, %46 : vector<8x256xf32>
    %49 = arith.mulf %47, %47 : vector<8x256xf32>
    %50 = arith.addf %48, %49 : vector<8x256xf32>
    %51 = math.sqrt %50 : vector<8x256xf32>
    %c0_25 = arith.constant 0 : index
    %c0_26 = arith.constant 0 : index
    %52 = vector.load %arg12[%c0_25, %c0_26] : memref<8x256xf32, #tpu.memory_space<vmem>>, vector<8x256xf32>
    tpu.vector_store %arg12[%c0_25, %c0_26], %51 {strides = array<i32>} : memref<8x256xf32, #tpu.memory_space<vmem>>, vector<8x256xf32>,
    %c0_27 = arith.constant 0 : index
    %c0_28 = arith.constant 0 : index
    %53 = vector.load %arg5[%c0_27, %c0_28] : memref<8x24xf32, #tpu.memory_space<vmem>>, vector<8x24xf32>
    %c0_29 = arith.constant 0 : index
    %c0_30 = arith.constant 0 : index
    %54 = vector.load %arg6[%c0_29, %c0_30] : memref<8x24xf32, #tpu.memory_space<vmem>>, vector<8x24xf32>
    %c0_31 = arith.constant 0 : index
    %c0_32 = arith.constant 0 : index
    %55 = vector.load %arg7[%c0_31, %c0_32] : memref<8x24xf32, #tpu.memory_space<vmem>>, vector<8x24xf32>
    %56 = vector.extract_strided_slice %53 {offsets = [0, 0], sizes = [8, 12], strides = [1, 1]} : vector<8x24xf32> to vector<8x12xf32>
    %57 = vector.extract_strided_slice %53 {offsets = [0, 12], sizes = [8, 12], strides = [1, 1]} : vector<8x24xf32> to vector<8x12xf32>
    %58 = vector.extract_strided_slice %54 {offsets = [0, 0], sizes = [8, 12], strides = [1, 1]} : vector<8x24xf32> to vector<8x12xf32>
    %59 = vector.extract_strided_slice %54 {offsets = [0, 12], sizes = [8, 12], strides = [1, 1]} : vector<8x24xf32> to vector<8x12xf32>
    %60 = vector.extract_strided_slice %55 {offsets = [0, 0], sizes = [8, 12], strides = [1, 1]} : vector<8x24xf32> to vector<8x12xf32>
    %61 = vector.extract_strided_slice %55 {offsets = [0, 12], sizes = [8, 12], strides = [1, 1]} : vector<8x24xf32> to vector<8x12xf32>
    %62 = arith.mulf %56, %58 : vector<8x12xf32>
    %63 = arith.mulf %57, %59 : vector<8x12xf32>
    %64 = arith.subf %62, %63 : vector<8x12xf32>
    %65 = arith.mulf %57, %58 : vector<8x12xf32>
    %66 = arith.mulf %56, %59 : vector<8x12xf32>
    %67 = arith.addf %65, %66 : vector<8x12xf32>
    %68 = tpu.concatenate %64, %67 in 1 : vector<8x12xf32>, vector<8x12xf32> -> vector<8x24xf32>
    %c0_33 = arith.constant 0 : index
    %c0_34 = arith.constant 0 : index
    %69 = vector.load %arg9[%c0_33, %c0_34] : memref<8x24xf32, #tpu.memory_space<vmem>>, vector<8x24xf32>
    tpu.vector_store %arg9[%c0_33, %c0_34], %68 {strides = array<i32>} : memref<8x24xf32, #tpu.memory_space<vmem>>, vector<8x24xf32>,
    %70 = arith.mulf %56, %56 : vector<8x12xf32>
    %71 = arith.mulf %57, %57 : vector<8x12xf32>
    %72 = arith.addf %70, %71 : vector<8x12xf32>
    %73 = math.sqrt %72 : vector<8x12xf32>
    %c0_35 = arith.constant 0 : index
    %c0_36 = arith.constant 0 : index
    %74 = vector.load %arg13[%c0_35, %c0_36] : memref<8x12xf32, #tpu.memory_space<vmem>>, vector<8x12xf32>
    tpu.vector_store %arg13[%c0_35, %c0_36], %73 {strides = array<i32>} : memref<8x12xf32, #tpu.memory_space<vmem>>, vector<8x12xf32>,
    %75 = arith.mulf %58, %58 : vector<8x12xf32>
    %76 = arith.mulf %59, %59 : vector<8x12xf32>
    %77 = arith.addf %75, %76 : vector<8x12xf32>
    %78 = math.sqrt %77 : vector<8x12xf32>
    %c0_37 = arith.constant 0 : index
    %c0_38 = arith.constant 0 : index
    %79 = vector.load %arg14[%c0_37, %c0_38] : memref<8x12xf32, #tpu.memory_space<vmem>>, vector<8x12xf32>
    tpu.vector_store %arg14[%c0_37, %c0_38], %78 {strides = array<i32>} : memref<8x12xf32, #tpu.memory_space<vmem>>, vector<8x12xf32>,
    %80 = arith.mulf %60, %60 : vector<8x12xf32>
    %81 = arith.mulf %61, %61 : vector<8x12xf32>
    %82 = arith.addf %80, %81 : vector<8x12xf32>
    %83 = math.sqrt %82 : vector<8x12xf32>
    %c0_39 = arith.constant 0 : index
    %c0_40 = arith.constant 0 : index
    %84 = vector.load %arg15[%c0_39, %c0_40] : memref<8x12xf32, #tpu.memory_space<vmem>>, vector<8x12xf32>
    tpu.vector_store %arg15[%c0_39, %c0_40], %83 {strides = array<i32>} : memref<8x12xf32, #tpu.memory_space<vmem>>, vector<8x12xf32>,
    return
  }
}

module attributes {stable_mosaic.version = 11 : i64} {
  func.func @_fused_score_kernel(%arg0: i32, %arg1: memref<8x512xf32, #tpu.memory_space<vmem>>, %arg2: memref<8x24xf32, #tpu.memory_space<vmem>>, %arg3: memref<512x512xf32, #tpu.memory_space<vmem>>, %arg4: memref<512x24xf32, #tpu.memory_space<vmem>>, %arg5: memref<8x512xf32, #tpu.memory_space<vmem>>, %arg6: memref<8x512xf32, #tpu.memory_space<vmem>>) attributes {dimension_semantics = [#tpu.dimension_semantics<parallel>], iteration_bounds = array<i64: 2>, scalar_prefetch = 0 : i64, scratch_operands = 0 : i64, tpu.core_type = #tpu.core_type<tc>, window_params = [{pipeline_mode = #tpu.pipeline_mode<synchronous>, transform_indices = @transform_0, window_bounds = array<i64: 8, 512>}, {pipeline_mode = #tpu.pipeline_mode<synchronous>, transform_indices = @transform_1, window_bounds = array<i64: 8, 24>}, {transform_indices = @transform_2, window_bounds = array<i64: 512, 512>}, {transform_indices = @transform_3, window_bounds = array<i64: 512, 24>}, {transform_indices = @transform_4, window_bounds = array<i64: 8, 512>}, {transform_indices = @transform_5, window_bounds = array<i64: 8, 512>}]} {
    %c0 = arith.constant 0 : index
    %c0_0 = arith.constant 0 : index
    %0 = vector.load %arg1[%c0, %c0_0] : memref<8x512xf32, #tpu.memory_space<vmem>>, vector<8x512xf32>
    %c0_1 = arith.constant 0 : index
    %c0_2 = arith.constant 0 : index
    %1 = vector.load %arg3[%c0_1, %c0_2] : memref<512x512xf32, #tpu.memory_space<vmem>>, vector<512x512xf32>
    %cst = arith.constant dense<0.000000e+00> : vector<8x512xf32>
    %2 = tpu.matmul %0, %1, %cst {dimension_numbers = #tpu.dot_dimension_numbers<[1], [1], [0], [0], [0, 0, 1, 0], [], []>} : vector<8x512xf32>, vector<512x512xf32>, vector<8x512xf32> -> vector<8x512xf32>
    %c0_3 = arith.constant 0 : index
    %c0_4 = arith.constant 0 : index
    %3 = vector.load %arg5[%c0_3, %c0_4] : memref<8x512xf32, #tpu.memory_space<vmem>>, vector<8x512xf32>
    tpu.vector_store %arg5[%c0_3, %c0_4], %2 {strides = array<i32>} : memref<8x512xf32, #tpu.memory_space<vmem>>, vector<8x512xf32>,
    %c0_5 = arith.constant 0 : index
    %c0_6 = arith.constant 0 : index
    %4 = vector.load %arg2[%c0_5, %c0_6] : memref<8x24xf32, #tpu.memory_space<vmem>>, vector<8x24xf32>
    %c0_7 = arith.constant 0 : index
    %c0_8 = arith.constant 0 : index
    %5 = vector.load %arg4[%c0_7, %c0_8] : memref<512x24xf32, #tpu.memory_space<vmem>>, vector<512x24xf32>
    %cst_9 = arith.constant dense<0.000000e+00> : vector<8x512xf32>
    %6 = tpu.matmul %4, %5, %cst_9 {dimension_numbers = #tpu.dot_dimension_numbers<[1], [1], [0], [0], [0, 0, 1, 0], [], []>} : vector<8x24xf32>, vector<512x24xf32>, vector<8x512xf32> -> vector<8x512xf32>
    %c0_10 = arith.constant 0 : index
    %c0_11 = arith.constant 0 : index
    %7 = vector.load %arg6[%c0_10, %c0_11] : memref<8x512xf32, #tpu.memory_space<vmem>>, vector<8x512xf32>
    tpu.vector_store %arg6[%c0_10, %c0_11], %6 {strides = array<i32>} : memref<8x512xf32, #tpu.memory_space<vmem>>, vector<8x512xf32>,
    return
  }
  func.func @transform_0(%arg0: i32) -> (i32, i32) {
    %c0_i32 = arith.constant 0 : i32
    %c0_i32_0 = arith.constant 0 : i32
    %c0_i32_1 = arith.constant 0 : i32
    return %c0_i32, %c0_i32_0 : i32, i32
  }
  func.func @transform_1(%arg0: i32) -> (i32, i32) {
    %c0_i32 = arith.constant 0 : i32
    %c0_i32_0 = arith.constant 0 : i32
    %c0_i32_1 = arith.constant 0 : i32
    return %c0_i32, %c0_i32_0 : i32, i32
  }
  func.func @transform_2(%arg0: i32) -> (i32, i32) {
    %c0_i32 = arith.constant 0 : i32
    %c0_i32_0 = arith.constant 0 : i32
    return %arg0, %c0_i32 : i32, i32
  }
  func.func @transform_3(%arg0: i32) -> (i32, i32) {
    %c0_i32 = arith.constant 0 : i32
    %c0_i32_0 = arith.constant 0 : i32
    return %arg0, %c0_i32 : i32, i32
  }
  func.func @transform_4(%arg0: i32) -> (i32, i32) {
    %c0_i32 = arith.constant 0 : i32
    %c0_i32_0 = arith.constant 0 : i32
    return %c0_i32, %arg0 : i32, i32
  }
  func.func @transform_5(%arg0: i32) -> (i32, i32) {
    %c0_i32 = arith.constant 0 : i32
    %c0_i32_0 = arith.constant 0 : i32
    return %c0_i32, %arg0 : i32, i32
  }
}

</mosaic_0001>

<llo_original>
// kernel: spider_forward.2
$region0: #{spider_forward.2}
  #allocation0 [shape = 'u32[]', space=smem, size = 0x4, offset = 0x4, fixed_abs, tag = 'smem constant byte address 0x4 - core index']
  #allocation1 [shape = 'u32[72,128]{1,0:T(1,128)}', space=vmem, size = 0x9000, scoped, tag = 'internal scratch']
  %s0 = inlined_call_operand.vmem [shape: f32[8,512], index: 0, kind: input, shape index: {}]
  %s1 = inlined_call_operand.vmem [shape: f32[8,512], index: 1, kind: input, shape index: {}]
  %s2 = inlined_call_operand.vmem [shape: f32[8,512], index: 2, kind: input, shape index: {}]
  %s3 = inlined_call_operand.vmem [shape: f32[8,512], index: 3, kind: input, shape index: {}]
  %s4 = inlined_call_operand.vmem [shape: f32[8,512], index: 4, kind: input, shape index: {}]
  %s5 = inlined_call_operand.vmem [shape: f32[8,24], index: 5, kind: input, shape index: {}]
  %s6 = inlined_call_operand.vmem [shape: f32[8,24], index: 6, kind: input, shape index: {}]
  %s7 = inlined_call_operand.vmem [shape: f32[8,24], index: 7, kind: input, shape index: {}]
  %s8 = inlined_call_operand.vmem [shape: f32[8,512], index: 8, kind: output, shape index: {0}]
  %s9 = inlined_call_operand.vmem [shape: f32[8,24], index: 9, kind: output, shape index: {1}]
  %s10 = inlined_call_operand.hbm [shape: f32[8,256], index: 10, kind: output, shape index: {2}]
  %s11 = inlined_call_operand.hbm [shape: f32[8,256], index: 11, kind: output, shape index: {3}]
  %s12 = inlined_call_operand.hbm [shape: f32[8,256], index: 12, kind: output, shape index: {4}]
  %s13 = inlined_call_operand.hbm [shape: f32[8,12], index: 13, kind: output, shape index: {5}]
  %s14 = inlined_call_operand.hbm [shape: f32[8,12], index: 14, kind: output, shape index: {6}]
  %s15 = inlined_call_operand.hbm [shape: f32[8,12], index: 15, kind: output, shape index: {7}]
  %16 = xla_tuple %s8, %s9, %s10, %s11, %s12, %s13, %s14, %s15
  %s17 = sld [smem:[#allocation0]]
  $region98: #{spider_forward.2} parent=0
    _
  %s19 = ssub.s32 1, %s17
  %s20 = scalar_select 0, %s19, %s17
  $region1: #{spider_forward.2} parent=0
    #allocation2 [shape = 'u8[8192]{0}', space=vmem, size = 0x2000, scoped, tag = 'output window, operand 2, single buffered']
    #allocation3 [shape = 's32[1]{0}', space=sflag, size = 0x4, scoped, tag = 'scoped memory for spider_forward.2']
    #allocation4 [shape = 'u8[8192]{0}', space=vmem, size = 0x2000, scoped, tag = 'output window, operand 3, single buffered']
    #allocation5 [shape = 's32[1]{0}', space=sflag, size = 0x4, scoped, tag = 'scoped memory for spider_forward.2']
    #allocation6 [shape = 'u8[8192]{0}', space=vmem, size = 0x2000, scoped, tag = 'output window, operand 4, single buffered']
    #allocation7 [shape = 'u8[4096]{0}', space=vmem, size = 0x1000, scoped, tag = 'output window, operand 5, single buffered']
    #allocation8 [shape = 's32[1]{0}', space=sflag, size = 0x4, scoped, tag = 'scoped memory for spider_forward.2']
    #allocation9 [shape = 'u8[4096]{0}', space=vmem, size = 0x1000, scoped, tag = 'output window, operand 6, single buffered']
    #allocation10 [shape = 'u8[4096]{0}', space=vmem, size = 0x1000, scoped, tag = 'output window, operand 7, single buffered']
    #allocation11 [shape = 's32[1]{0}', space=sflag, size = 0x4, scoped, tag = 'scoped memory for spider_forward.2']
    %21 = vsyncpa [#allocation3], 0
    %22 = vsyncpa [#allocation5], 0
    %23 = vsyncpa [#allocation8], 0
    %24 = vsyncpa [#allocation11], 0
    // Predicated region
    $region2: #{spider_forward.2} parent=1 // pred_check
      _
    $region3: #{spider_forward.2} parent=1 // pred_check_branch
      %26 = sbr.rel (0) target = $region5
    $region4: #{spider_forward.2} parent=1 // pred_region
      _
    $region5: #{spider_forward.2} parent=1 // pred_fallthru
      _
    // Predicated region
    $region6: #{spider_forward.2} parent=1 // pred_check
      _
    $region7: #{spider_forward.2} parent=1 // pred_check_branch
      %28 = sbr.rel (0) target = $region9
    $region8: #{spider_forward.2} parent=1 // pred_region
      _
    $region9: #{spider_forward.2} parent=1 // pred_fallthru
      _
    // Predicated region
    $region10: #{spider_forward.2} parent=1 // pred_check
      _
    $region11: #{spider_forward.2} parent=1 // pred_check_branch
      %30 = sbr.rel (0) target = $region13
    $region12: #{spider_forward.2} parent=1 // pred_region
      _
    $region13: #{spider_forward.2} parent=1 // pred_fallthru
      _
    // Predicated region
    $region14: #{spider_forward.2} parent=1 // pred_check
      _
    $region15: #{spider_forward.2} parent=1 // pred_check_branch
      %32 = sbr.rel (0) target = $region17
    $region16: #{spider_forward.2} parent=1 // pred_region
      _
    $region17: #{spider_forward.2} parent=1 // pred_fallthru
      _
    // Predicated region
    $region18: #{spider_forward.2} parent=1 // pred_check
      _
    $region19: #{spider_forward.2} parent=1 // pred_check_branch
      %34 = sbr.rel (0) target = $region21
    $region20: #{spider_forward.2} parent=1 // pred_region
      _
    $region21: #{spider_forward.2} parent=1 // pred_fallthru
      _
    // Predicated region
    $region22: #{spider_forward.2} parent=1 // pred_check
      _
    $region23: #{spider_forward.2} parent=1 // pred_check_branch
      %36 = sbr.rel (0) target = $region25
    $region24: #{spider_forward.2} parent=1 // pred_region
      _
    $region25: #{spider_forward.2} parent=1 // pred_fallthru
      _
    // Predicated region
    $region26: #{spider_forward.2} parent=1 // pred_check
      _
    $region27: #{spider_forward.2} parent=1 // pred_check_branch
      %38 = sbr.rel (0) target = $region29
    $region28: #{spider_forward.2} parent=1 // pred_region
      _
    $region29: #{spider_forward.2} parent=1 // pred_fallthru
      _
    // Predicated region
    $region30: #{spider_forward.2} parent=1 // pred_check
      _
    $region31: #{spider_forward.2} parent=1 // pred_check_branch
      %40 = sbr.rel (0) target = $region33
    $region32: #{spider_forward.2} parent=1 // pred_region
      _
    $region33: #{spider_forward.2} parent=1 // pred_fallthru
      _
    %v41 = vld [vmem:[%s0] sm:$0xff]
    %v42 = vld [vmem:[%s0 + $0x8] sm:$0xff]
    %v43 = vld [vmem:[%s0 + $0x10] sm:$0xff]
    %v44 = vld [vmem:[%s0 + $0x18] sm:$0xff]
    %v45 = vld [vmem:[%s2] sm:$0xff]
    %v46 = vld [vmem:[%s2 + $0x8] sm:$0xff]
    %v47 = vmul.f32 %v45, 3.1415927
    %v48 = vmul.f32 %v46, 3.1415927
    %v49 = vld [vmem:[%s2 + $0x10] sm:$0xff]
    %v50 = vld [vmem:[%s2 + $0x18] sm:$0xff]
    %v51 = vmul.f32 %v49, 3.1415927
    %v52 = vmul.f32 %v50, 3.1415927
    %v53 = vld [vmem:[%s3] sm:$0xff]
    %v54 = vld [vmem:[%s3 + $0x8] sm:$0xff]
    %v55 = vld [vmem:[%s3 + $0x10] sm:$0xff]
    %v56 = vld [vmem:[%s3 + $0x18] sm:$0xff]
    %v57 = vld [vmem:[%s4] sm:$0xff]
    %v58 = vld [vmem:[%s4 + $0x8] sm:$0xff]
    %v59 = vld [vmem:[%s4 + $0x10] sm:$0xff]
    %v60 = vld [vmem:[%s4 + $0x18] sm:$0xff]
    %v61 = vand.u32 2147483647, %v57
    %v62 = vand.u32 2147483647, %v58
    %v63 = vand.u32 2147483647, %v59
    %v64 = vand.u32 2147483647, %v60
    %v65 = vand.u32 2147483647, %v61
    %vm66 = vcmp.le.f32.partialorder %v65, 0.7853982
    %v67 = vand.u32 %v61, 2139095040
    %v68 = vshrl.u32 %v67, 23
    %v69 = vsub.s32 %v68, 127
    %v70 = vand.u32 2147483647, %v61
    %v71 = vand.u32 %v70, 8388607
    %v72 = vor.u32 %v71, 8388608
    %v73 = vsub.s32 0, %v72
    %v74 = vadd.s32 %v69, 1
    %vm75 = vcmp.gt.s32.totalorder %v74, 0
    %v76 = vsel %vm75, %v74, 0
    %v77 = vshrl.u32 %v76, 5
    %v78 = vand.u32 %v76, 31
    %v79 = vsub.s32 32, %v78
    %v80 = vshrl.u32 683565275, %v79
    %v81 = vshll.u32 683565275, %v78
    %v82 = vshrl.u32 2475754826, %v79
    %v83 = vor.u32 %v81, %v82
    %v84 = vshll.u32 2475754826, %v78
    %v85 = vshrl.u32 2131351028, %v79
    %v86 = vor.u32 %v84, %v85
    %v87 = vshll.u32 2131351028, %v78
    %v88 = vshrl.u32 2102212464, %v79
    %v89 = vor.u32 %v87, %v88
    %v90 = vshll.u32 2102212464, %v78
    %v91 = vshrl.u32 920167782, %v79
    %v92 = vor.u32 %v90, %v91
    %v93 = vshll.u32 920167782, %v78
    %v94 = vshrl.u32 1326507024, %v79
    %v95 = vor.u32 %v93, %v94
    %vm96 = vcmp.lt.s32.totalorder %v77, 1
    %vm97 = vcmp.lt.s32.totalorder %v77, 2
    %vm98 = vcmp.lt.s32.totalorder %v77, 3
    %vm99 = vcmp.lt.s32.totalorder %v77, 4
    %v100 = vsel %vm96, %v80, %v83
    %v101 = vsel %vm99, %v89, 2102212464
    %v102 = vsel %vm98, %v86, %v101
    %v103 = vsel %vm97, %v100, %v102
    %v104 = vsel %vm96, %v83, %v86
    %v105 = vsel %vm99, %v92, 920167782
    %v106 = vsel %vm98, %v89, %v105
    %v107 = vsel %vm97, %v104, %v106
    %v108 = vsel %vm96, %v86, %v89
    %v109 = vsel %vm99, %v95, 1326507024
    %v110 = vsel %vm98, %v92, %v109
    %v111 = vsel %vm97, %v108, %v110
    %v112 = vshll.u32 %v72, 8
    %v113 = vand.u32 %v112, 65535
    %v114 = vshrl.u32 %v112, 16
    %v115 = vand.u32 %v111, 65535
    %v116 = vshrl.u32 %v111, 16
    %v117 = vmul.u32 %v113, %v115
    %v118 = vmul.u32 %v113, %v116
    %v119 = vmul.u32 %v114, %v115
    %v120 = vmul.u32 %v114, %v116
    %v121 = vshll.u32 %v118, 16
    %v122 = vshrl.u32 %v118, 16
    %v123 = vshll.u32 %v119, 16
    %v124 = vshrl.u32 %v119, 16
    %vm125 = vc.u32 %v117, %v121
    %v126 = vsel %vm125, 1, 0
    %v127 = vadd.s32 %v117, %v121
    %v128 = vadd.s32 %v120, %v126
    %vm129 = vc.u32 %v127, %v123
    %v130 = vsel %vm129, 1, 0
    %v131 = vadd.s32 %v127, %v123
    %v132 = vadd.s32 %v128, %v130
    %v133 = vadd.s32 %v132, %v122
    %v134 = vadd.s32 %v133, %v124
    %v135 = vand.u32 %v112, 65535
    %v136 = vshrl.u32 %v112, 16
    %v137 = vand.u32 %v107, 65535
    %v138 = vshrl.u32 %v107, 16
    %v139 = vmul.u32 %v135, %v137
    %v140 = vmul.u32 %v135, %v138
    %v141 = vmul.u32 %v136, %v137
    %v142 = vmul.u32 %v136, %v138
    %v143 = vshll.u32 %v140, 16
    %v144 = vshrl.u32 %v140, 16
    %v145 = vshll.u32 %v141, 16
    %v146 = vshrl.u32 %v141, 16
    %vm147 = vc.u32 %v139, %v143
    %v148 = vsel %vm147, 1, 0
    %v149 = vadd.s32 %v139, %v143
    %v150 = vadd.s32 %v142, %v148
    %vm151 = vc.u32 %v149, %v145
    %v152 = vsel %vm151, 1, 0
    %v153 = vadd.s32 %v149, %v145
    %v154 = vadd.s32 %v150, %v152
    %v155 = vadd.s32 %v154, %v144
    %v156 = vadd.s32 %v155, %v146
    %v157 = vmul.u32 %v112, %v103
    %v158 = vadd.s32 %v134, %v153
    %vm159 = vc.u32 %v134, %v153
    %v160 = vadd.s32 %v156, 1
    %v161 = vsel %vm159, %v160, %v156
    %v162 = vadd.s32 %v157, %v161
    %v163 = vadd.s32 %v162, 536870912
    %v164 = vshrl.u32 %v163, 30
    %v165 = vshll.u32 %v164, 30
    %v166 = vsub.s32 %v162, %v165
    %vm167 = vcmp.lt.s32.totalorder %v166, 0
    %v168 = vsub.s32 0, %v166
    %v169 = vsel %vm167, %v168, %v166
    %v170 = vclz %v169
    %v171 = vsub.s32 %v170, 2
    %vm172 = vcmp.gt.s32.totalorder 0, %v171
    %v173 = vsel %vm172, 0, %v171
    %v174 = vsub.s32 32, %v173
    %v175 = vshll.u32 %v166, %v173
    %v176 = vshrl.u32 %v158, %v174
    %v177 = vor.u32 %v175, %v176
    %v178 = vsub.s32 4294967266, %v173
    %v179 = vadd.s32 %v178, 127
    %v180 = vshll.u32 %v179, 23
    %v181 = vor.u32 4788187, %v180
    %v182 = vand.u32 2147483647, %v181
    %v184 = vcvt.s32.f32 %v177
    %v185 = vmul.f32 %v184, %v182
    %v186 = vxor.u32 %v185, 2147483648
    %v187 = vsub.s32 4, %v164
    %v188 = vsel %vm66, %v61, %v185
    %v189 = vsel %vm66, 0, %v164
    %v190 = vmul.f32 %v188, %v188
    %v191 = vmul.f32 %v190, -0.001358992
    %v192 = vadd.f32 %v191, 0.041655596
    %v193 = vmul.f32 %v190, %v192
    %v194 = vadd.f32 %v193, -0.4999988
    %v195 = vmul.f32 %v190, %v194
    %v196 = vadd.f32 1.0, %v195
    %v197 = vmul.f32 %v188, %v188
    %v198 = vmul.f32 %v197, -0.00019511016
    %v199 = vadd.f32 %v198, 0.008332121
    %v200 = vmul.f32 %v197, %v199
    %v201 = vadd.f32 %v200, -0.16666654
    %v202 = vmul.f32 %v197, %v201
    %v203 = vadd.f32 %v202, 1.0
    %v204 = vmul.f32 %v203, %v188
    %vm205 = vweird.f32 %v61
    %v206 = vand.u32 %v189, 3
    %vm207 = vcmp.lt.s32.totalorder %v206, 2
    %vm208 = vcmp.eq.s32.totalorder %v206, 0
    %v209 = vxor.u32 %v204, 2147483648
    %v210 = vsel %vm208, %v196, %v209
    %vm211 = vcmp.eq.s32.totalorder %v206, 2
    %v212 = vxor.u32 %v196, 2147483648
    %v213 = vsel %vm211, %v212, %v204
    %v214 = vsel %vm207, %v210, %v213
    %v215 = vsel %vm205, nan, %v214
    %v216 = vand.u32 2147483647, %v62
    %vm217 = vcmp.le.f32.partialorder %v216, 0.7853982
    %v218 = vand.u32 %v62, 2139095040
    %v219 = vshrl.u32 %v218, 23
    %v220 = vsub.s32 %v219, 127
    %v221 = vand.u32 2147483647, %v62
    %v222 = vand.u32 %v221, 8388607
    %v223 = vor.u32 %v222, 8388608
    %v224 = vsub.s32 0, %v223
    %v225 = vadd.s32 %v220, 1
    %vm226 = vcmp.gt.s32.totalorder %v225, 0
    %v227 = vsel %vm226, %v225, 0
    %v228 = vshrl.u32 %v227, 5
    %v229 = vand.u32 %v227, 31
    %v230 = vsub.s32 32, %v229
    %v231 = vshrl.u32 683565275, %v230
    %v232 = vshll.u32 683565275, %v229
    %v233 = vshrl.u32 2475754826, %v230
    %v234 = vor.u32 %v232, %v233
    %v235 = vshll.u32 2475754826, %v229
    %v236 = vshrl.u32 2131351028, %v230
    %v237 = vor.u32 %v235, %v236
    %v238 = vshll.u32 2131351028, %v229
    %v239 = vshrl.u32 2102212464, %v230
    %v240 = vor.u32 %v238, %v239
    %v241 = vshll.u32 2102212464, %v229
    %v242 = vshrl.u32 920167782, %v230
    %v243 = vor.u32 %v241, %v242
    %v244 = vshll.u32 920167782, %v229
    %v245 = vshrl.u32 1326507024, %v230
    %v246 = vor.u32 %v244, %v245
    %vm247 = vcmp.lt.s32.totalorder %v228, 1
    %vm248 = vcmp.lt.s32.totalorder %v228, 2
    %vm249 = vcmp.lt.s32.totalorder %v228, 3
    %vm250 = vcmp.lt.s32.totalorder %v228, 4
    %v251 = vsel %vm247, %v231, %v234
    %v252 = vsel %vm250, %v240, 2102212464
    %v253 = vsel %vm249, %v237, %v252
    %v254 = vsel %vm248, %v251, %v253
    %v255 = vsel %vm247, %v234, %v237
    %v256 = vsel %vm250, %v243, 920167782
    %v257 = vsel %vm249, %v240, %v256
    %v258 = vsel %vm248, %v255, %v257
    %v259 = vsel %vm247, %v237, %v240
    %v260 = vsel %vm250, %v246, 1326507024
    %v261 = vsel %vm249, %v243, %v260
    %v262 = vsel %vm248, %v259, %v261
    %v263 = vshll.u32 %v223, 8
    %v264 = vand.u32 %v263, 65535
    %v265 = vshrl.u32 %v263, 16
    %v266 = vand.u32 %v262, 65535
    %v267 = vshrl.u32 %v262, 16
    %v268 = vmul.u32 %v264, %v266
    %v269 = vmul.u32 %v264, %v267
    %v270 = vmul.u32 %v265, %v266
    %v271 = vmul.u32 %v265, %v267
    %v272 = vshll.u32 %v269, 16
    %v273 = vshrl.u32 %v269, 16
    %v274 = vshll.u32 %v270, 16
    %v275 = vshrl.u32 %v270, 16
    %vm276 = vc.u32 %v268, %v272
    %v277 = vsel %vm276, 1, 0
    %v278 = vadd.s32 %v268, %v272
    %v279 = vadd.s32 %v271, %v277
    %vm280 = vc.u32 %v278, %v274
    %v281 = vsel %vm280, 1, 0
    %v282 = vadd.s32 %v278, %v274
    %v283 = vadd.s32 %v279, %v281
    %v284 = vadd.s32 %v283, %v273
    %v285 = vadd.s32 %v284, %v275
    %v286 = vand.u32 %v263, 65535
    %v287 = vshrl.u32 %v263, 16
    %v288 = vand.u32 %v258, 65535
    %v289 = vshrl.u32 %v258, 16
    %v290 = vmul.u32 %v286, %v288
    %v291 = vmul.u32 %v286, %v289
    %v292 = vmul.u32 %v287, %v288
    %v293 = vmul.u32 %v287, %v289
    %v294 = vshll.u32 %v291, 16
    %v295 = vshrl.u32 %v291, 16
    %v296 = vshll.u32 %v292, 16
    %v297 = vshrl.u32 %v292, 16
    %vm298 = vc.u32 %v290, %v294
    %v299 = vsel %vm298, 1, 0
    %v300 = vadd.s32 %v290, %v294
    %v301 = vadd.s32 %v293, %v299
    %vm302 = vc.u32 %v300, %v296
    %v303 = vsel %vm302, 1, 0
    %v304 = vadd.s32 %v300, %v296
    %v305 = vadd.s32 %v301, %v303
    %v306 = vadd.s32 %v305, %v295
    %v307 = vadd.s32 %v306, %v297
    %v308 = vmul.u32 %v263, %v254
    %v309 = vadd.s32 %v285, %v304
    %vm310 = vc.u32 %v285, %v304
    %v311 = vadd.s32 %v307, 1
    %v312 = vsel %vm310, %v311, %v307
    %v313 = vadd.s32 %v308, %v312
    %v314 = vadd.s32 %v313, 536870912
    %v315 = vshrl.u32 %v314, 30
    %v316 = vshll.u32 %v315, 30
    %v317 = vsub.s32 %v313, %v316
    %vm318 = vcmp.lt.s32.totalorder %v317, 0
    %v319 = vsub.s32 0, %v317
    %v320 = vsel %vm318, %v319, %v317
    %v321 = vclz %v320
    %v322 = vsub.s32 %v321, 2
    %vm323 = vcmp.gt.s32.totalorder 0, %v322
    %v324 = vsel %vm323, 0, %v322
    %v325 = vsub.s32 32, %v324
    %v326 = vshll.u32 %v317, %v324
    %v327 = vshrl.u32 %v309, %v325
    %v328 = vor.u32 %v326, %v327
    %v329 = vsub.s32 4294967266, %v324
    %v330 = vadd.s32 %v329, 127
    %v331 = vshll.u32 %v330, 23
    %v332 = vor.u32 4788187, %v331
    %v333 = vand.u32 2147483647, %v332
    %v335 = vcvt.s32.f32 %v328
    %v336 = vmul.f32 %v335, %v333
    %v337 = vxor.u32 %v336, 2147483648
    %v338 = vsub.s32 4, %v315
    %v339 = vsel %vm217, %v62, %v336
    %v340 = vsel %vm217, 0, %v315
    %v341 = vmul.f32 %v339, %v339
    %v342 = vmul.f32 %v341, -0.001358992
    %v343 = vadd.f32 %v342, 0.041655596
    %v344 = vmul.f32 %v341, %v343
    %v345 = vadd.f32 %v344, -0.4999988
    %v346 = vmul.f32 %v341, %v345
    %v347 = vadd.f32 1.0, %v346
    %v348 = vmul.f32 %v339, %v339
    %v349 = vmul.f32 %v348, -0.00019511016
    %v350 = vadd.f32 %v349, 0.008332121
    %v351 = vmul.f32 %v348, %v350
    %v352 = vadd.f32 %v351, -0.16666654
    %v353 = vmul.f32 %v348, %v352
    %v354 = vadd.f32 %v353, 1.0
    %v355 = vmul.f32 %v354, %v339
    %vm356 = vweird.f32 %v62
    %v357 = vand.u32 %v340, 3
    %vm358 = vcmp.lt.s32.totalorder %v357, 2
    %vm359 = vcmp.eq.s32.totalorder %v357, 0
    %v360 = vxor.u32 %v355, 2147483648
    %v361 = vsel %vm359, %v347, %v360
    %vm362 = vcmp.eq.s32.totalorder %v357, 2
    %v363 = vxor.u32 %v347, 2147483648
    %v364 = vsel %vm362, %v363, %v355
    %v365 = vsel %vm358, %v361, %v364
    %v366 = vsel %vm356, nan, %v365
    %v367 = vand.u32 2147483647, %v63
    %vm368 = vcmp.le.f32.partialorder %v367, 0.7853982
    %v369 = vand.u32 %v63, 2139095040
    %v370 = vshrl.u32 %v369, 23
    %v371 = vsub.s32 %v370, 127
    %v372 = vand.u32 2147483647, %v63
    %v373 = vand.u32 %v372, 8388607
    %v374 = vor.u32 %v373, 8388608
    %v375 = vsub.s32 0, %v374
    %v376 = vadd.s32 %v371, 1
    %vm377 = vcmp.gt.s32.totalorder %v376, 0
    %v378 = vsel %vm377, %v376, 0
    %v379 = vshrl.u32 %v378, 5
    %v380 = vand.u32 %v378, 31
    %v381 = vsub.s32 32, %v380
    %v382 = vshrl.u32 683565275, %v381
    %v383 = vshll.u32 683565275, %v380
    %v384 = vshrl.u32 2475754826, %v381
    %v385 = vor.u32 %v383, %v384
    %v386 = vshll.u32 2475754826, %v380
    %v387 = vshrl.u32 2131351028, %v381
    %v388 = vor.u32 %v386, %v387
    %v389 = vshll.u32 2131351028, %v380
    %v390 = vshrl.u32 2102212464, %v381
    %v391 = vor.u32 %v389, %v390
    %v392 = vshll.u32 2102212464, %v380
    %v393 = vshrl.u32 920167782, %v381
    %v394 = vor.u32 %v392, %v393
    %v395 = vshll.u32 920167782, %v380
    %v396 = vshrl.u32 1326507024, %v381
    %v397 = vor.u32 %v395, %v396
    %vm398 = vcmp.lt.s32.totalorder %v379, 1
    %vm399 = vcmp.lt.s32.totalorder %v379, 2
    %vm400 = vcmp.lt.s32.totalorder %v379, 3
    %vm401 = vcmp.lt.s32.totalorder %v379, 4
    %v402 = vsel %vm398, %v382, %v385
    %v403 = vsel %vm401, %v391, 2102212464
    %v404 = vsel %vm400, %v388, %v403
    %v405 = vsel %vm399, %v402, %v404
    %v406 = vsel %vm398, %v385, %v388
    %v407 = vsel %vm401, %v394, 920167782
    %v408 = vsel %vm400, %v391, %v407
    %v409 = vsel %vm399, %v406, %v408
    %v410 = vsel %vm398, %v388, %v391
    %v411 = vsel %vm401, %v397, 1326507024
    %v412 = vsel %vm400, %v394, %v411
    %v413 = vsel %vm399, %v410, %v412
    %v414 = vshll.u32 %v374, 8
    %v415 = vand.u32 %v414, 65535
    %v416 = vshrl.u32 %v414, 16
    %v417 = vand.u32 %v413, 65535
    %v418 = vshrl.u32 %v413, 16
    %v419 = vmul.u32 %v415, %v417
    %v420 = vmul.u32 %v415, %v418
    %v421 = vmul.u32 %v416, %v417
    %v422 = vmul.u32 %v416, %v418
    %v423 = vshll.u32 %v420, 16
    %v424 = vshrl.u32 %v420, 16
    %v425 = vshll.u32 %v421, 16
    %v426 = vshrl.u32 %v421, 16
    %vm427 = vc.u32 %v419, %v423
    %v428 = vsel %vm427, 1, 0
    %v429 = vadd.s32 %v419, %v423
    %v430 = vadd.s32 %v422, %v428
    %vm431 = vc.u32 %v429, %v425
    %v432 = vsel %vm431, 1, 0
    %v433 = vadd.s32 %v429, %v425
    %v434 = vadd.s32 %v430, %v432
    %v435 = vadd.s32 %v434, %v424
    %v436 = vadd.s32 %v435, %v426
    %v437 = vand.u32 %v414, 65535
    %v438 = vshrl.u32 %v414, 16
    %v439 = vand.u32 %v409, 65535
    %v440 = vshrl.u32 %v409, 16
    %v441 = vmul.u32 %v437, %v439
    %v442 = vmul.u32 %v437, %v440
    %v443 = vmul.u32 %v438, %v439
    %v444 = vmul.u32 %v438, %v440
    %v445 = vshll.u32 %v442, 16
    %v446 = vshrl.u32 %v442, 16
    %v447 = vshll.u32 %v443, 16
    %v448 = vshrl.u32 %v443, 16
    %vm449 = vc.u32 %v441, %v445
    %v450 = vsel %vm449, 1, 0
    %v451 = vadd.s32 %v441, %v445
    %v452 = vadd.s32 %v444, %v450
    %vm453 = vc.u32 %v451, %v447
    %v454 = vsel %vm453, 1, 0
    %v455 = vadd.s32 %v451, %v447
    %v456 = vadd.s32 %v452, %v454
    %v457 = vadd.s32 %v456, %v446
    %v458 = vadd.s32 %v457, %v448
    %v459 = vmul.u32 %v414, %v405
    %v460 = vadd.s32 %v436, %v455
    %vm461 = vc.u32 %v436, %v455
    %v462 = vadd.s32 %v458, 1
    %v463 = vsel %vm461, %v462, %v458
    %v464 = vadd.s32 %v459, %v463
    %v465 = vadd.s32 %v464, 536870912
    %v466 = vshrl.u32 %v465, 30
    %v467 = vshll.u32 %v466, 30
    %v468 = vsub.s32 %v464, %v467
    %vm469 = vcmp.lt.s32.totalorder %v468, 0
    %v470 = vsub.s32 0, %v468
    %v471 = vsel %vm469, %v470, %v468
    %v472 = vclz %v471
    %v473 = vsub.s32 %v472, 2
    %vm474 = vcmp.gt.s32.totalorder 0, %v473
    %v475 = vsel %vm474, 0, %v473
    %v476 = vsub.s32 32, %v475
    %v477 = vshll.u32 %v468, %v475
    %v478 = vshrl.u32 %v460, %v476
    %v479 = vor.u32 %v477, %v478
    %v480 = vsub.s32 4294967266, %v475
    %v481 = vadd.s32 %v480, 127
    %v482 = vshll.u32 %v481, 23
    %v483 = vor.u32 4788187, %v482
    %v484 = vand.u32 2147483647, %v483
    %v486 = vcvt.s32.f32 %v479
    %v487 = vmul.f32 %v486, %v484
    %v488 = vxor.u32 %v487, 2147483648
    %v489 = vsub.s32 4, %v466
    %v490 = vsel %vm368, %v63, %v487
    %v491 = vsel %vm368, 0, %v466
    %v492 = vmul.f32 %v490, %v490
    %v493 = vmul.f32 %v492, -0.001358992
    %v494 = vadd.f32 %v493, 0.041655596
    %v495 = vmul.f32 %v492, %v494
    %v496 = vadd.f32 %v495, -0.4999988
    %v497 = vmul.f32 %v492, %v496
    %v498 = vadd.f32 1.0, %v497
    %v499 = vmul.f32 %v490, %v490
    %v500 = vmul.f32 %v499, -0.00019511016
    %v501 = vadd.f32 %v500, 0.008332121
    %v502 = vmul.f32 %v499, %v501
    %v503 = vadd.f32 %v502, -0.16666654
    %v504 = vmul.f32 %v499, %v503
    %v505 = vadd.f32 %v504, 1.0
    %v506 = vmul.f32 %v505, %v490
    %vm507 = vweird.f32 %v63
    %v508 = vand.u32 %v491, 3
    %vm509 = vcmp.lt.s32.totalorder %v508, 2
    %vm510 = vcmp.eq.s32.totalorder %v508, 0
    %v511 = vxor.u32 %v506, 2147483648
    %v512 = vsel %vm510, %v498, %v511
    %vm513 = vcmp.eq.s32.totalorder %v508, 2
    %v514 = vxor.u32 %v498, 2147483648
    %v515 = vsel %vm513, %v514, %v506
    %v516 = vsel %vm509, %v512, %v515
    %v517 = vsel %vm507, nan, %v516
    %v518 = vand.u32 2147483647, %v64
    %vm519 = vcmp.le.f32.partialorder %v518, 0.7853982
    %v520 = vand.u32 %v64, 2139095040
    %v521 = vshrl.u32 %v520, 23
    %v522 = vsub.s32 %v521, 127
    %v523 = vand.u32 2147483647, %v64
    %v524 = vand.u32 %v523, 8388607
    %v525 = vor.u32 %v524, 8388608
    %v526 = vsub.s32 0, %v525
    %v527 = vadd.s32 %v522, 1
    %vm528 = vcmp.gt.s32.totalorder %v527, 0
    %v529 = vsel %vm528, %v527, 0
    %v530 = vshrl.u32 %v529, 5
    %v531 = vand.u32 %v529, 31
    %v532 = vsub.s32 32, %v531
    %v533 = vshrl.u32 683565275, %v532
    %v534 = vshll.u32 683565275, %v531
    %v535 = vshrl.u32 2475754826, %v532
    %v536 = vor.u32 %v534, %v535
    %v537 = vshll.u32 2475754826, %v531
    %v538 = vshrl.u32 2131351028, %v532
    %v539 = vor.u32 %v537, %v538
    %v540 = vshll.u32 2131351028, %v531
    %v541 = vshrl.u32 2102212464, %v532
    %v542 = vor.u32 %v540, %v541
    %v543 = vshll.u32 2102212464, %v531
    %v544 = vshrl.u32 920167782, %v532
    %v545 = vor.u32 %v543, %v544
    %v546 = vshll.u32 920167782, %v531
    %v547 = vshrl.u32 1326507024, %v532
    %v548 = vor.u32 %v546, %v547
    %vm549 = vcmp.lt.s32.totalorder %v530, 1
    %vm550 = vcmp.lt.s32.totalorder %v530, 2
    %vm551 = vcmp.lt.s32.totalorder %v530, 3
    %vm552 = vcmp.lt.s32.totalorder %v530, 4
    %v553 = vsel %vm549, %v533, %v536
    %v554 = vsel %vm552, %v542, 2102212464
    %v555 = vsel %vm551, %v539, %v554
    %v556 = vsel %vm550, %v553, %v555
    %v557 = vsel %vm549, %v536, %v539
    %v558 = vsel %vm552, %v545, 920167782
    %v559 = vsel %vm551, %v542, %v558
    %v560 = vsel %vm550, %v557, %v559
    %v561 = vsel %vm549, %v539, %v542
    %v562 = vsel %vm552, %v548, 1326507024
    %v563 = vsel %vm551, %v545, %v562
    %v564 = vsel %vm550, %v561, %v563
    %v565 = vshll.u32 %v525, 8
    %v566 = vand.u32 %v565, 65535
    %v567 = vshrl.u32 %v565, 16
    %v568 = vand.u32 %v564, 65535
    %v569 = vshrl.u32 %v564, 16
    %v570 = vmul.u32 %v566, %v568
    %v571 = vmul.u32 %v566, %v569
    %v572 = vmul.u32 %v567, %v568
    %v573 = vmul.u32 %v567, %v569
    %v574 = vshll.u32 %v571, 16
    %v575 = vshrl.u32 %v571, 16
    %v576 = vshll.u32 %v572, 16
    %v577 = vshrl.u32 %v572, 16
    %vm578 = vc.u32 %v570, %v574
    %v579 = vsel %vm578, 1, 0
    %v580 = vadd.s32 %v570, %v574
    %v581 = vadd.s32 %v573, %v579
    %vm582 = vc.u32 %v580, %v576
    %v583 = vsel %vm582, 1, 0
    %v584 = vadd.s32 %v580, %v576
    %v585 = vadd.s32 %v581, %v583
    %v586 = vadd.s32 %v585, %v575
    %v587 = vadd.s32 %v586, %v577
    %v588 = vand.u32 %v565, 65535
    %v589 = vshrl.u32 %v565, 16
    %v590 = vand.u32 %v560, 65535
    %v591 = vshrl.u32 %v560, 16
    %v592 = vmul.u32 %v588, %v590
    %v593 = vmul.u32 %v588, %v591
    %v594 = vmul.u32 %v589, %v590
    %v595 = vmul.u32 %v589, %v591
    %v596 = vshll.u32 %v593, 16
    %v597 = vshrl.u32 %v593, 16
    %v598 = vshll.u32 %v594, 16
    %v599 = vshrl.u32 %v594, 16
    %vm600 = vc.u32 %v592, %v596
    %v601 = vsel %vm600, 1, 0
    %v602 = vadd.s32 %v592, %v596
    %v603 = vadd.s32 %v595, %v601
    %vm604 = vc.u32 %v602, %v598
    %v605 = vsel %vm604, 1, 0
    %v606 = vadd.s32 %v602, %v598
    %v607 = vadd.s32 %v603, %v605
    %v608 = vadd.s32 %v607, %v597
    %v609 = vadd.s32 %v608, %v599
    %v610 = vmul.u32 %v565, %v556
    %v611 = vadd.s32 %v587, %v606
    %vm612 = vc.u32 %v587, %v606
    %v613 = vadd.s32 %v609, 1
    %v614 = vsel %vm612, %v613, %v609
    %v615 = vadd.s32 %v610, %v614
    %v616 = vadd.s32 %v615, 536870912
    %v617 = vshrl.u32 %v616, 30
    %v618 = vshll.u32 %v617, 30
    %v619 = vsub.s32 %v615, %v618
    %vm620 = vcmp.lt.s32.totalorder %v619, 0
    %v621 = vsub.s32 0, %v619
    %v622 = vsel %vm620, %v621, %v619
    %v623 = vclz %v622
    %v624 = vsub.s32 %v623, 2
    %vm625 = vcmp.gt.s32.totalorder 0, %v624
    %v626 = vsel %vm625, 0, %v624
    %v627 = vsub.s32 32, %v626
    %v628 = vshll.u32 %v619, %v626
    %v629 = vshrl.u32 %v611, %v627
    %v630 = vor.u32 %v628, %v629
    %v631 = vsub.s32 4294967266, %v626
    %v632 = vadd.s32 %v631, 127
    %v633 = vshll.u32 %v632, 23
    %v634 = vor.u32 4788187, %v633
    %v635 = vand.u32 2147483647, %v634
    %v637 = vcvt.s32.f32 %v630
    %v638 = vmul.f32 %v637, %v635
    %v639 = vxor.u32 %v638, 2147483648
    %v640 = vsub.s32 4, %v617
    %v641 = vsel %vm519, %v64, %v638
    %v642 = vsel %vm519, 0, %v617
    %v643 = vmul.f32 %v641, %v641
    %v644 = vmul.f32 %v643, -0.001358992
    %v645 = vadd.f32 %v644, 0.041655596
    %v646 = vmul.f32 %v643, %v645
    %v647 = vadd.f32 %v646, -0.4999988
    %v648 = vmul.f32 %v643, %v647
    %v649 = vadd.f32 1.0, %v648
    %v650 = vmul.f32 %v641, %v641
    %v651 = vmul.f32 %v650, -0.00019511016
    %v652 = vadd.f32 %v651, 0.008332121
    %v653 = vmul.f32 %v650, %v652
    %v654 = vadd.f32 %v653, -0.16666654
    %v655 = vmul.f32 %v650, %v654
    %v656 = vadd.f32 %v655, 1.0
    %v657 = vmul.f32 %v656, %v641
    %vm658 = vweird.f32 %v64
    %v659 = vand.u32 %v642, 3
    %vm660 = vcmp.lt.s32.totalorder %v659, 2
    %vm661 = vcmp.eq.s32.totalorder %v659, 0
    %v662 = vxor.u32 %v657, 2147483648
    %v663 = vsel %vm661, %v649, %v662
    %vm664 = vcmp.eq.s32.totalorder %v659, 2
    %v665 = vxor.u32 %v649, 2147483648
    %v666 = vsel %vm664, %v665, %v657
    %v667 = vsel %vm660, %v663, %v666
    %v668 = vsel %vm658, nan, %v667
    %v669 = vmul.f32 %v47, %v53
    %v670 = vmul.f32 %v48, %v54
    %v671 = vadd.f32 %v669, %v215
    %v672 = vadd.f32 %v670, %v366
    %v673 = vmul.f32 %v51, %v53
    %v674 = vmul.f32 %v52, %v54
    %v675 = vadd.f32 %v673, %v215
    %v676 = vadd.f32 %v674, %v366
    %v677 = vmul.f32 %v47, %v55
    %v678 = vmul.f32 %v48, %v56
    %v679 = vadd.f32 %v677, %v517
    %v680 = vadd.f32 %v678, %v668
    %v681 = vmul.f32 %v51, %v55
    %v682 = vmul.f32 %v52, %v56
    %v683 = vadd.f32 %v681, %v517
    %v684 = vadd.f32 %v682, %v668
    %v685 = vsub.f32 %v671, %v683
    %v686 = vsub.f32 %v672, %v684
    %v687 = vmul.f32 %v685, 1.442695
    %v688 = vpow.pop %v687
    %v689 = vmul.f32 %v686, 1.442695
    %v690 = vpow.pop %v689
    %v691 = vadd.f32 %v675, %v679
    %v692 = vadd.f32 %v676, %v680
    %v693 = vand.u32 2147483647, %v691
    %vm694 = vcmp.le.f32.partialorder %v693, 0.7853982
    %vm695 = vcmp.lt.s32.totalorder %v691, 0
    %v696 = vand.u32 %v691, 2139095040
    %v697 = vshrl.u32 %v696, 23
    %v698 = vsub.s32 %v697, 127
    %v699 = vand.u32 2147483647, %v691
    %v700 = vand.u32 %v699, 8388607
    %v701 = vor.u32 %v700, 8388608
    %v702 = vsub.s32 0, %v701
    %v703 = vadd.s32 %v698, 1
    %vm704 = vcmp.gt.s32.totalorder %v703, 0
    %v705 = vsel %vm704, %v703, 0
    %v706 = vshrl.u32 %v705, 5
    %v707 = vand.u32 %v705, 31
    %v708 = vsub.s32 32, %v707
    %v709 = vshrl.u32 683565275, %v708
    %v710 = vshll.u32 683565275, %v707
    %v711 = vshrl.u32 2475754826, %v708
    %v712 = vor.u32 %v710, %v711
    %v713 = vshll.u32 2475754826, %v707
    %v714 = vshrl.u32 2131351028, %v708
    %v715 = vor.u32 %v713, %v714
    %v716 = vshll.u32 2131351028, %v707
    %v717 = vshrl.u32 2102212464, %v708
    %v718 = vor.u32 %v716, %v717
    %v719 = vshll.u32 2102212464, %v707
    %v720 = vshrl.u32 920167782, %v708
    %v721 = vor.u32 %v719, %v720
    %v722 = vshll.u32 920167782, %v707
    %v723 = vshrl.u32 1326507024, %v708
    %v724 = vor.u32 %v722, %v723
    %vm725 = vcmp.lt.s32.totalorder %v706, 1
    %vm726 = vcmp.lt.s32.totalorder %v706, 2
    %vm727 = vcmp.lt.s32.totalorder %v706, 3
    %vm728 = vcmp.lt.s32.totalorder %v706, 4
    %v729 = vsel %vm725, %v709, %v712
    %v730 = vsel %vm728, %v718, 2102212464
    %v731 = vsel %vm727, %v715, %v730
    %v732 = vsel %vm726, %v729, %v731
    %v733 = vsel %vm725, %v712, %v715
    %v734 = vsel %vm728, %v721, 920167782
    %v735 = vsel %vm727, %v718, %v734
    %v736 = vsel %vm726, %v733, %v735
    %v737 = vsel %vm725, %v715, %v718
    %v738 = vsel %vm728, %v724, 1326507024
    %v739 = vsel %vm727, %v721, %v738
    %v740 = vsel %vm726, %v737, %v739
    %v741 = vshll.u32 %v701, 8
    %v742 = vand.u32 %v741, 65535
    %v743 = vshrl.u32 %v741, 16
    %v744 = vand.u32 %v740, 65535
    %v745 = vshrl.u32 %v740, 16
    %v746 = vmul.u32 %v742, %v744
    %v747 = vmul.u32 %v742, %v745
    %v748 = vmul.u32 %v743, %v744
    %v749 = vmul.u32 %v743, %v745
    %v750 = vshll.u32 %v747, 16
    %v751 = vshrl.u32 %v747, 16
    %v752 = vshll.u32 %v748, 16
    %v753 = vshrl.u32 %v748, 16
    %vm754 = vc.u32 %v746, %v750
    %v755 = vsel %vm754, 1, 0
    %v756 = vadd.s32 %v746, %v750
    %v757 = vadd.s32 %v749, %v755
    %vm758 = vc.u32 %v756, %v752
    %v759 = vsel %vm758, 1, 0
    %v760 = vadd.s32 %v756, %v752
    %v761 = vadd.s32 %v757, %v759
    %v762 = vadd.s32 %v761, %v751
    %v763 = vadd.s32 %v762, %v753
    %v764 = vand.u32 %v741, 65535
    %v765 = vshrl.u32 %v741, 16
    %v766 = vand.u32 %v736, 65535
    %v767 = vshrl.u32 %v736, 16
    %v768 = vmul.u32 %v764, %v766
    %v769 = vmul.u32 %v764, %v767
    %v770 = vmul.u32 %v765, %v766
    %v771 = vmul.u32 %v765, %v767
    %v772 = vshll.u32 %v769, 16
    %v773 = vshrl.u32 %v769, 16
    %v774 = vshll.u32 %v770, 16
    %v775 = vshrl.u32 %v770, 16
    %vm776 = vc.u32 %v768, %v772
    %v777 = vsel %vm776, 1, 0
    %v778 = vadd.s32 %v768, %v772
    %v779 = vadd.s32 %v771, %v777
    %vm780 = vc.u32 %v778, %v774
    %v781 = vsel %vm780, 1, 0
    %v782 = vadd.s32 %v778, %v774
    %v783 = vadd.s32 %v779, %v781
    %v784 = vadd.s32 %v783, %v773
    %v785 = vadd.s32 %v784, %v775
    %v786 = vmul.u32 %v741, %v732
    %v787 = vadd.s32 %v763, %v782
    %vm788 = vc.u32 %v763, %v782
    %v789 = vadd.s32 %v785, 1
    %v790 = vsel %vm788, %v789, %v785
    %v791 = vadd.s32 %v786, %v790
    %v792 = vadd.s32 %v791, 536870912
    %v793 = vshrl.u32 %v792, 30
    %v794 = vshll.u32 %v793, 30
    %v795 = vsub.s32 %v791, %v794
    %vm796 = vcmp.lt.s32.totalorder %v795, 0
    %v797 = vsub.s32 0, %v795
    %v798 = vsel %vm796, %v797, %v795
    %v799 = vclz %v798
    %v800 = vsub.s32 %v799, 2
    %vm801 = vcmp.gt.s32.totalorder 0, %v800
    %v802 = vsel %vm801, 0, %v800
    %v803 = vsub.s32 32, %v802
    %v804 = vshll.u32 %v795, %v802
    %v805 = vshrl.u32 %v787, %v803
    %v806 = vor.u32 %v804, %v805
    %v807 = vsub.s32 4294967266, %v802
    %v808 = vadd.s32 %v807, 127
    %v809 = vshll.u32 %v808, 23
    %v810 = vor.u32 4788187, %v809
    %v811 = vand.u32 2147483647, %v810
    %v813 = vcvt.s32.f32 %v806
    %v814 = vmul.f32 %v813, %v811
    %v815 = vxor.u32 %v814, 2147483648
    %v816 = vsel %vm695, %v815, %v814
    %v817 = vsub.s32 4, %v793
    %v818 = vsel %vm695, %v817, %v793
    %v819 = vsel %vm694, %v691, %v816
    %v820 = vsel %vm694, 0, %v818
    %v821 = vmul.f32 %v819, %v819
    %v822 = vmul.f32 %v821, -0.001358992
    %v823 = vadd.f32 %v822, 0.041655596
    %v824 = vmul.f32 %v821, %v823
    %v825 = vadd.f32 %v824, -0.4999988
    %v826 = vmul.f32 %v821, %v825
    %v827 = vadd.f32 1.0, %v826
    %v828 = vmul.f32 %v819, %v819
    %v829 = vmul.f32 %v828, -0.00019511016
    %v830 = vadd.f32 %v829, 0.008332121
    %v831 = vmul.f32 %v828, %v830
    %v832 = vadd.f32 %v831, -0.16666654
    %v833 = vmul.f32 %v828, %v832
    %v834 = vadd.f32 %v833, 1.0
    %v835 = vmul.f32 %v834, %v819
    %vm836 = vweird.f32 %v691
    %v837 = vand.u32 %v820, 3
    %vm838 = vcmp.lt.s32.totalorder %v837, 2
    %vm839 = vcmp.eq.s32.totalorder %v837, 0
    %v840 = vxor.u32 %v835, 2147483648
    %v841 = vsel %vm839, %v827, %v840
    %vm842 = vcmp.eq.s32.totalorder %v837, 2
    %v843 = vxor.u32 %v827, 2147483648
    %v844 = vsel %vm842, %v843, %v835
    %v845 = vsel %vm838, %v841, %v844
    %v846 = vsel %vm836, nan, %v845
    %v847 = vand.u32 2147483647, %v692
    %vm848 = vcmp.le.f32.partialorder %v847, 0.7853982
    %vm849 = vcmp.lt.s32.totalorder %v692, 0
    %v850 = vand.u32 %v692, 2139095040
    %v851 = vshrl.u32 %v850, 23
    %v852 = vsub.s32 %v851, 127
    %v853 = vand.u32 2147483647, %v692
    %v854 = vand.u32 %v853, 8388607
    %v855 = vor.u32 %v854, 8388608
    %v856 = vsub.s32 0, %v855
    %v857 = vadd.s32 %v852, 1
    %vm858 = vcmp.gt.s32.totalorder %v857, 0
    %v859 = vsel %vm858, %v857, 0
    %v860 = vshrl.u32 %v859, 5
    %v861 = vand.u32 %v859, 31
    %v862 = vsub.s32 32, %v861
    %v863 = vshrl.u32 683565275, %v862
    %v864 = vshll.u32 683565275, %v861
    %v865 = vshrl.u32 2475754826, %v862
    %v866 = vor.u32 %v864, %v865
    %v867 = vshll.u32 2475754826, %v861
    %v868 = vshrl.u32 2131351028, %v862
    %v869 = vor.u32 %v867, %v868
    %v870 = vshll.u32 2131351028, %v861
    %v871 = vshrl.u32 2102212464, %v862
    %v872 = vor.u32 %v870, %v871
    %v873 = vshll.u32 2102212464, %v861
    %v874 = vshrl.u32 920167782, %v862
    %v875 = vor.u32 %v873, %v874
    %v876 = vshll.u32 920167782, %v861
    %v877 = vshrl.u32 1326507024, %v862
    %v878 = vor.u32 %v876, %v877
    %vm879 = vcmp.lt.s32.totalorder %v860, 1
    %vm880 = vcmp.lt.s32.totalorder %v860, 2
    %vm881 = vcmp.lt.s32.totalorder %v860, 3
    %vm882 = vcmp.lt.s32.totalorder %v860, 4
    %v883 = vsel %vm879, %v863, %v866
    %v884 = vsel %vm882, %v872, 2102212464
    %v885 = vsel %vm881, %v869, %v884
    %v886 = vsel %vm880, %v883, %v885
    %v887 = vsel %vm879, %v866, %v869
    %v888 = vsel %vm882, %v875, 920167782
    %v889 = vsel %vm881, %v872, %v888
    %v890 = vsel %vm880, %v887, %v889
    %v891 = vsel %vm879, %v869, %v872
    %v892 = vsel %vm882, %v878, 1326507024
    %v893 = vsel %vm881, %v875, %v892
    %v894 = vsel %vm880, %v891, %v893
    %v895 = vshll.u32 %v855, 8
    %v896 = vand.u32 %v895, 65535
    %v897 = vshrl.u32 %v895, 16
    %v898 = vand.u32 %v894, 65535
    %v899 = vshrl.u32 %v894, 16
    %v900 = vmul.u32 %v896, %v898
    %v901 = vmul.u32 %v896, %v899
    %v902 = vmul.u32 %v897, %v898
    %v903 = vmul.u32 %v897, %v899
    %v904 = vshll.u32 %v901, 16
    %v905 = vshrl.u32 %v901, 16
    %v906 = vshll.u32 %v902, 16
    %v907 = vshrl.u32 %v902, 16
    %vm908 = vc.u32 %v900, %v904
    %v909 = vsel %vm908, 1, 0
    %v910 = vadd.s32 %v900, %v904
    %v911 = vadd.s32 %v903, %v909
    %vm912 = vc.u32 %v910, %v906
    %v913 = vsel %vm912, 1, 0
    %v914 = vadd.s32 %v910, %v906
    %v915 = vadd.s32 %v911, %v913
    %v916 = vadd.s32 %v915, %v905
    %v917 = vadd.s32 %v916, %v907
    %v918 = vand.u32 %v895, 65535
    %v919 = vshrl.u32 %v895, 16
    %v920 = vand.u32 %v890, 65535
    %v921 = vshrl.u32 %v890, 16
    %v922 = vmul.u32 %v918, %v920
    %v923 = vmul.u32 %v918, %v921
    %v924 = vmul.u32 %v919, %v920
    %v925 = vmul.u32 %v919, %v921
    %v926 = vshll.u32 %v923, 16
    %v927 = vshrl.u32 %v923, 16
    %v928 = vshll.u32 %v924, 16
    %v929 = vshrl.u32 %v924, 16
    %vm930 = vc.u32 %v922, %v926
    %v931 = vsel %vm930, 1, 0
    %v932 = vadd.s32 %v922, %v926
    %v933 = vadd.s32 %v925, %v931
    %vm934 = vc.u32 %v932, %v928
    %v935 = vsel %vm934, 1, 0
    %v936 = vadd.s32 %v932, %v928
    %v937 = vadd.s32 %v933, %v935
    %v938 = vadd.s32 %v937, %v927
    %v939 = vadd.s32 %v938, %v929
    %v940 = vmul.u32 %v895, %v886
    %v941 = vadd.s32 %v917, %v936
    %vm942 = vc.u32 %v917, %v936
    %v943 = vadd.s32 %v939, 1
    %v944 = vsel %vm942, %v943, %v939
    %v945 = vadd.s32 %v940, %v944
    %v946 = vadd.s32 %v945, 536870912
    %v947 = vshrl.u32 %v946, 30
    %v948 = vshll.u32 %v947, 30
    %v949 = vsub.s32 %v945, %v948
    %vm950 = vcmp.lt.s32.totalorder %v949, 0
    %v951 = vsub.s32 0, %v949
    %v952 = vsel %vm950, %v951, %v949
    %v953 = vclz %v952
    %v954 = vsub.s32 %v953, 2
    %vm955 = vcmp.gt.s32.totalorder 0, %v954
    %v956 = vsel %vm955, 0, %v954
    %v957 = vsub.s32 32, %v956
    %v958 = vshll.u32 %v949, %v956
    %v959 = vshrl.u32 %v941, %v957
    %v960 = vor.u32 %v958, %v959
    %v961 = vsub.s32 4294967266, %v956
    %v962 = vadd.s32 %v961, 127
    %v963 = vshll.u32 %v962, 23
    %v964 = vor.u32 4788187, %v963
    %v965 = vand.u32 2147483647, %v964
    %v967 = vcvt.s32.f32 %v960
    %v968 = vmul.f32 %v967, %v965
    %v969 = vxor.u32 %v968, 2147483648
    %v970 = vsel %vm849, %v969, %v968
    %v971 = vsub.s32 4, %v947
    %v972 = vsel %vm849, %v971, %v947
    %v973 = vsel %vm848, %v692, %v970
    %v974 = vsel %vm848, 0, %v972
    %v975 = vmul.f32 %v973, %v973
    %v976 = vmul.f32 %v975, -0.001358992
    %v977 = vadd.f32 %v976, 0.041655596
    %v978 = vmul.f32 %v975, %v977
    %v979 = vadd.f32 %v978, -0.4999988
    %v980 = vmul.f32 %v975, %v979
    %v981 = vadd.f32 1.0, %v980
    %v982 = vmul.f32 %v973, %v973
    %v983 = vmul.f32 %v982, -0.00019511016
    %v984 = vadd.f32 %v983, 0.008332121
    %v985 = vmul.f32 %v982, %v984
    %v986 = vadd.f32 %v985, -0.16666654
    %v987 = vmul.f32 %v982, %v986
    %v988 = vadd.f32 %v987, 1.0
    %v989 = vmul.f32 %v988, %v973
    %vm990 = vweird.f32 %v692
    %v991 = vand.u32 %v974, 3
    %vm992 = vcmp.lt.s32.totalorder %v991, 2
    %vm993 = vcmp.eq.s32.totalorder %v991, 0
    %v994 = vxor.u32 %v989, 2147483648
    %v995 = vsel %vm993, %v981, %v994
    %vm996 = vcmp.eq.s32.totalorder %v991, 2
    %v997 = vxor.u32 %v981, 2147483648
    %v998 = vsel %vm996, %v997, %v989
    %v999 = vsel %vm992, %v995, %v998
    %v1000 = vsel %vm990, nan, %v999
    %v1001 = vmul.f32 %v688, %v846
    %v1002 = vmul.f32 %v690, %v1000
    %v1003 = vand.u32 2147483647, %v691
    %vm1004 = vcmp.le.f32.partialorder %v1003, 0.7853982
    %vm1005 = vcmp.lt.s32.totalorder %v691, 0
    %v1006 = vand.u32 %v691, 2139095040
    %v1007 = vshrl.u32 %v1006, 23
    %v1008 = vsub.s32 %v1007, 127
    %v1009 = vand.u32 2147483647, %v691
    %v1010 = vand.u32 %v1009, 8388607
    %v1011 = vor.u32 %v1010, 8388608
    %v1012 = vsub.s32 0, %v1011
    %v1013 = vadd.s32 %v1008, 1
    %vm1014 = vcmp.gt.s32.totalorder %v1013, 0
    %v1015 = vsel %vm1014, %v1013, 0
    %v1016 = vshrl.u32 %v1015, 5
    %v1017 = vand.u32 %v1015, 31
    %v1018 = vsub.s32 32, %v1017
    %v1019 = vshrl.u32 683565275, %v1018
    %v1020 = vshll.u32 683565275, %v1017
    %v1021 = vshrl.u32 2475754826, %v1018
    %v1022 = vor.u32 %v1020, %v1021
    %v1023 = vshll.u32 2475754826, %v1017
    %v1024 = vshrl.u32 2131351028, %v1018
    %v1025 = vor.u32 %v1023, %v1024
    %v1026 = vshll.u32 2131351028, %v1017
    %v1027 = vshrl.u32 2102212464, %v1018
    %v1028 = vor.u32 %v1026, %v1027
    %v1029 = vshll.u32 2102212464, %v1017
    %v1030 = vshrl.u32 920167782, %v1018
    %v1031 = vor.u32 %v1029, %v1030
    %v1032 = vshll.u32 920167782, %v1017
    %v1033 = vshrl.u32 1326507024, %v1018
    %v1034 = vor.u32 %v1032, %v1033
    %vm1035 = vcmp.lt.s32.totalorder %v1016, 1
    %vm1036 = vcmp.lt.s32.totalorder %v1016, 2
    %vm1037 = vcmp.lt.s32.totalorder %v1016, 3
    %vm1038 = vcmp.lt.s32.totalorder %v1016, 4
    %v1039 = vsel %vm1035, %v1019, %v1022
    %v1040 = vsel %vm1038, %v1028, 2102212464
    %v1041 = vsel %vm1037, %v1025, %v1040
    %v1042 = vsel %vm1036, %v1039, %v1041
    %v1043 = vsel %vm1035, %v1022, %v1025
    %v1044 = vsel %vm1038, %v1031, 920167782
    %v1045 = vsel %vm1037, %v1028, %v1044
    %v1046 = vsel %vm1036, %v1043, %v1045
    %v1047 = vsel %vm1035, %v1025, %v1028
    %v1048 = vsel %vm1038, %v1034, 1326507024
    %v1049 = vsel %vm1037, %v1031, %v1048
    %v1050 = vsel %vm1036, %v1047, %v1049
    %v1051 = vshll.u32 %v1011, 8
    %v1052 = vand.u32 %v1051, 65535
    %v1053 = vshrl.u32 %v1051, 16
    %v1054 = vand.u32 %v1050, 65535
    %v1055 = vshrl.u32 %v1050, 16
    %v1056 = vmul.u32 %v1052, %v1054
    %v1057 = vmul.u32 %v1052, %v1055
    %v1058 = vmul.u32 %v1053, %v1054
    %v1059 = vmul.u32 %v1053, %v1055
    %v1060 = vshll.u32 %v1057, 16
    %v1061 = vshrl.u32 %v1057, 16
    %v1062 = vshll.u32 %v1058, 16
    %v1063 = vshrl.u32 %v1058, 16
    %vm1064 = vc.u32 %v1056, %v1060
    %v1065 = vsel %vm1064, 1, 0
    %v1066 = vadd.s32 %v1056, %v1060
    %v1067 = vadd.s32 %v1059, %v1065
    %vm1068 = vc.u32 %v1066, %v1062
    %v1069 = vsel %vm1068, 1, 0
    %v1070 = vadd.s32 %v1066, %v1062
    %v1071 = vadd.s32 %v1067, %v1069
    %v1072 = vadd.s32 %v1071, %v1061
    %v1073 = vadd.s32 %v1072, %v1063
    %v1074 = vand.u32 %v1051, 65535
    %v1075 = vshrl.u32 %v1051, 16
    %v1076 = vand.u32 %v1046, 65535
    %v1077 = vshrl.u32 %v1046, 16
    %v1078 = vmul.u32 %v1074, %v1076
    %v1079 = vmul.u32 %v1074, %v1077
    %v1080 = vmul.u32 %v1075, %v1076
    %v1081 = vmul.u32 %v1075, %v1077
    %v1082 = vshll.u32 %v1079, 16
    %v1083 = vshrl.u32 %v1079, 16
    %v1084 = vshll.u32 %v1080, 16
    %v1085 = vshrl.u32 %v1080, 16
    %vm1086 = vc.u32 %v1078, %v1082
    %v1087 = vsel %vm1086, 1, 0
    %v1088 = vadd.s32 %v1078, %v1082
    %v1089 = vadd.s32 %v1081, %v1087
    %vm1090 = vc.u32 %v1088, %v1084
    %v1091 = vsel %vm1090, 1, 0
    %v1092 = vadd.s32 %v1088, %v1084
    %v1093 = vadd.s32 %v1089, %v1091
    %v1094 = vadd.s32 %v1093, %v1083
    %v1095 = vadd.s32 %v1094, %v1085
    %v1096 = vmul.u32 %v1051, %v1042
    %v1097 = vadd.s32 %v1073, %v1092
    %vm1098 = vc.u32 %v1073, %v1092
    %v1099 = vadd.s32 %v1095, 1
    %v1100 = vsel %vm1098, %v1099, %v1095
    %v1101 = vadd.s32 %v1096, %v1100
    %v1102 = vadd.s32 %v1101, 536870912
    %v1103 = vshrl.u32 %v1102, 30
    %v1104 = vshll.u32 %v1103, 30
    %v1105 = vsub.s32 %v1101, %v1104
    %vm1106 = vcmp.lt.s32.totalorder %v1105, 0
    %v1107 = vsub.s32 0, %v1105
    %v1108 = vsel %vm1106, %v1107, %v1105
    %v1109 = vclz %v1108
    %v1110 = vsub.s32 %v1109, 2
    %vm1111 = vcmp.gt.s32.totalorder 0, %v1110
    %v1112 = vsel %vm1111, 0, %v1110
    %v1113 = vsub.s32 32, %v1112
    %v1114 = vshll.u32 %v1105, %v1112
    %v1115 = vshrl.u32 %v1097, %v1113
    %v1116 = vor.u32 %v1114, %v1115
    %v1117 = vsub.s32 4294967266, %v1112
    %v1118 = vadd.s32 %v1117, 127
    %v1119 = vshll.u32 %v1118, 23
    %v1120 = vor.u32 4788187, %v1119
    %v1121 = vand.u32 2147483647, %v1120
    %v1123 = vcvt.s32.f32 %v1116
    %v1124 = vmul.f32 %v1123, %v1121
    %v1125 = vxor.u32 %v1124, 2147483648
    %v1126 = vsel %vm1005, %v1125, %v1124
    %v1127 = vsub.s32 4, %v1103
    %v1128 = vsel %vm1005, %v1127, %v1103
    %v1129 = vsel %vm1004, %v691, %v1126
    %v1130 = vsel %vm1004, 0, %v1128
    %v1131 = vmul.f32 %v1129, %v1129
    %v1132 = vmul.f32 %v1131, -0.001358992
    %v1133 = vadd.f32 %v1132, 0.041655596
    %v1134 = vmul.f32 %v1131, %v1133
    %v1135 = vadd.f32 %v1134, -0.4999988
    %v1136 = vmul.f32 %v1131, %v1135
    %v1137 = vadd.f32 1.0, %v1136
    %v1138 = vmul.f32 %v1129, %v1129
    %v1139 = vmul.f32 %v1138, -0.00019511016
    %v1140 = vadd.f32 %v1139, 0.008332121
    %v1141 = vmul.f32 %v1138, %v1140
    %v1142 = vadd.f32 %v1141, -0.16666654
    %v1143 = vmul.f32 %v1138, %v1142
    %v1144 = vadd.f32 %v1143, 1.0
    %v1145 = vmul.f32 %v1144, %v1129
    %vm1146 = vweird.f32 %v691
    %v1147 = vadd.s32 %v1130, 3
    %v1148 = vand.u32 %v1147, 3
    %vm1149 = vcmp.lt.s32.totalorder %v1148, 2
    %vm1150 = vcmp.eq.s32.totalorder %v1148, 0
    %v1151 = vxor.u32 %v1145, 2147483648
    %v1152 = vsel %vm1150, %v1137, %v1151
    %vm1153 = vcmp.eq.s32.totalorder %v1148, 2
    %v1154 = vxor.u32 %v1137, 2147483648
    %v1155 = vsel %vm1153, %v1154, %v1145
    %v1156 = vsel %vm1149, %v1152, %v1155
    %v1157 = vsel %vm1146, nan, %v1156
    %v1158 = vand.u32 2147483647, %v692
    %vm1159 = vcmp.le.f32.partialorder %v1158, 0.7853982
    %vm1160 = vcmp.lt.s32.totalorder %v692, 0
    %v1161 = vand.u32 %v692, 2139095040
    %v1162 = vshrl.u32 %v1161, 23
    %v1163 = vsub.s32 %v1162, 127
    %v1164 = vand.u32 2147483647, %v692
    %v1165 = vand.u32 %v1164, 8388607
    %v1166 = vor.u32 %v1165, 8388608
    %v1167 = vsub.s32 0, %v1166
    %v1168 = vadd.s32 %v1163, 1
    %vm1169 = vcmp.gt.s32.totalorder %v1168, 0
    %v1170 = vsel %vm1169, %v1168, 0
    %v1171 = vshrl.u32 %v1170, 5
    %v1172 = vand.u32 %v1170, 31
    %v1173 = vsub.s32 32, %v1172
    %v1174 = vshrl.u32 683565275, %v1173
    %v1175 = vshll.u32 683565275, %v1172
    %v1176 = vshrl.u32 2475754826, %v1173
    %v1177 = vor.u32 %v1175, %v1176
    %v1178 = vshll.u32 2475754826, %v1172
    %v1179 = vshrl.u32 2131351028, %v1173
    %v1180 = vor.u32 %v1178, %v1179
    %v1181 = vshll.u32 2131351028, %v1172
    %v1182 = vshrl.u32 2102212464, %v1173
    %v1183 = vor.u32 %v1181, %v1182
    %v1184 = vshll.u32 2102212464, %v1172
    %v1185 = vshrl.u32 920167782, %v1173
    %v1186 = vor.u32 %v1184, %v1185
    %v1187 = vshll.u32 920167782, %v1172
    %v1188 = vshrl.u32 1326507024, %v1173
    %v1189 = vor.u32 %v1187, %v1188
    %vm1190 = vcmp.lt.s32.totalorder %v1171, 1
    %vm1191 = vcmp.lt.s32.totalorder %v1171, 2
    %vm1192 = vcmp.lt.s32.totalorder %v1171, 3
    %vm1193 = vcmp.lt.s32.totalorder %v1171, 4
    %v1194 = vsel %vm1190, %v1174, %v1177
    %v1195 = vsel %vm1193, %v1183, 2102212464
    %v1196 = vsel %vm1192, %v1180, %v1195
    %v1197 = vsel %vm1191, %v1194, %v1196
    %v1198 = vsel %vm1190, %v1177, %v1180
    %v1199 = vsel %vm1193, %v1186, 920167782
    %v1200 = vsel %vm1192, %v1183, %v1199
    %v1201 = vsel %vm1191, %v1198, %v1200
    %v1202 = vsel %vm1190, %v1180, %v1183
    %v1203 = vsel %vm1193, %v1189, 1326507024
    %v1204 = vsel %vm1192, %v1186, %v1203
    %v1205 = vsel %vm1191, %v1202, %v1204
    %v1206 = vshll.u32 %v1166, 8
    %v1207 = vand.u32 %v1206, 65535
    %v1208 = vshrl.u32 %v1206, 16
    %v1209 = vand.u32 %v1205, 65535
    %v1210 = vshrl.u32 %v1205, 16
    %v1211 = vmul.u32 %v1207, %v1209
    %v1212 = vmul.u32 %v1207, %v1210
    %v1213 = vmul.u32 %v1208, %v1209
    %v1214 = vmul.u32 %v1208, %v1210
    %v1215 = vshll.u32 %v1212, 16
    %v1216 = vshrl.u32 %v1212, 16
    %v1217 = vshll.u32 %v1213, 16
    %v1218 = vshrl.u32 %v1213, 16
    %vm1219 = vc.u32 %v1211, %v1215
    %v1220 = vsel %vm1219, 1, 0
    %v1221 = vadd.s32 %v1211, %v1215
    %v1222 = vadd.s32 %v1214, %v1220
    %vm1223 = vc.u32 %v1221, %v1217
    %v1224 = vsel %vm1223, 1, 0
    %v1225 = vadd.s32 %v1221, %v1217
    %v1226 = vadd.s32 %v1222, %v1224
    %v1227 = vadd.s32 %v1226, %v1216
    %v1228 = vadd.s32 %v1227, %v1218
    %v1229 = vand.u32 %v1206, 65535
    %v1230 = vshrl.u32 %v1206, 16
    %v1231 = vand.u32 %v1201, 65535
    %v1232 = vshrl.u32 %v1201, 16
    %v1233 = vmul.u32 %v1229, %v1231
    %v1234 = vmul.u32 %v1229, %v1232
    %v1235 = vmul.u32 %v1230, %v1231
    %v1236 = vmul.u32 %v1230, %v1232
    %v1237 = vshll.u32 %v1234, 16
    %v1238 = vshrl.u32 %v1234, 16
    %v1239 = vshll.u32 %v1235, 16
    %v1240 = vshrl.u32 %v1235, 16
    %vm1241 = vc.u32 %v1233, %v1237
    %v1242 = vsel %vm1241, 1, 0
    %v1243 = vadd.s32 %v1233, %v1237
    %v1244 = vadd.s32 %v1236, %v1242
    %vm1245 = vc.u32 %v1243, %v1239
    %v1246 = vsel %vm1245, 1, 0
    %v1247 = vadd.s32 %v1243, %v1239
    %v1248 = vadd.s32 %v1244, %v1246
    %v1249 = vadd.s32 %v1248, %v1238
    %v1250 = vadd.s32 %v1249, %v1240
    %v1251 = vmul.u32 %v1206, %v1197
    %v1252 = vadd.s32 %v1228, %v1247
    %vm1253 = vc.u32 %v1228, %v1247
    %v1254 = vadd.s32 %v1250, 1
    %v1255 = vsel %vm1253, %v1254, %v1250
    %v1256 = vadd.s32 %v1251, %v1255
    %v1257 = vadd.s32 %v1256, 536870912
    %v1258 = vshrl.u32 %v1257, 30
    %v1259 = vshll.u32 %v1258, 30
    %v1260 = vsub.s32 %v1256, %v1259
    %vm1261 = vcmp.lt.s32.totalorder %v1260, 0
    %v1262 = vsub.s32 0, %v1260
    %v1263 = vsel %vm1261, %v1262, %v1260
    %v1264 = vclz %v1263
    %v1265 = vsub.s32 %v1264, 2
    %vm1266 = vcmp.gt.s32.totalorder 0, %v1265
    %v1267 = vsel %vm1266, 0, %v1265
    %v1268 = vsub.s32 32, %v1267
    %v1269 = vshll.u32 %v1260, %v1267
    %v1270 = vshrl.u32 %v1252, %v1268
    %v1271 = vor.u32 %v1269, %v1270
    %v1272 = vsub.s32 4294967266, %v1267
    %v1273 = vadd.s32 %v1272, 127
    %v1274 = vshll.u32 %v1273, 23
    %v1275 = vor.u32 4788187, %v1274
    %v1276 = vand.u32 2147483647, %v1275
    %v1278 = vcvt.s32.f32 %v1271
    %v1279 = vmul.f32 %v1278, %v1276
    %v1280 = vxor.u32 %v1279, 2147483648
    %v1281 = vsel %vm1160, %v1280, %v1279
    %v1282 = vsub.s32 4, %v1258
    %v1283 = vsel %vm1160, %v1282, %v1258
    %v1284 = vsel %vm1159, %v692, %v1281
    %v1285 = vsel %vm1159, 0, %v1283
    %v1286 = vmul.f32 %v1284, %v1284
    %v1287 = vmul.f32 %v1286, -0.001358992
    %v1288 = vadd.f32 %v1287, 0.041655596
    %v1289 = vmul.f32 %v1286, %v1288
    %v1290 = vadd.f32 %v1289, -0.4999988
    %v1291 = vmul.f32 %v1286, %v1290
    %v1292 = vadd.f32 1.0, %v1291
    %v1293 = vmul.f32 %v1284, %v1284
    %v1294 = vmul.f32 %v1293, -0.00019511016
    %v1295 = vadd.f32 %v1294, 0.008332121
    %v1296 = vmul.f32 %v1293, %v1295
    %v1297 = vadd.f32 %v1296, -0.16666654
    %v1298 = vmul.f32 %v1293, %v1297
    %v1299 = vadd.f32 %v1298, 1.0
    %v1300 = vmul.f32 %v1299, %v1284
    %vm1301 = vweird.f32 %v692
    %v1302 = vadd.s32 %v1285, 3
    %v1303 = vand.u32 %v1302, 3
    %vm1304 = vcmp.lt.s32.totalorder %v1303, 2
    %vm1305 = vcmp.eq.s32.totalorder %v1303, 0
    %v1306 = vxor.u32 %v1300, 2147483648
    %v1307 = vsel %vm1305, %v1292, %v1306
    %vm1308 = vcmp.eq.s32.totalorder %v1303, 2
    %v1309 = vxor.u32 %v1292, 2147483648
    %v1310 = vsel %vm1308, %v1309, %v1300
    %v1311 = vsel %vm1304, %v1307, %v1310
    %v1312 = vsel %vm1301, nan, %v1311
    %v1313 = vmul.f32 %v688, %v1157
    %v1314 = vmul.f32 %v690, %v1312
    %v1315 = vmul.f32 %v41, %v1001
    %v1316 = vmul.f32 %v42, %v1002
    %v1317 = vmul.f32 %v43, %v1313
    %v1318 = vmul.f32 %v44, %v1314
    %v1319 = vsub.f32 %v1315, %v1317
    %v1320 = vsub.f32 %v1316, %v1318
    %1321 = vst [vmem:[%s8] sm:$0xff] %v1319
    %1322 = vst [vmem:[%s8 + $0x8] sm:$0xff] %v1320
    %v1323 = vmul.f32 %v43, %v1001
    %v1324 = vmul.f32 %v44, %v1002
    %v1325 = vmul.f32 %v41, %v1313
    %v1326 = vmul.f32 %v42, %v1314
    %v1327 = vadd.f32 %v1323, %v1325
    %v1328 = vadd.f32 %v1324, %v1326
    %1329 = vst [vmem:[%s8 + $0x10] sm:$0xff] %v1327
    %1330 = vst [vmem:[%s8 + $0x18] sm:$0xff] %v1328
    %v1331 = vmul.f32 %v41, %v41
    %v1332 = vmul.f32 %v42, %v42
    %v1333 = vmul.f32 %v43, %v43
    %v1334 = vmul.f32 %v44, %v44
    %v1335 = vadd.f32 %v1331, %v1333
    %v1336 = vadd.f32 %v1332, %v1334
    %v1337 = vrsqrt.pop %v1335
    %v1338 = vmul.f32 %v1337, %v1335
    %v1339 = vmul.f32 %v1338, %v1337
    %v1340 = vmul.f32 0.5, %v1339
    %v1341 = vsub.f32 1.5, %v1340
    %v1342 = vmul.f32 %v1337, %v1341
    %v1343 = vmul.f32 %v1335, %v1342
    %vm1344 = vcmp.eq.f32.partialorder %v1335, inf
    %v1345 = vsel %vm1344, %v1335, %v1343
    %vm1346 = vcmp.eq.f32.partialorder %v1335, 0.0
    %v1347 = vand.u32 %v1335, 2147483648
    %v1348 = vsel %vm1346, %v1347, %v1345
    %v1349 = vrsqrt.pop %v1336
    %v1350 = vmul.f32 %v1349, %v1336
    %v1351 = vmul.f32 %v1350, %v1349
    %v1352 = vmul.f32 0.5, %v1351
    %v1353 = vsub.f32 1.5, %v1352
    %v1354 = vmul.f32 %v1349, %v1353
    %v1355 = vmul.f32 %v1336, %v1354
    %vm1356 = vcmp.eq.f32.partialorder %v1336, inf
    %v1357 = vsel %vm1356, %v1336, %v1355
    %vm1358 = vcmp.eq.f32.partialorder %v1336, 0.0
    %v1359 = vand.u32 %v1336, 2147483648
    %v1360 = vsel %vm1358, %v1359, %v1357
    %1361 = vst [vmem:[#allocation2] sm:$0xff] %v1348
    %1362 = vst [vmem:[#allocation2 + $0x8] sm:$0xff] %v1360
    %1363 = vst [vmem:[#allocation4] sm:$0xff] %v688
    %1364 = vst [vmem:[#allocation4 + $0x8] sm:$0xff] %v690
    %v1365 = vld [vmem:[%s1] sm:$0xff]
    %v1366 = vld [vmem:[%s1 + $0x8] sm:$0xff]
    %v1367 = vld [vmem:[%s1 + $0x10] sm:$0xff]
    %v1368 = vld [vmem:[%s1 + $0x18] sm:$0xff]
    %v1369 = vmul.f32 %v1365, %v1365
    %v1370 = vmul.f32 %v1366, %v1366
    %v1371 = vmul.f32 %v1367, %v1367
    %v1372 = vmul.f32 %v1368, %v1368
    %v1373 = vadd.f32 %v1369, %v1371
    %v1374 = vadd.f32 %v1370, %v1372
    %v1375 = vrsqrt.pop %v1373
    %v1376 = vmul.f32 %v1375, %v1373
    %v1377 = vmul.f32 %v1376, %v1375
    %v1378 = vmul.f32 0.5, %v1377
    %v1379 = vsub.f32 1.5, %v1378
    %v1380 = vmul.f32 %v1375, %v1379
    %v1381 = vmul.f32 %v1373, %v1380
    %vm1382 = vcmp.eq.f32.partialorder %v1373, inf
    %v1383 = vsel %vm1382, %v1373, %v1381
    %vm1384 = vcmp.eq.f32.partialorder %v1373, 0.0
    %v1385 = vand.u32 %v1373, 2147483648
    %v1386 = vsel %vm1384, %v1385, %v1383
    %v1387 = vrsqrt.pop %v1374
    %v1388 = vmul.f32 %v1387, %v1374
    %v1389 = vmul.f32 %v1388, %v1387
    %v1390 = vmul.f32 0.5, %v1389
    %v1391 = vsub.f32 1.5, %v1390
    %v1392 = vmul.f32 %v1387, %v1391
    %v1393 = vmul.f32 %v1374, %v1392
    %vm1394 = vcmp.eq.f32.partialorder %v1374, inf
    %v1395 = vsel %vm1394, %v1374, %v1393
    %vm1396 = vcmp.eq.f32.partialorder %v1374, 0.0
    %v1397 = vand.u32 %v1374, 2147483648
    %v1398 = vsel %vm1396, %v1397, %v1395
    %1399 = vst [vmem:[#allocation6] sm:$0xff] %v1386
    %1400 = vst [vmem:[#allocation6 + $0x8] sm:$0xff] %v1398
    %v1401 = vld [vmem:[%s5] sm:$0xff]
    %v1402 = vld [vmem:[%s6] sm:$0xff]
    %v1403 = vld [vmem:[%s7] sm:$0xff]
    %v1404 = vmul.f32 %v1401, %v1402
    %1406 = vrot.lane.b32.xlu0 %v1404, 116
    %v1407 = vpop.permute.xlu0 %1406
    %v1409 = vsub.f32 %v1404, %v1407
    %1411 = vrot.lane.b32.xlu0 %v1402, 12
    %v1412 = vpop.permute.xlu0 %1411
    %v1414 = vmul.f32 %v1401, %v1412
    %1415 = vrot.lane.b32.xlu0 %v1402, 116
    %v1416 = vpop.permute.xlu0 %1415
    %v1418 = vmul.f32 %v1401, %v1416
    %1420 = vrot.lane.b32.xlu0 %v1418, 12
    %v1421 = vpop.permute.xlu0 %1420
    %v1423 = vadd.f32 %v1414, %v1421
    %vm1424 = vcmask 97280
    %v1425 = vsel %vm1424, %v1409, %v1423
    %vm1426 = vcmask 195584
    %1427 = vst.msk [vmem:[%s9] sm:$0xff] %vm1426, %v1425
    %v1428 = vmul.f32 %v1401, %v1401
    %1430 = vrot.lane.b32.xlu0 %v1428, 116
    %v1431 = vpop.permute.xlu0 %1430
    %v1433 = vadd.f32 %v1428, %v1431
    %v1434 = vrsqrt.pop %v1433
    %v1435 = vmul.f32 %v1434, %v1433
    %v1436 = vmul.f32 %v1435, %v1434
    %v1437 = vmul.f32 0.5, %v1436
    %v1438 = vsub.f32 1.5, %v1437
    %v1439 = vmul.f32 %v1434, %v1438
    %v1440 = vmul.f32 %v1433, %v1439
    %vm1441 = vcmp.eq.f32.partialorder %v1433, inf
    %v1442 = vsel %vm1441, %v1433, %v1440
    %vm1443 = vcmp.eq.f32.partialorder %v1433, 0.0
    %v1444 = vand.u32 %v1433, 2147483648
    %v1445 = vsel %vm1443, %v1444, %v1442
    %1446 = vst.msk [vmem:[#allocation7] sm:$0xff] %vm1424, %v1445
    %v1447 = vmul.f32 %v1402, %v1402
    %1449 = vrot.lane.b32.xlu0 %v1447, 116
    %v1450 = vpop.permute.xlu0 %1449
    %v1452 = vadd.f32 %v1447, %v1450
    %v1453 = vrsqrt.pop %v1452
    %v1454 = vmul.f32 %v1453, %v1452
    %v1455 = vmul.f32 %v1454, %v1453
    %v1456 = vmul.f32 0.5, %v1455
    %v1457 = vsub.f32 1.5, %v1456
    %v1458 = vmul.f32 %v1453, %v1457
    %v1459 = vmul.f32 %v1452, %v1458
    %vm1460 = vcmp.eq.f32.partialorder %v1452, inf
    %v1461 = vsel %vm1460, %v1452, %v1459
    %vm1462 = vcmp.eq.f32.partialorder %v1452, 0.0
    %v1463 = vand.u32 %v1452, 2147483648
    %v1464 = vsel %vm1462, %v1463, %v1461
    %1465 = vst.msk [vmem:[#allocation9] sm:$0xff] %vm1424, %v1464
    %v1466 = vmul.f32 %v1403, %v1403
    %1468 = vrot.lane.b32.xlu0 %v1466, 116
    %v1469 = vpop.permute.xlu0 %1468
    %v1471 = vadd.f32 %v1466, %v1469
    %v1472 = vrsqrt.pop %v1471
    %v1473 = vmul.f32 %v1472, %v1471
    %v1474 = vmul.f32 %v1473, %v1472
    %v1475 = vmul.f32 0.5, %v1474
    %v1476 = vsub.f32 1.5, %v1475
    %v1477 = vmul.f32 %v1472, %v1476
    %v1478 = vmul.f32 %v1471, %v1477
    %vm1479 = vcmp.eq.f32.partialorder %v1471, inf
    %v1480 = vsel %vm1479, %v1471, %v1478
    %vm1481 = vcmp.eq.f32.partialorder %v1471, 0.0
    %v1482 = vand.u32 %v1471, 2147483648
    %v1483 = vsel %vm1481, %v1482, %v1480
    %1484 = vst.msk [vmem:[#allocation10] sm:$0xff] %vm1424, %v1483
    // Predicated region
    $region34: #{spider_forward.2} parent=1 // pred_check
      _
    $region35: #{spider_forward.2} parent=1 // pred_check_branch
      %1486 = sbr.rel (0) target = $region37
    $region36: #{spider_forward.2} parent=1 // pred_region
      _
    $region37: #{spider_forward.2} parent=1 // pred_fallthru
      _
    // Predicated region
    $region38: #{spider_forward.2} parent=1 // pred_check
      _
    $region39: #{spider_forward.2} parent=1 // pred_check_branch
      %1488 = sbr.rel (0) target = $region41
    $region40: #{spider_forward.2} parent=1 // pred_region
      _
    $region41: #{spider_forward.2} parent=1 // pred_fallthru
      _
    // Predicated region
    $region42: #{spider_forward.2} parent=1 // pred_check
      _
    $region43: #{spider_forward.2} parent=1 // pred_check_branch
      %1490 = sbr.rel (0) target = $region45
    $region44: #{spider_forward.2} parent=1 // pred_region
      %1492 = vsyncadd [#allocation3], 0
      %s1494 = sshll.u32 [#allocation2], 4
      %s1495 = int_to_ptr.vmem [resolvable:$true] %s1494
      %s1496 = sshll.u32 %s10, 4
      %s1497 = int_to_ptr.hbm [resolvable:$true] %s1496
      %1499 = dma.vmem_to_hbm [thread:$0]  %s1495, 256, %s1497, [#allocation3]
    $region45: #{spider_forward.2} parent=1 // pred_fallthru
      _
    // Predicated region
    $region46: #{spider_forward.2} parent=1 // pred_check
      _
    $region47: #{spider_forward.2} parent=1 // pred_check_branch
      %1501 = sbr.rel (0) target = $region49
    $region48: #{spider_forward.2} parent=1 // pred_region
      %1503 = vsyncadd [#allocation5], 0
      %s1505 = sshll.u32 [#allocation4], 4
      %s1506 = int_to_ptr.vmem [resolvable:$true] %s1505
      %s1507 = sshll.u32 %s11, 4
      %s1508 = int_to_ptr.hbm [resolvable:$true] %s1507
      %1510 = dma.vmem_to_hbm [thread:$0]  %s1506, 256, %s1508, [#allocation5]
    $region49: #{spider_forward.2} parent=1 // pred_fallthru
      _
    // Predicated region
    $region50: #{spider_forward.2} parent=1 // pred_check
      _
    $region51: #{spider_forward.2} parent=1 // pred_check_branch
      %1512 = sbr.rel (0) target = $region53
    $region52: #{spider_forward.2} parent=1 // pred_region
      %1514 = vsyncadd [#allocation5], 0
      %s1516 = sshll.u32 [#allocation6], 4
      %s1517 = int_to_ptr.vmem [resolvable:$true] %s1516
      %s1518 = sshll.u32 %s12, 4
      %s1519 = int_to_ptr.hbm [resolvable:$true] %s1518
      %1521 = dma.vmem_to_hbm [thread:$0]  %s1517, 256, %s1519, [#allocation5]
    $region53: #{spider_forward.2} parent=1 // pred_fallthru
      _
    // Predicated region
    $region54: #{spider_forward.2} parent=1 // pred_check
      _
    $region55: #{spider_forward.2} parent=1 // pred_check_branch
      %1523 = sbr.rel (0) target = $region57
    $region56: #{spider_forward.2} parent=1 // pred_region
      %1525 = vsyncadd [#allocation8], 0
      %s1527 = sshll.u32 [#allocation7], 4
      %s1528 = int_to_ptr.vmem [resolvable:$true] %s1527
      %s1529 = sshll.u32 %s13, 4
      %s1530 = int_to_ptr.hbm [resolvable:$true] %s1529
      %1532 = dma.vmem_to_hbm [thread:$0]  %s1528, 128, %s1530, [#allocation8]
    $region57: #{spider_forward.2} parent=1 // pred_fallthru
      _
    // Predicated region
    $region58: #{spider_forward.2} parent=1 // pred_check
      _
    $region59: #{spider_forward.2} parent=1 // pred_check_branch
      %1534 = sbr.rel (0) target = $region61
    $region60: #{spider_forward.2} parent=1 // pred_region
      %1536 = vsyncadd [#allocation8], 0
      %s1538 = sshll.u32 [#allocation9], 4
      %s1539 = int_to_ptr.vmem [resolvable:$true] %s1538
      %s1540 = sshll.u32 %s14, 4
      %s1541 = int_to_ptr.hbm [resolvable:$true] %s1540
      %1543 = dma.vmem_to_hbm [thread:$0]  %s1539, 128, %s1541, [#allocation8]
    $region61: #{spider_forward.2} parent=1 // pred_fallthru
      _
    // Predicated region
    $region62: #{spider_forward.2} parent=1 // pred_check
      _
    $region63: #{spider_forward.2} parent=1 // pred_check_branch
      %1545 = sbr.rel (0) target = $region65
    $region64: #{spider_forward.2} parent=1 // pred_region
      %1547 = vsyncadd [#allocation11], 0
      %s1549 = sshll.u32 [#allocation10], 4
      %s1550 = int_to_ptr.vmem [resolvable:$true] %s1549
      %s1551 = sshll.u32 %s15, 4
      %s1552 = int_to_ptr.hbm [resolvable:$true] %s1551
      %1554 = dma.vmem_to_hbm [thread:$0]  %s1550, 128, %s1552, [#allocation11]
    $region65: #{spider_forward.2} parent=1 // pred_fallthru
      _
    // Predicated region
    $region66: #{spider_forward.2} parent=1 // pred_check
      _
    $region67: #{spider_forward.2} parent=1 // pred_check_branch
      %1556 = sbr.rel (0) target = $region69
    $region68: #{spider_forward.2} parent=1 // pred_region
      _
    $region69: #{spider_forward.2} parent=1 // pred_fallthru
      _
    // Predicated region
    $region70: #{spider_forward.2} parent=1 // pred_check
      _
    $region71: #{spider_forward.2} parent=1 // pred_check_branch
      %1558 = sbr.rel (0) target = $region73
    $region72: #{spider_forward.2} parent=1 // pred_region
      _
    $region73: #{spider_forward.2} parent=1 // pred_fallthru
      _
    // Predicated region
    $region74: #{spider_forward.2} parent=1 // pred_check
      _
    $region75: #{spider_forward.2} parent=1 // pred_check_branch
      %1560 = sbr.rel (0) target = $region77
    $region76: #{spider_forward.2} parent=1 // pred_region
      %1562 = dma.done [#allocation3], 256
    $region77: #{spider_forward.2} parent=1 // pred_fallthru
      _
    // Predicated region
    $region78: #{spider_forward.2} parent=1 // pred_check
      _
    $region79: #{spider_forward.2} parent=1 // pred_check_branch
      %1564 = sbr.rel (0) target = $region81
    $region80: #{spider_forward.2} parent=1 // pred_region
      %1566 = dma.done [#allocation5], 256
    $region81: #{spider_forward.2} parent=1 // pred_fallthru
      _
    // Predicated region
    $region82: #{spider_forward.2} parent=1 // pred_check
      _
    $region83: #{spider_forward.2} parent=1 // pred_check_branch
      %1568 = sbr.rel (0) target = $region85
    $region84: #{spider_forward.2} parent=1 // pred_region
      %1570 = dma.done [#allocation5], 256
    $region85: #{spider_forward.2} parent=1 // pred_fallthru
      _
    // Predicated region
    $region86: #{spider_forward.2} parent=1 // pred_check
      _
    $region87: #{spider_forward.2} parent=1 // pred_check_branch
      %1572 = sbr.rel (0) target = $region89
    $region88: #{spider_forward.2} parent=1 // pred_region
      %1574 = dma.done [#allocation8], 128
    $region89: #{spider_forward.2} parent=1 // pred_fallthru
      _
    // Predicated region
    $region90: #{spider_forward.2} parent=1 // pred_check
      _
    $region91: #{spider_forward.2} parent=1 // pred_check_branch
      %1576 = sbr.rel (0) target = $region93
    $region92: #{spider_forward.2} parent=1 // pred_region
      %1578 = dma.done [#allocation8], 128
    $region93: #{spider_forward.2} parent=1 // pred_fallthru
      _
    // Predicated region
    $region94: #{spider_forward.2} parent=1 // pred_check
      _
    $region95: #{spider_forward.2} parent=1 // pred_check_branch
      %1580 = sbr.rel (0) target = $region97
    $region96: #{spider_forward.2} parent=1 // pred_region
      %1582 = dma.done [#allocation11], 128
    $region97: #{spider_forward.2} parent=1 // pred_fallthru
      _
    %1583 = vsyncpa [#allocation3], 1
    %1584 = vsyncpa [#allocation5], 1
    %1585 = vsyncpa [#allocation8], 1
    %1586 = vsyncpa [#allocation11], 1

// kernel: spider_forward.3
$region0: #{spider_forward.3}
  #allocation0 [shape = 'u32[]', space=smem, size = 0x4, offset = 0x4, fixed_abs, tag = 'smem constant byte address 0x4 - core index']
  #allocation1 [shape = 'u32[72,128]{1,0:T(1,128)}', space=vmem, size = 0x9000, scoped, tag = 'internal scratch']
  %s0 = inlined_call_operand.vmem [shape: f32[8,512], index: 0, kind: input, shape index: {}]
  %s1 = inlined_call_operand.vmem [shape: f32[8,24], index: 1, kind: input, shape index: {}]
  %s2 = inlined_call_operand.hbm [shape: f32[1024,512], index: 2, kind: input, shape index: {}]
  %s3 = inlined_call_operand.vmem [shape: f32[1024,24], index: 3, kind: input, shape index: {}]
  %s4 = inlined_call_operand.hbm [shape: f32[8,1024], index: 4, kind: output, shape index: {0}]
  %s5 = inlined_call_operand.hbm [shape: f32[8,1024], index: 5, kind: output, shape index: {1}]
  %6 = xla_tuple %s4, %s5
  %s7 = sld [smem:[#allocation0]]
  $region61: #{spider_forward.3} parent=0
    _
  %s9 = ssub.s32 1, %s7
  %s10 = scalar_select 0, %s9, %s7
  $region1: #{spider_forward.3} parent=0
    #allocation2 [shape = 'u8[2097152]{0}', space=vmem, size = 0x200000, scoped, tag = 'input window, operand 2']
    #allocation3 [shape = 's32[2]{0}', space=sflag, size = 0x8, scoped, tag = 'scoped memory for spider_forward.3']
    #allocation4 [shape = 's32[2]{0}', space=sflag, size = 0x8, scoped, tag = 'scoped memory for spider_forward.3']
    #allocation5 [shape = 'u8[32768]{0}', space=vmem, size = 0x8000, scoped, tag = 'output window, operand 0']
    #allocation6 [shape = 'u8[32768]{0}', space=vmem, size = 0x8000, scoped, tag = 'output window, operand 1']
    #allocation7 [shape = 's32[2]{0}', space=sflag, size = 0x8, scoped, tag = 'scoped memory for spider_forward.3']
    %11 = vsyncpa [#allocation3], 0
    %s12 = scalar_lea.sflag [#allocation3], 1
    %13 = vsyncpa %s12, 0
    %14 = vsyncpa [#allocation4], 0
    %s15 = scalar_lea.sflag [#allocation4], 1
    %16 = vsyncpa %s15, 0
    %17 = vsyncpa [#allocation7], 0
    %s18 = scalar_lea.sflag [#allocation7], 1
    %19 = vsyncpa %s18, 0
    loop: start=0, step=1, limit=4
    $region2: #{spider_forward.3} parent=1 // loop_pre_header
      _
    $region3: #{spider_forward.3} parent=1 // loop_header
      %s21 = sphi 0, %s25
      %p22 = scmp.ge.s32.totalorder %s21, 4
      %s29 = sphi 0, %s29
      %s31 = sphi 0, %s29
      %s32 = sphi 0, %s31
      %s46 = sphi 0, %s32
      %s50 = sphi 0, %s50
      %s52 = sphi 0, %s50
      %s53 = sphi 0, %s52
      %s67 = sphi 0, %s53
      %s73 = sphi 0, %s75
      %s76 = sphi 0, %s73
      %s77 = sphi 0, %s76
      %s93 = sphi 0, %s77
      %s99 = sphi 0, %s101
      %s102 = sphi 0, %s99
      %s103 = sphi 0, %s102
      %s119 = sphi 0, %s103
      %s125 = sphi 0, %s127
      %s128 = sphi 0, %s125
      %s129 = sphi 0, %s128
      %s145 = sphi 0, %s129
      %s151 = sphi 0, %s153
      %s154 = sphi 0, %s151
      %s155 = sphi 0, %s154
      %s171 = sphi 0, %s155
    $region4: #{spider_forward.3} parent=1 // loop_header_branch
      %24 = sbr.rel (%p22) target = $region8
    $region5: #{spider_forward.3} parent=1 // loop_body
      %s26 = ssub.s32 %s21, 1
      %s27 = ssub.s32 %s21, 2
      %s28 = sadd.s32 %s21, 1
      %s30 = sadd.s32 %s29, 1
      %p33 = scmp.eq.s32.totalorder %s21, 1
      %p34 = scmp.ne.s32.totalorder %s29, %s31
      %p35 = scmp.eq.s32.totalorder %s21, 0
      %p36 = por %p34, %p35
      %p37 = scmp.ne.s32.totalorder %s29, %s31
      %p38 = scmp.eq.s32.totalorder %s26, 1
      %p39 = por %p37, %p38
      %p40 = scmp.ne.s32.totalorder %s31, %s32
      %p41 = scmp.eq.s32.totalorder %s26, 0
      %p42 = por %p40, %p41
      %p43 = scmp.ne.s32.totalorder %s31, %s32
      %p44 = scmp.eq.s32.totalorder %s27, 1
      %p45 = por %p43, %p44
      %p47 = scmp.ne.s32.totalorder %s32, %s46
      %p48 = scmp.eq.s32.totalorder %s27, 0
      %p49 = por %p47, %p48
      %s51 = sadd.s32 %s50, 1
      %p54 = scmp.eq.s32.totalorder %s21, 1
      %p55 = scmp.ne.s32.totalorder %s50, %s52
      %p56 = scmp.eq.s32.totalorder %s21, 0
      %p57 = por %p55, %p56
      %p58 = scmp.ne.s32.totalorder %s50, %s52
      %p59 = scmp.eq.s32.totalorder %s26, 1
      %p60 = por %p58, %p59
      %p61 = scmp.ne.s32.totalorder %s52, %s53
      %p62 = scmp.eq.s32.totalorder %s26, 0
      %p63 = por %p61, %p62
      %p64 = scmp.ne.s32.totalorder %s52, %s53
      %p65 = scmp.eq.s32.totalorder %s27, 1
      %p66 = por %p64, %p65
      %p68 = scmp.ne.s32.totalorder %s53, %s67
      %p69 = scmp.eq.s32.totalorder %s27, 0
      %p70 = por %p68, %p69
      %s71 = ssub.s32 %s21, %s28
      %p72 = scmp.eq.s32.totalorder %s71, 0
      %s74 = sadd.s32 %s73, 1
      %s75 = scalar_select %p72, %s73, %s74
      %p78 = pneg %p72
      %p79 = scmp.eq.s32.totalorder %s21, 1
      %p80 = por %p78, %p79
      %p81 = scmp.ne.s32.totalorder %s73, %s76
      %p82 = scmp.eq.s32.totalorder %s21, 0
      %p83 = por %p81, %p82
      %p84 = scmp.ne.s32.totalorder %s73, %s76
      %p85 = scmp.eq.s32.totalorder %s26, 1
      %p86 = por %p84, %p85
      %p87 = scmp.ne.s32.totalorder %s76, %s77
      %p88 = scmp.eq.s32.totalorder %s26, 0
      %p89 = por %p87, %p88
      %p90 = scmp.ne.s32.totalorder %s76, %s77
      %p91 = scmp.eq.s32.totalorder %s27, 1
      %p92 = por %p90, %p91
      %p94 = scmp.ne.s32.totalorder %s77, %s93
      %p95 = scmp.eq.s32.totalorder %s27, 0
      %p96 = por %p94, %p95
      %s97 = ssub.s32 %s21, %s28
      %p98 = scmp.eq.s32.totalorder %s97, 0
      %s100 = sadd.s32 %s99, 1
      %s101 = scalar_select %p98, %s99, %s100
      %p104 = pneg %p98
      %p105 = scmp.eq.s32.totalorder %s21, 1
      %p106 = por %p104, %p105
      %p107 = scmp.ne.s32.totalorder %s99, %s102
      %p108 = scmp.eq.s32.totalorder %s21, 0
      %p109 = por %p107, %p108
      %p110 = scmp.ne.s32.totalorder %s99, %s102
      %p111 = scmp.eq.s32.totalorder %s26, 1
      %p112 = por %p110, %p111
      %p113 = scmp.ne.s32.totalorder %s102, %s103
      %p114 = scmp.eq.s32.totalorder %s26, 0
      %p115 = por %p113, %p114
      %p116 = scmp.ne.s32.totalorder %s102, %s103
      %p117 = scmp.eq.s32.totalorder %s27, 1
      %p118 = por %p116, %p117
      %p120 = scmp.ne.s32.totalorder %s103, %s119
      %p121 = scmp.eq.s32.totalorder %s27, 0
      %p122 = por %p120, %p121
      %s123 = ssub.s32 %s21, %s28
      %p124 = scmp.eq.s32.totalorder %s123, 0
      %s126 = sadd.s32 %s125, 1
      %s127 = scalar_select %p124, %s125, %s126
      %p130 = pneg %p124
      %p131 = scmp.eq.s32.totalorder %s21, 1
      %p132 = por %p130, %p131
      %p133 = scmp.ne.s32.totalorder %s125, %s128
      %p134 = scmp.eq.s32.totalorder %s21, 0
      %p135 = por %p133, %p134
      %p136 = scmp.ne.s32.totalorder %s125, %s128
      %p137 = scmp.eq.s32.totalorder %s26, 1
      %p138 = por %p136, %p137
      %p139 = scmp.ne.s32.totalorder %s128, %s129
      %p140 = scmp.eq.s32.totalorder %s26, 0
      %p141 = por %p139, %p140
      %p142 = scmp.ne.s32.totalorder %s128, %s129
      %p143 = scmp.eq.s32.totalorder %s27, 1
      %p144 = por %p142, %p143
      %p146 = scmp.ne.s32.totalorder %s129, %s145
      %p147 = scmp.eq.s32.totalorder %s27, 0
      %p148 = por %p146, %p147
      %s149 = ssub.s32 %s21, %s28
      %p150 = scmp.eq.s32.totalorder %s149, 0
      %s152 = sadd.s32 %s151, 1
      %s153 = scalar_select %p150, %s151, %s152
      %p156 = pneg %p150
      %p157 = scmp.eq.s32.totalorder %s21, 1
      %p158 = por %p156, %p157
      %p159 = scmp.ne.s32.totalorder %s151, %s154
      %p160 = scmp.eq.s32.totalorder %s21, 0
      %p161 = por %p159, %p160
      %p162 = scmp.ne.s32.totalorder %s151, %s154
      %p163 = scmp.eq.s32.totalorder %s26, 1
      %p164 = por %p162, %p163
      %p165 = scmp.ne.s32.totalorder %s154, %s155
      %p166 = scmp.eq.s32.totalorder %s26, 0
      %p167 = por %p165, %p166
      %p168 = scmp.ne.s32.totalorder %s154, %s155
      %p169 = scmp.eq.s32.totalorder %s27, 1
      %p170 = por %p168, %p169
      %p172 = scmp.ne.s32.totalorder %s155, %s171
      %p173 = scmp.eq.s32.totalorder %s27, 0
      %p174 = por %p172, %p173
      %p175 = scmp.le.s32.totalorder 1, %s21
      %p176 = scmp.lt.s32.totalorder %s21, 3
      %p177 = pnand %p175, %p176
      %p178 = pneg %p177
      // Predicated region
      $region9: #{spider_forward.3} parent=5 // pred_check
        _
      $region10: #{spider_forward.3} parent=5 // pred_check_branch
        %180 = sbr.rel (%p177) target = $region12
      $region11: #{spider_forward.3} parent=5 // pred_region
        %s181 = ssub.s32 %s21, 1
        // Predicated region
        $region13: #{spider_forward.3} parent=11 // pred_check
          %p182 = pneg %p42
        $region14: #{spider_forward.3} parent=11 // pred_check_branch
          %184 = sbr.rel (%p182) target = $region16
        $region15: #{spider_forward.3} parent=11 // pred_region
          _
        $region16: #{spider_forward.3} parent=11 // pred_fallthru
          _
        // Predicated region
        $region17: #{spider_forward.3} parent=11 // pred_check
          %p185 = pneg %p63
        $region18: #{spider_forward.3} parent=11 // pred_check_branch
          %187 = sbr.rel (%p185) target = $region20
        $region19: #{spider_forward.3} parent=11 // pred_region
          _
        $region20: #{spider_forward.3} parent=11 // pred_fallthru
          _
      $region12: #{spider_forward.3} parent=5 // pred_fallthru
        _
      %p188 = scmp.lt.s32.totalorder %s21, 2
      // Predicated region
      $region21: #{spider_forward.3} parent=5 // pred_check
        %p189 = pneg %p188
      $region22: #{spider_forward.3} parent=5 // pred_check_branch
        %191 = sbr.rel (%p189) target = $region24
      $region23: #{spider_forward.3} parent=5 // pred_region
        // Predicated region
        $region25: #{spider_forward.3} parent=23 // pred_check
          %p192 = pneg %p83
        $region26: #{spider_forward.3} parent=23 // pred_check_branch
          %194 = sbr.rel (%p192) target = $region28
        $region27: #{spider_forward.3} parent=23 // pred_region
          %s195 = sand.u32 %s73, 1
          %s196 = scalar_lea.sflag [#allocation3], %s195
          %s197 = sand.u32 %s73, 1
          %s198 = smul.addr %s197, 2048
          %s199 = scalar_lea.vmem [#allocation2], %s198
          %s200 = smul.u32 64, %s21
          %202 = vsyncadd %s196, 0
          %s203 = smul.addr %s200, 4
          %s204 = smul.addr %s203, 8
          %s205 = scalar_lea.hbm %s2, %s204
          %s206 = sshll.u32 %s205, 4
          %s207 = int_to_ptr.hbm [resolvable:$true] %s206
          %s208 = sshll.u32 %s199, 4
          %s209 = int_to_ptr.vmem [resolvable:$true] %s208
          %214 = dma.hbm_to_vmem [thread:$0]  %s207, 32768, %s209, %s196, 512, 512, 32
        $region28: #{spider_forward.3} parent=23 // pred_fallthru
          _
        // Predicated region
        $region29: #{spider_forward.3} parent=23 // pred_check
          %p215 = pneg %p109
        $region30: #{spider_forward.3} parent=23 // pred_check_branch
          %217 = sbr.rel (%p215) target = $region32
        $region31: #{spider_forward.3} parent=23 // pred_region
          %s218 = smul.u32 64, %s21
          %p219 = scmp.lt.s32.totalorder %s218, 127
          %s220 = scalar_select %p219, %s218, 127
          %s221 = smul.addr %s220, 8
          %s222 = scalar_lea.vmem %s3, %s221
          %s223 = smul.u32 64, %s21
        $region32: #{spider_forward.3} parent=23 // pred_fallthru
          _
      $region24: #{spider_forward.3} parent=5 // pred_fallthru
        _
      %p224 = scmp.le.s32.totalorder 1, %s21
      %p225 = scmp.lt.s32.totalorder %s21, 3
      %p226 = pnand %p224, %p225
      %p227 = pneg %p226
      // Predicated region
      $region33: #{spider_forward.3} parent=5 // pred_check
        _
      $region34: #{spider_forward.3} parent=5 // pred_check_branch
        %229 = sbr.rel (%p226) target = $region36
      $region35: #{spider_forward.3} parent=5 // pred_region
        %s230 = ssub.s32 %s21, 1
        %s231 = sand.u32 %s76, 1
        %s232 = scalar_lea.sflag [#allocation3], %s231
        %s233 = sand.u32 %s76, 1
        %s234 = smul.addr %s233, 2048
        %s235 = scalar_lea.vmem [#allocation2], %s234
        // Predicated region
        $region37: #{spider_forward.3} parent=35 // pred_check
          %p236 = pneg %p89
        $region38: #{spider_forward.3} parent=35 // pred_check_branch
          %238 = sbr.rel (%p236) target = $region40
        $region39: #{spider_forward.3} parent=35 // pred_region
          %240 = dma.done %s232, 32768
        $region40: #{spider_forward.3} parent=35 // pred_fallthru
          _
        %p241 = pneg %p42
        %p242 = pneg %p39
        %p243 = pneg %p63
        %p244 = pneg %p60
        %s245 = sand.u32 %s76, 1
        %s246 = scalar_lea.sflag [#allocation3], %s245
        %s247 = sand.u32 %s76, 1
        %s248 = smul.addr %s247, 2048
        %s249 = scalar_lea.vmem [#allocation2], %s248
        %p250 = pneg %p89
        %p251 = pneg %p86
        %s252 = smul.u32 64, %s26
        %p253 = scmp.lt.s32.totalorder %s252, 127
        %s254 = scalar_select %p253, %s252, 127
        %s255 = smul.addr %s254, 8
        %s256 = scalar_lea.vmem %s3, %s255
        %p257 = pneg %p115
        %p258 = pneg %p112
        %p259 = pneg %p141
        %p260 = pneg %p138
        %s261 = sand.u32 %s128, 1
        %s262 = scalar_lea.sflag [#allocation4], %s261
        %s263 = sand.u32 %s128, 1
        %s264 = smul.addr %s263, 32
        %s265 = scalar_lea.vmem [#allocation5], %s264
        %p266 = pneg %p167
        %p267 = pneg %p164
        %s268 = sand.u32 %s154, 1
        %s269 = scalar_lea.sflag [#allocation7], %s268
        %s270 = sand.u32 %s154, 1
        %s271 = smul.addr %s270, 32
        %s272 = scalar_lea.vmem [#allocation6], %s271
        %s273 = smul.u32 64, %s26
        %s274 = smul.u32 64, %s26
        %p275 = scmp.lt.s32.totalorder %s274, 127
        %s276 = scalar_select %p275, %s274, 127
        %s277 = smul.addr %s276, 8
        %s278 = scalar_lea.vmem %s3, %s277
        %s279 = smul.u32 64, %s26
        %s280 = smul.u32 4, %s26
        %s281 = smul.u32 4, %s26
        %v282 = vld [vmem:[%s0] sm:$0xff]
        %v283 = vld [vmem:[%s0 + $0x8] sm:$0xff]
        %v284 = vld [vmem:[%s0 + $0x10] sm:$0xff]
        %v285 = vld [vmem:[%s0 + $0x18] sm:$0xff]
        %v286 = vld [vmem:[%s235] sm:$0xff]
        %v287 = vld [vmem:[%s235 + $0x8] sm:$0xff]
        %v288 = vld [vmem:[%s235 + $0x10] sm:$0xff]
        %v289 = vld [vmem:[%s235 + $0x18] sm:$0xff]
        %v290 = vld [vmem:[%s235 + $0x20] sm:$0xff]
        %v291 = vld [vmem:[%s235 + $0x28] sm:$0xff]
        %v292 = vld [vmem:[%s235 + $0x30] sm:$0xff]
        %v293 = vld [vmem:[%s235 + $0x38] sm:$0xff]
        %v294 = vld [vmem:[%s235 + $0x40] sm:$0xff]
        %v295 = vld [vmem:[%s235 + $0x48] sm:$0xff]
        %v296 = vld [vmem:[%s235 + $0x50] sm:$0xff]
        %v297 = vld [vmem:[%s235 + $0x58] sm:$0xff]
        %v298 = vld [vmem:[%s235 + $0x60] sm:$0xff]
        %v299 = vld [vmem:[%s235 + $0x68] sm:$0xff]
        %v300 = vld [vmem:[%s235 + $0x70] sm:$0xff]
        %v301 = vld [vmem:[%s235 + $0x78] sm:$0xff]
        %v302 = vld [vmem:[%s235 + $0x80] sm:$0xff]
        %v303 = vld [vmem:[%s235 + $0x88] sm:$0xff]
        %v304 = vld [vmem:[%s235 + $0x90] sm:$0xff]
        %v305 = vld [vmem:[%s235 + $0x98] sm:$0xff]
        %v306 = vld [vmem:[%s235 + $0xa0] sm:$0xff]
        %v307 = vld [vmem:[%s235 + $0xa8] sm:$0xff]
        %v308 = vld [vmem:[%s235 + $0xb0] sm:$0xff]
        %v309 = vld [vmem:[%s235 + $0xb8] sm:$0xff]
        %v310 = vld [vmem:[%s235 + $0xc0] sm:$0xff]
        %v311 = vld [vmem:[%s235 + $0xc8] sm:$0xff]
        %v312 = vld [vmem:[%s235 + $0xd0] sm:$0xff]
        %v313 = vld [vmem:[%s235 + $0xd8] sm:$0xff]
        %v314 = vld [vmem:[%s235 + $0xe0] sm:$0xff]
        %v315 = vld [vmem:[%s235 + $0xe8] sm:$0xff]
        %v316 = vld [vmem:[%s235 + $0xf0] sm:$0xff]
        %v317 = vld [vmem:[%s235 + $0xf8] sm:$0xff]
        %v318 = vld [vmem:[%s235 + $0x100] sm:$0xff]
        %v319 = vld [vmem:[%s235 + $0x108] sm:$0xff]
        %v320 = vld [vmem:[%s235 + $0x110] sm:$0xff]
        %v321 = vld [vmem:[%s235 + $0x118] sm:$0xff]
        %v322 = vld [vmem:[%s235 + $0x120] sm:$0xff]
        %v323 = vld [vmem:[%s235 + $0x128] sm:$0xff]
        %v324 = vld [vmem:[%s235 + $0x130] sm:$0xff]
        %v325 = vld [vmem:[%s235 + $0x138] sm:$0xff]
        %v326 = vld [vmem:[%s235 + $0x140] sm:$0xff]
        %v327 = vld [vmem:[%s235 + $0x148] sm:$0xff]
        %v328 = vld [vmem:[%s235 + $0x150] sm:$0xff]
        %v329 = vld [vmem:[%s235 + $0x158] sm:$0xff]
        %v330 = vld [vmem:[%s235 + $0x160] sm:$0xff]
        %v331 = vld [vmem:[%s235 + $0x168] sm:$0xff]
        %v332 = vld [vmem:[%s235 + $0x170] sm:$0xff]
        %v333 = vld [vmem:[%s235 + $0x178] sm:$0xff]
        %v334 = vld [vmem:[%s235 + $0x180] sm:$0xff]
        %v335 = vld [vmem:[%s235 + $0x188] sm:$0xff]
        %v336 = vld [vmem:[%s235 + $0x190] sm:$0xff]
        %v337 = vld [vmem:[%s235 + $0x198] sm:$0xff]
        %v338 = vld [vmem:[%s235 + $0x1a0] sm:$0xff]
        %v339 = vld [vmem:[%s235 + $0x1a8] sm:$0xff]
        %v340 = vld [vmem:[%s235 + $0x1b0] sm:$0xff]
        %v341 = vld [vmem:[%s235 + $0x1b8] sm:$0xff]
        %v342 = vld [vmem:[%s235 + $0x1c0] sm:$0xff]
        %v343 = vld [vmem:[%s235 + $0x1c8] sm:$0xff]
        %v344 = vld [vmem:[%s235 + $0x1d0] sm:$0xff]
        %v345 = vld [vmem:[%s235 + $0x1d8] sm:$0xff]
        %v346 = vld [vmem:[%s235 + $0x1e0] sm:$0xff]
        %v347 = vld [vmem:[%s235 + $0x1e8] sm:$0xff]
        %v348 = vld [vmem:[%s235 + $0x1f0] sm:$0xff]
        %v349 = vld [vmem:[%s235 + $0x1f8] sm:$0xff]
        %v350 = vld [vmem:[%s235 + $0x200] sm:$0xff]
        %v351 = vld [vmem:[%s235 + $0x208] sm:$0xff]
        %v352 = vld [vmem:[%s235 + $0x210] sm:$0xff]
        %v353 = vld [vmem:[%s235 + $0x218] sm:$0xff]
        %v354 = vld [vmem:[%s235 + $0x220] sm:$0xff]
        %v355 = vld [vmem:[%s235 + $0x228] sm:$0xff]
        %v356 = vld [vmem:[%s235 + $0x230] sm:$0xff]
        %v357 = vld [vmem:[%s235 + $0x238] sm:$0xff]
        %v358 = vld [vmem:[%s235 + $0x240] sm:$0xff]
        %v359 = vld [vmem:[%s235 + $0x248] sm:$0xff]
        %v360 = vld [vmem:[%s235 + $0x250] sm:$0xff]
        %v361 = vld [vmem:[%s235 + $0x258] sm:$0xff]
        %v362 = vld [vmem:[%s235 + $0x260] sm:$0xff]
        %v363 = vld [vmem:[%s235 + $0x268] sm:$0xff]
        %v364 = vld [vmem:[%s235 + $0x270] sm:$0xff]
        %v365 = vld [vmem:[%s235 + $0x278] sm:$0xff]
        %v366 = vld [vmem:[%s235 + $0x280] sm:$0xff]
        %v367 = vld [vmem:[%s235 + $0x288] sm:$0xff]
        %v368 = vld [vmem:[%s235 + $0x290] sm:$0xff]
        %v369 = vld [vmem:[%s235 + $0x298] sm:$0xff]
        %v370 = vld [vmem:[%s235 + $0x2a0] sm:$0xff]
        %v371 = vld [vmem:[%s235 + $0x2a8] sm:$0xff]
        %v372 = vld [vmem:[%s235 + $0x2b0] sm:$0xff]
        %v373 = vld [vmem:[%s235 + $0x2b8] sm:$0xff]
        %v374 = vld [vmem:[%s235 + $0x2c0] sm:$0xff]
        %v375 = vld [vmem:[%s235 + $0x2c8] sm:$0xff]
        %v376 = vld [vmem:[%s235 + $0x2d0] sm:$0xff]
        %v377 = vld [vmem:[%s235 + $0x2d8] sm:$0xff]
        %v378 = vld [vmem:[%s235 + $0x2e0] sm:$0xff]
        %v379 = vld [vmem:[%s235 + $0x2e8] sm:$0xff]
        %v380 = vld [vmem:[%s235 + $0x2f0] sm:$0xff]
        %v381 = vld [vmem:[%s235 + $0x2f8] sm:$0xff]
        %v382 = vld [vmem:[%s235 + $0x300] sm:$0xff]
        %v383 = vld [vmem:[%s235 + $0x308] sm:$0xff]
        %v384 = vld [vmem:[%s235 + $0x310] sm:$0xff]
        %v385 = vld [vmem:[%s235 + $0x318] sm:$0xff]
        %v386 = vld [vmem:[%s235 + $0x320] sm:$0xff]
        %v387 = vld [vmem:[%s235 + $0x328] sm:$0xff]
        %v388 = vld [vmem:[%s235 + $0x330] sm:$0xff]
        %v389 = vld [vmem:[%s235 + $0x338] sm:$0xff]
        %v390 = vld [vmem:[%s235 + $0x340] sm:$0xff]
        %v391 = vld [vmem:[%s235 + $0x348] sm:$0xff]
        %v392 = vld [vmem:[%s235 + $0x350] sm:$0xff]
        %v393 = vld [vmem:[%s235 + $0x358] sm:$0xff]
        %v394 = vld [vmem:[%s235 + $0x360] sm:$0xff]
        %v395 = vld [vmem:[%s235 + $0x368] sm:$0xff]
        %v396 = vld [vmem:[%s235 + $0x370] sm:$0xff]
        %v397 = vld [vmem:[%s235 + $0x378] sm:$0xff]
        %v398 = vld [vmem:[%s235 + $0x380] sm:$0xff]
        %v399 = vld [vmem:[%s235 + $0x388] sm:$0xff]
        %v400 = vld [vmem:[%s235 + $0x390] sm:$0xff]
        %v401 = vld [vmem:[%s235 + $0x398] sm:$0xff]
        %v402 = vld [vmem:[%s235 + $0x3a0] sm:$0xff]
        %v403 = vld [vmem:[%s235 + $0x3a8] sm:$0xff]
        %v404 = vld [vmem:[%s235 + $0x3b0] sm:$0xff]
        %v405 = vld [vmem:[%s235 + $0x3b8] sm:$0xff]
        %v406 = vld [vmem:[%s235 + $0x3c0] sm:$0xff]
        %v407 = vld [vmem:[%s235 + $0x3c8] sm:$0xff]
        %v408 = vld [vmem:[%s235 + $0x3d0] sm:$0xff]
        %v409 = vld [vmem:[%s235 + $0x3d8] sm:$0xff]
        %v410 = vld [vmem:[%s235 + $0x3e0] sm:$0xff]
        %v411 = vld [vmem:[%s235 + $0x3e8] sm:$0xff]
        %v412 = vld [vmem:[%s235 + $0x3f0] sm:$0xff]
        %v413 = vld [vmem:[%s235 + $0x3f8] sm:$0xff]
        %v414 = vld [vmem:[%s235 + $0x400] sm:$0xff]
        %v415 = vld [vmem:[%s235 + $0x408] sm:$0xff]
        %v416 = vld [vmem:[%s235 + $0x410] sm:$0xff]
        %v417 = vld [vmem:[%s235 + $0x418] sm:$0xff]
        %v418 = vld [vmem:[%s235 + $0x420] sm:$0xff]
        %v419 = vld [vmem:[%s235 + $0x428] sm:$0xff]
        %v420 = vld [vmem:[%s235 + $0x430] sm:$0xff]
        %v421 = vld [vmem:[%s235 + $0x438] sm:$0xff]
        %v422 = vld [vmem:[%s235 + $0x440] sm:$0xff]
        %v423 = vld [vmem:[%s235 + $0x448] sm:$0xff]
        %v424 = vld [vmem:[%s235 + $0x450] sm:$0xff]
        %v425 = vld [vmem:[%s235 + $0x458] sm:$0xff]
        %v426 = vld [vmem:[%s235 + $0x460] sm:$0xff]
        %v427 = vld [vmem:[%s235 + $0x468] sm:$0xff]
        %v428 = vld [vmem:[%s235 + $0x470] sm:$0xff]
        %v429 = vld [vmem:[%s235 + $0x478] sm:$0xff]
        %v430 = vld [vmem:[%s235 + $0x480] sm:$0xff]
        %v431 = vld [vmem:[%s235 + $0x488] sm:$0xff]
        %v432 = vld [vmem:[%s235 + $0x490] sm:$0xff]
        %v433 = vld [vmem:[%s235 + $0x498] sm:$0xff]
        %v434 = vld [vmem:[%s235 + $0x4a0] sm:$0xff]
        %v435 = vld [vmem:[%s235 + $0x4a8] sm:$0xff]
        %v436 = vld [vmem:[%s235 + $0x4b0] sm:$0xff]
        %v437 = vld [vmem:[%s235 + $0x4b8] sm:$0xff]
        %v438 = vld [vmem:[%s235 + $0x4c0] sm:$0xff]
        %v439 = vld [vmem:[%s235 + $0x4c8] sm:$0xff]
        %v440 = vld [vmem:[%s235 + $0x4d0] sm:$0xff]
        %v441 = vld [vmem:[%s235 + $0x4d8] sm:$0xff]
        %v442 = vld [vmem:[%s235 + $0x4e0] sm:$0xff]
        %v443 = vld [vmem:[%s235 + $0x4e8] sm:$0xff]
        %v444 = vld [vmem:[%s235 + $0x4f0] sm:$0xff]
        %v445 = vld [vmem:[%s235 + $0x4f8] sm:$0xff]
        %v446 = vld [vmem:[%s235 + $0x500] sm:$0xff]
        %v447 = vld [vmem:[%s235 + $0x508] sm:$0xff]
        %v448 = vld [vmem:[%s235 + $0x510] sm:$0xff]
        %v449 = vld [vmem:[%s235 + $0x518] sm:$0xff]
        %v450 = vld [vmem:[%s235 + $0x520] sm:$0xff]
        %v451 = vld [vmem:[%s235 + $0x528] sm:$0xff]
        %v452 = vld [vmem:[%s235 + $0x530] sm:$0xff]
        %v453 = vld [vmem:[%s235 + $0x538] sm:$0xff]
        %v454 = vld [vmem:[%s235 + $0x540] sm:$0xff]
        %v455 = vld [vmem:[%s235 + $0x548] sm:$0xff]
        %v456 = vld [vmem:[%s235 + $0x550] sm:$0xff]
        %v457 = vld [vmem:[%s235 + $0x558] sm:$0xff]
        %v458 = vld [vmem:[%s235 + $0x560] sm:$0xff]
        %v459 = vld [vmem:[%s235 + $0x568] sm:$0xff]
        %v460 = vld [vmem:[%s235 + $0x570] sm:$0xff]
        %v461 = vld [vmem:[%s235 + $0x578] sm:$0xff]
        %v462 = vld [vmem:[%s235 + $0x580] sm:$0xff]
        %v463 = vld [vmem:[%s235 + $0x588] sm:$0xff]
        %v464 = vld [vmem:[%s235 + $0x590] sm:$0xff]
        %v465 = vld [vmem:[%s235 + $0x598] sm:$0xff]
        %v466 = vld [vmem:[%s235 + $0x5a0] sm:$0xff]
        %v467 = vld [vmem:[%s235 + $0x5a8] sm:$0xff]
        %v468 = vld [vmem:[%s235 + $0x5b0] sm:$0xff]
        %v469 = vld [vmem:[%s235 + $0x5b8] sm:$0xff]
        %v470 = vld [vmem:[%s235 + $0x5c0] sm:$0xff]
        %v471 = vld [vmem:[%s235 + $0x5c8] sm:$0xff]
        %v472 = vld [vmem:[%s235 + $0x5d0] sm:$0xff]
        %v473 = vld [vmem:[%s235 + $0x5d8] sm:$0xff]
        %v474 = vld [vmem:[%s235 + $0x5e0] sm:$0xff]
        %v475 = vld [vmem:[%s235 + $0x5e8] sm:$0xff]
        %v476 = vld [vmem:[%s235 + $0x5f0] sm:$0xff]
        %v477 = vld [vmem:[%s235 + $0x5f8] sm:$0xff]
        %v478 = vld [vmem:[%s235 + $0x600] sm:$0xff]
        %v479 = vld [vmem:[%s235 + $0x608] sm:$0xff]
        %v480 = vld [vmem:[%s235 + $0x610] sm:$0xff]
        %v481 = vld [vmem:[%s235 + $0x618] sm:$0xff]
        %v482 = vld [vmem:[%s235 + $0x620] sm:$0xff]
        %v483 = vld [vmem:[%s235 + $0x628] sm:$0xff]
        %v484 = vld [vmem:[%s235 + $0x630] sm:$0xff]
        %v485 = vld [vmem:[%s235 + $0x638] sm:$0xff]
        %v486 = vld [vmem:[%s235 + $0x640] sm:$0xff]
        %v487 = vld [vmem:[%s235 + $0x648] sm:$0xff]
        %v488 = vld [vmem:[%s235 + $0x650] sm:$0xff]
        %v489 = vld [vmem:[%s235 + $0x658] sm:$0xff]
        %v490 = vld [vmem:[%s235 + $0x660] sm:$0xff]
        %v491 = vld [vmem:[%s235 + $0x668] sm:$0xff]
        %v492 = vld [vmem:[%s235 + $0x670] sm:$0xff]
        %v493 = vld [vmem:[%s235 + $0x678] sm:$0xff]
        %v494 = vld [vmem:[%s235 + $0x680] sm:$0xff]
        %v495 = vld [vmem:[%s235 + $0x688] sm:$0xff]
        %v496 = vld [vmem:[%s235 + $0x690] sm:$0xff]
        %v497 = vld [vmem:[%s235 + $0x698] sm:$0xff]
        %v498 = vld [vmem:[%s235 + $0x6a0] sm:$0xff]
        %v499 = vld [vmem:[%s235 + $0x6a8] sm:$0xff]
        %v500 = vld [vmem:[%s235 + $0x6b0] sm:$0xff]
        %v501 = vld [vmem:[%s235 + $0x6b8] sm:$0xff]
        %v502 = vld [vmem:[%s235 + $0x6c0] sm:$0xff]
        %v503 = vld [vmem:[%s235 + $0x6c8] sm:$0xff]
        %v504 = vld [vmem:[%s235 + $0x6d0] sm:$0xff]
        %v505 = vld [vmem:[%s235 + $0x6d8] sm:$0xff]
        %v506 = vld [vmem:[%s235 + $0x6e0] sm:$0xff]
        %v507 = vld [vmem:[%s235 + $0x6e8] sm:$0xff]
        %v508 = vld [vmem:[%s235 + $0x6f0] sm:$0xff]
        %v509 = vld [vmem:[%s235 + $0x6f8] sm:$0xff]
        %v510 = vld [vmem:[%s235 + $0x700] sm:$0xff]
        %v511 = vld [vmem:[%s235 + $0x708] sm:$0xff]
        %v512 = vld [vmem:[%s235 + $0x710] sm:$0xff]
        %v513 = vld [vmem:[%s235 + $0x718] sm:$0xff]
        %v514 = vld [vmem:[%s235 + $0x720] sm:$0xff]
        %v515 = vld [vmem:[%s235 + $0x728] sm:$0xff]
        %v516 = vld [vmem:[%s235 + $0x730] sm:$0xff]
        %v517 = vld [vmem:[%s235 + $0x738] sm:$0xff]
        %v518 = vld [vmem:[%s235 + $0x740] sm:$0xff]
        %v519 = vld [vmem:[%s235 + $0x748] sm:$0xff]
        %v520 = vld [vmem:[%s235 + $0x750] sm:$0xff]
        %v521 = vld [vmem:[%s235 + $0x758] sm:$0xff]
        %v522 = vld [vmem:[%s235 + $0x760] sm:$0xff]
        %v523 = vld [vmem:[%s235 + $0x768] sm:$0xff]
        %v524 = vld [vmem:[%s235 + $0x770] sm:$0xff]
        %v525 = vld [vmem:[%s235 + $0x778] sm:$0xff]
        %v526 = vld [vmem:[%s235 + $0x780] sm:$0xff]
        %v527 = vld [vmem:[%s235 + $0x788] sm:$0xff]
        %v528 = vld [vmem:[%s235 + $0x790] sm:$0xff]
        %v529 = vld [vmem:[%s235 + $0x798] sm:$0xff]
        %v530 = vld [vmem:[%s235 + $0x7a0] sm:$0xff]
        %v531 = vld [vmem:[%s235 + $0x7a8] sm:$0xff]
        %v532 = vld [vmem:[%s235 + $0x7b0] sm:$0xff]
        %v533 = vld [vmem:[%s235 + $0x7b8] sm:$0xff]
        %v534 = vld [vmem:[%s235 + $0x7c0] sm:$0xff]
        %v535 = vld [vmem:[%s235 + $0x7c8] sm:$0xff]
        %v536 = vld [vmem:[%s235 + $0x7d0] sm:$0xff]
        %v537 = vld [vmem:[%s235 + $0x7d8] sm:$0xff]
        %v538 = vld [vmem:[%s235 + $0x7e0] sm:$0xff]
        %v539 = vld [vmem:[%s235 + $0x7e8] sm:$0xff]
        %v540 = vld [vmem:[%s235 + $0x7f0] sm:$0xff]
        %v541 = vld [vmem:[%s235 + $0x7f8] sm:$0xff]
        %542 = vmatpush.xpose.msra.mxu0 %v346
        %543 = vmatpush.xpose.msra.mxu0 %v342
        %544 = vmatpush.xpose.msra.mxu0 %v338
        %545 = vmatpush.xpose.msra.mxu0 %v334
        %546 = vmatpush.xpose.msra.mxu0 %v330
        %547 = vmatpush.xpose.msra.mxu0 %v326
        %548 = vmatpush.xpose.msra.mxu0 %v322
        %549 = vmatpush.xpose.msra.mxu0 %v318
        %550 = vmatpush.xpose.msra.mxu0 %v314
        %551 = vmatpush.xpose.msra.mxu0 %v310
        %552 = vmatpush.xpose.msra.mxu0 %v306
        %553 = vmatpush.xpose.msra.mxu0 %v302
        %554 = vmatpush.xpose.msra.mxu0 %v298
        %555 = vmatpush.xpose.msra.mxu0 %v294
        %556 = vmatpush.xpose.msra.mxu0 %v290
        %557 = vmatpush.xpose.msra.mxu0 %v286
        %558 = vmatmul.f32.gmra.mxu0 %v282
        %v559 = vpop.f32.mrf.mxu0
        %v560 = vadd.f32 0.0, %v559
        %561 = vdwg.mxu0
        %562 = vmatpush.xpose.msra.mxu0 %v347
        %563 = vmatpush.xpose.msra.mxu0 %v343
        %564 = vmatpush.xpose.msra.mxu0 %v339
        %565 = vmatpush.xpose.msra.mxu0 %v335
        %566 = vmatpush.xpose.msra.mxu0 %v331
        %567 = vmatpush.xpose.msra.mxu0 %v327
        %568 = vmatpush.xpose.msra.mxu0 %v323
        %569 = vmatpush.xpose.msra.mxu0 %v319
        %570 = vmatpush.xpose.msra.mxu0 %v315
        %571 = vmatpush.xpose.msra.mxu0 %v311
        %572 = vmatpush.xpose.msra.mxu0 %v307
        %573 = vmatpush.xpose.msra.mxu0 %v303
        %574 = vmatpush.xpose.msra.mxu0 %v299
        %575 = vmatpush.xpose.msra.mxu0 %v295
        %576 = vmatpush.xpose.msra.mxu0 %v291
        %577 = vmatpush.xpose.msra.mxu0 %v287
        %578 = vmatmul.f32.gmra.mxu0 %v283
        %v579 = vpop.f32.mrf.mxu0
        %v580 = vadd.f32 %v560, %v579
        %581 = vdwg.mxu0
        %582 = vmatpush.xpose.msra.mxu0 %v348
        %583 = vmatpush.xpose.msra.mxu0 %v344
        %584 = vmatpush.xpose.msra.mxu0 %v340
        %585 = vmatpush.xpose.msra.mxu0 %v336
        %586 = vmatpush.xpose.msra.mxu0 %v332
        %587 = vmatpush.xpose.msra.mxu0 %v328
        %588 = vmatpush.xpose.msra.mxu0 %v324
        %589 = vmatpush.xpose.msra.mxu0 %v320
        %590 = vmatpush.xpose.msra.mxu0 %v316
        %591 = vmatpush.xpose.msra.mxu0 %v312
        %592 = vmatpush.xpose.msra.mxu0 %v308
        %593 = vmatpush.xpose.msra.mxu0 %v304
        %594 = vmatpush.xpose.msra.mxu0 %v300
        %595 = vmatpush.xpose.msra.mxu0 %v296
        %596 = vmatpush.xpose.msra.mxu0 %v292
        %597 = vmatpush.xpose.msra.mxu0 %v288
        %598 = vmatmul.f32.gmra.mxu0 %v284
        %v599 = vpop.f32.mrf.mxu0
        %v600 = vadd.f32 %v580, %v599
        %601 = vdwg.mxu0
        %602 = vmatpush.xpose.msra.mxu0 %v349
        %603 = vmatpush.xpose.msra.mxu0 %v345
        %604 = vmatpush.xpose.msra.mxu0 %v341
        %605 = vmatpush.xpose.msra.mxu0 %v337
        %606 = vmatpush.xpose.msra.mxu0 %v333
        %607 = vmatpush.xpose.msra.mxu0 %v329
        %608 = vmatpush.xpose.msra.mxu0 %v325
        %609 = vmatpush.xpose.msra.mxu0 %v321
        %610 = vmatpush.xpose.msra.mxu0 %v317
        %611 = vmatpush.xpose.msra.mxu0 %v313
        %612 = vmatpush.xpose.msra.mxu0 %v309
        %613 = vmatpush.xpose.msra.mxu0 %v305
        %614 = vmatpush.xpose.msra.mxu0 %v301
        %615 = vmatpush.xpose.msra.mxu0 %v297
        %616 = vmatpush.xpose.msra.mxu0 %v293
        %617 = vmatpush.xpose.msra.mxu0 %v289
        %618 = vmatmul.f32.gmra.mxu0 %v285
        %v619 = vpop.f32.mrf.mxu0
        %v620 = vadd.f32 %v600, %v619
        %621 = vdwg.mxu0
        %622 = vmatpush.xpose.msra.mxu0 %v410
        %623 = vmatpush.xpose.msra.mxu0 %v406
        %624 = vmatpush.xpose.msra.mxu0 %v402
        %625 = vmatpush.xpose.msra.mxu0 %v398
        %626 = vmatpush.xpose.msra.mxu0 %v394
        %627 = vmatpush.xpose.msra.mxu0 %v390
        %628 = vmatpush.xpose.msra.mxu0 %v386
        %629 = vmatpush.xpose.msra.mxu0 %v382
        %630 = vmatpush.xpose.msra.mxu0 %v378
        %631 = vmatpush.xpose.msra.mxu0 %v374
        %632 = vmatpush.xpose.msra.mxu0 %v370
        %633 = vmatpush.xpose.msra.mxu0 %v366
        %634 = vmatpush.xpose.msra.mxu0 %v362
        %635 = vmatpush.xpose.msra.mxu0 %v358
        %636 = vmatpush.xpose.msra.mxu0 %v354
        %637 = vmatpush.xpose.msra.mxu0 %v350
        %638 = vmatmul.f32.gmra.mxu0 %v282
        %v639 = vpop.f32.mrf.mxu0
        %v640 = vadd.f32 0.0, %v639
        %641 = vdwg.mxu0
        %642 = vmatpush.xpose.msra.mxu0 %v411
        %643 = vmatpush.xpose.msra.mxu0 %v407
        %644 = vmatpush.xpose.msra.mxu0 %v403
        %645 = vmatpush.xpose.msra.mxu0 %v399
        %646 = vmatpush.xpose.msra.mxu0 %v395
        %647 = vmatpush.xpose.msra.mxu0 %v391
        %648 = vmatpush.xpose.msra.mxu0 %v387
        %649 = vmatpush.xpose.msra.mxu0 %v383
        %650 = vmatpush.xpose.msra.mxu0 %v379
        %651 = vmatpush.xpose.msra.mxu0 %v375
        %652 = vmatpush.xpose.msra.mxu0 %v371
        %653 = vmatpush.xpose.msra.mxu0 %v367
        %654 = vmatpush.xpose.msra.mxu0 %v363
        %655 = vmatpush.xpose.msra.mxu0 %v359
        %656 = vmatpush.xpose.msra.mxu0 %v355
        %657 = vmatpush.xpose.msra.mxu0 %v351
        %658 = vmatmul.f32.gmra.mxu0 %v283
        %v659 = vpop.f32.mrf.mxu0
        %v660 = vadd.f32 %v640, %v659
        %661 = vdwg.mxu0
        %662 = vmatpush.xpose.msra.mxu0 %v412
        %663 = vmatpush.xpose.msra.mxu0 %v408
        %664 = vmatpush.xpose.msra.mxu0 %v404
        %665 = vmatpush.xpose.msra.mxu0 %v400
        %666 = vmatpush.xpose.msra.mxu0 %v396
        %667 = vmatpush.xpose.msra.mxu0 %v392
        %668 = vmatpush.xpose.msra.mxu0 %v388
        %669 = vmatpush.xpose.msra.mxu0 %v384
        %670 = vmatpush.xpose.msra.mxu0 %v380
        %671 = vmatpush.xpose.msra.mxu0 %v376
        %672 = vmatpush.xpose.msra.mxu0 %v372
        %673 = vmatpush.xpose.msra.mxu0 %v368
        %674 = vmatpush.xpose.msra.mxu0 %v364
        %675 = vmatpush.xpose.msra.mxu0 %v360
        %676 = vmatpush.xpose.msra.mxu0 %v356
        %677 = vmatpush.xpose.msra.mxu0 %v352
        %678 = vmatmul.f32.gmra.mxu0 %v284
        %v679 = vpop.f32.mrf.mxu0
        %v680 = vadd.f32 %v660, %v679
        %681 = vdwg.mxu0
        %682 = vmatpush.xpose.msra.mxu0 %v413
        %683 = vmatpush.xpose.msra.mxu0 %v409
        %684 = vmatpush.xpose.msra.mxu0 %v405
        %685 = vmatpush.xpose.msra.mxu0 %v401
        %686 = vmatpush.xpose.msra.mxu0 %v397
        %687 = vmatpush.xpose.msra.mxu0 %v393
        %688 = vmatpush.xpose.msra.mxu0 %v389
        %689 = vmatpush.xpose.msra.mxu0 %v385
        %690 = vmatpush.xpose.msra.mxu0 %v381
        %691 = vmatpush.xpose.msra.mxu0 %v377
        %692 = vmatpush.xpose.msra.mxu0 %v373
        %693 = vmatpush.xpose.msra.mxu0 %v369
        %694 = vmatpush.xpose.msra.mxu0 %v365
        %695 = vmatpush.xpose.msra.mxu0 %v361
        %696 = vmatpush.xpose.msra.mxu0 %v357
        %697 = vmatpush.xpose.msra.mxu0 %v353
        %698 = vmatmul.f32.gmra.mxu0 %v285
        %v699 = vpop.f32.mrf.mxu0
        %v700 = vadd.f32 %v680, %v699
        %701 = vdwg.mxu0
        %702 = vmatpush.xpose.msra.mxu0 %v474
        %703 = vmatpush.xpose.msra.mxu0 %v470
        %704 = vmatpush.xpose.msra.mxu0 %v466
        %705 = vmatpush.xpose.msra.mxu0 %v462
        %706 = vmatpush.xpose.msra.mxu0 %v458
        %707 = vmatpush.xpose.msra.mxu0 %v454
        %708 = vmatpush.xpose.msra.mxu0 %v450
        %709 = vmatpush.xpose.msra.mxu0 %v446
        %710 = vmatpush.xpose.msra.mxu0 %v442
        %711 = vmatpush.xpose.msra.mxu0 %v438
        %712 = vmatpush.xpose.msra.mxu0 %v434
        %713 = vmatpush.xpose.msra.mxu0 %v430
        %714 = vmatpush.xpose.msra.mxu0 %v426
        %715 = vmatpush.xpose.msra.mxu0 %v422
        %716 = vmatpush.xpose.msra.mxu0 %v418
        %717 = vmatpush.xpose.msra.mxu0 %v414
        %718 = vmatmul.f32.gmra.mxu0 %v282
        %v719 = vpop.f32.mrf.mxu0
        %v720 = vadd.f32 0.0, %v719
        %721 = vdwg.mxu0
        %722 = vmatpush.xpose.msra.mxu0 %v475
        %723 = vmatpush.xpose.msra.mxu0 %v471
        %724 = vmatpush.xpose.msra.mxu0 %v467
        %725 = vmatpush.xpose.msra.mxu0 %v463
        %726 = vmatpush.xpose.msra.mxu0 %v459
        %727 = vmatpush.xpose.msra.mxu0 %v455
        %728 = vmatpush.xpose.msra.mxu0 %v451
        %729 = vmatpush.xpose.msra.mxu0 %v447
        %730 = vmatpush.xpose.msra.mxu0 %v443
        %731 = vmatpush.xpose.msra.mxu0 %v439
        %732 = vmatpush.xpose.msra.mxu0 %v435
        %733 = vmatpush.xpose.msra.mxu0 %v431
        %734 = vmatpush.xpose.msra.mxu0 %v427
        %735 = vmatpush.xpose.msra.mxu0 %v423
        %736 = vmatpush.xpose.msra.mxu0 %v419
        %737 = vmatpush.xpose.msra.mxu0 %v415
        %738 = vmatmul.f32.gmra.mxu0 %v283
        %v739 = vpop.f32.mrf.mxu0
        %v740 = vadd.f32 %v720, %v739
        %741 = vdwg.mxu0
        %742 = vmatpush.xpose.msra.mxu0 %v476
        %743 = vmatpush.xpose.msra.mxu0 %v472
        %744 = vmatpush.xpose.msra.mxu0 %v468
        %745 = vmatpush.xpose.msra.mxu0 %v464
        %746 = vmatpush.xpose.msra.mxu0 %v460
        %747 = vmatpush.xpose.msra.mxu0 %v456
        %748 = vmatpush.xpose.msra.mxu0 %v452
        %749 = vmatpush.xpose.msra.mxu0 %v448
        %750 = vmatpush.xpose.msra.mxu0 %v444
        %751 = vmatpush.xpose.msra.mxu0 %v440
        %752 = vmatpush.xpose.msra.mxu0 %v436
        %753 = vmatpush.xpose.msra.mxu0 %v432
        %754 = vmatpush.xpose.msra.mxu0 %v428
        %755 = vmatpush.xpose.msra.mxu0 %v424
        %756 = vmatpush.xpose.msra.mxu0 %v420
        %757 = vmatpush.xpose.msra.mxu0 %v416
        %758 = vmatmul.f32.gmra.mxu0 %v284
        %v759 = vpop.f32.mrf.mxu0
        %v760 = vadd.f32 %v740, %v759
        %761 = vdwg.mxu0
        %762 = vmatpush.xpose.msra.mxu0 %v477
        %763 = vmatpush.xpose.msra.mxu0 %v473
        %764 = vmatpush.xpose.msra.mxu0 %v469
        %765 = vmatpush.xpose.msra.mxu0 %v465
        %766 = vmatpush.xpose.msra.mxu0 %v461
        %767 = vmatpush.xpose.msra.mxu0 %v457
        %768 = vmatpush.xpose.msra.mxu0 %v453
        %769 = vmatpush.xpose.msra.mxu0 %v449
        %770 = vmatpush.xpose.msra.mxu0 %v445
        %771 = vmatpush.xpose.msra.mxu0 %v441
        %772 = vmatpush.xpose.msra.mxu0 %v437
        %773 = vmatpush.xpose.msra.mxu0 %v433
        %774 = vmatpush.xpose.msra.mxu0 %v429
        %775 = vmatpush.xpose.msra.mxu0 %v425
        %776 = vmatpush.xpose.msra.mxu0 %v421
        %777 = vmatpush.xpose.msra.mxu0 %v417
        %778 = vmatmul.f32.gmra.mxu0 %v285
        %v779 = vpop.f32.mrf.mxu0
        %v780 = vadd.f32 %v760, %v779
        %781 = vdwg.mxu0
        %782 = vmatpush.xpose.msra.mxu0 %v538
        %783 = vmatpush.xpose.msra.mxu0 %v534
        %784 = vmatpush.xpose.msra.mxu0 %v530
        %785 = vmatpush.xpose.msra.mxu0 %v526
        %786 = vmatpush.xpose.msra.mxu0 %v522
        %787 = vmatpush.xpose.msra.mxu0 %v518
        %788 = vmatpush.xpose.msra.mxu0 %v514
        %789 = vmatpush.xpose.msra.mxu0 %v510
        %790 = vmatpush.xpose.msra.mxu0 %v506
        %791 = vmatpush.xpose.msra.mxu0 %v502
        %792 = vmatpush.xpose.msra.mxu0 %v498
        %793 = vmatpush.xpose.msra.mxu0 %v494
        %794 = vmatpush.xpose.msra.mxu0 %v490
        %795 = vmatpush.xpose.msra.mxu0 %v486
        %796 = vmatpush.xpose.msra.mxu0 %v482
        %797 = vmatpush.xpose.msra.mxu0 %v478
        %798 = vmatmul.f32.gmra.mxu0 %v282
        %v799 = vpop.f32.mrf.mxu0
        %v800 = vadd.f32 0.0, %v799
        %801 = vdwg.mxu0
        %802 = vmatpush.xpose.msra.mxu0 %v539
        %803 = vmatpush.xpose.msra.mxu0 %v535
        %804 = vmatpush.xpose.msra.mxu0 %v531
        %805 = vmatpush.xpose.msra.mxu0 %v527
        %806 = vmatpush.xpose.msra.mxu0 %v523
        %807 = vmatpush.xpose.msra.mxu0 %v519
        %808 = vmatpush.xpose.msra.mxu0 %v515
        %809 = vmatpush.xpose.msra.mxu0 %v511
        %810 = vmatpush.xpose.msra.mxu0 %v507
        %811 = vmatpush.xpose.msra.mxu0 %v503
        %812 = vmatpush.xpose.msra.mxu0 %v499
        %813 = vmatpush.xpose.msra.mxu0 %v495
        %814 = vmatpush.xpose.msra.mxu0 %v491
        %815 = vmatpush.xpose.msra.mxu0 %v487
        %816 = vmatpush.xpose.msra.mxu0 %v483
        %817 = vmatpush.xpose.msra.mxu0 %v479
        %818 = vmatmul.f32.gmra.mxu0 %v283
        %v819 = vpop.f32.mrf.mxu0
        %v820 = vadd.f32 %v800, %v819
        %821 = vdwg.mxu0
        %822 = vmatpush.xpose.msra.mxu0 %v540
        %823 = vmatpush.xpose.msra.mxu0 %v536
        %824 = vmatpush.xpose.msra.mxu0 %v532
        %825 = vmatpush.xpose.msra.mxu0 %v528
        %826 = vmatpush.xpose.msra.mxu0 %v524
        %827 = vmatpush.xpose.msra.mxu0 %v520
        %828 = vmatpush.xpose.msra.mxu0 %v516
        %829 = vmatpush.xpose.msra.mxu0 %v512
        %830 = vmatpush.xpose.msra.mxu0 %v508
        %831 = vmatpush.xpose.msra.mxu0 %v504
        %832 = vmatpush.xpose.msra.mxu0 %v500
        %833 = vmatpush.xpose.msra.mxu0 %v496
        %834 = vmatpush.xpose.msra.mxu0 %v492
        %835 = vmatpush.xpose.msra.mxu0 %v488
        %836 = vmatpush.xpose.msra.mxu0 %v484
        %837 = vmatpush.xpose.msra.mxu0 %v480
        %838 = vmatmul.f32.gmra.mxu0 %v284
        %v839 = vpop.f32.mrf.mxu0
        %v840 = vadd.f32 %v820, %v839
        %841 = vdwg.mxu0
        %842 = vmatpush.xpose.msra.mxu0 %v541
        %843 = vmatpush.xpose.msra.mxu0 %v537
        %844 = vmatpush.xpose.msra.mxu0 %v533
        %845 = vmatpush.xpose.msra.mxu0 %v529
        %846 = vmatpush.xpose.msra.mxu0 %v525
        %847 = vmatpush.xpose.msra.mxu0 %v521
        %848 = vmatpush.xpose.msra.mxu0 %v517
        %849 = vmatpush.xpose.msra.mxu0 %v513
        %850 = vmatpush.xpose.msra.mxu0 %v509
        %851 = vmatpush.xpose.msra.mxu0 %v505
        %852 = vmatpush.xpose.msra.mxu0 %v501
        %853 = vmatpush.xpose.msra.mxu0 %v497
        %854 = vmatpush.xpose.msra.mxu0 %v493
        %855 = vmatpush.xpose.msra.mxu0 %v489
        %856 = vmatpush.xpose.msra.mxu0 %v485
        %857 = vmatpush.xpose.msra.mxu0 %v481
        %858 = vmatmul.f32.gmra.mxu0 %v285
        %v859 = vpop.f32.mrf.mxu0
        %v860 = vadd.f32 %v840, %v859
        %861 = vdwg.mxu0
        %862 = vst [vmem:[%s265] sm:$0xff] %v620
        %863 = vst [vmem:[%s265 + $0x8] sm:$0xff] %v700
        %864 = vst [vmem:[%s265 + $0x10] sm:$0xff] %v780
        %865 = vst [vmem:[%s265 + $0x18] sm:$0xff] %v860
        %v866 = vld [vmem:[%s1] sm:$0xff]
        %v867 = vld [vmem:[%s278] sm:$0xff]
        %v868 = vld [vmem:[%s278 + $0x8] sm:$0xff]
        %v869 = vld [vmem:[%s278 + $0x10] sm:$0xff]
        %v870 = vld [vmem:[%s278 + $0x18] sm:$0xff]
        %v871 = vld [vmem:[%s278 + $0x20] sm:$0xff]
        %v872 = vld [vmem:[%s278 + $0x28] sm:$0xff]
        %v873 = vld [vmem:[%s278 + $0x30] sm:$0xff]
        %v874 = vld [vmem:[%s278 + $0x38] sm:$0xff]
        %v875 = vld [vmem:[%s278 + $0x40] sm:$0xff]
        %v876 = vld [vmem:[%s278 + $0x48] sm:$0xff]
        %v877 = vld [vmem:[%s278 + $0x50] sm:$0xff]
        %v878 = vld [vmem:[%s278 + $0x58] sm:$0xff]
        %v879 = vld [vmem:[%s278 + $0x60] sm:$0xff]
        %v880 = vld [vmem:[%s278 + $0x68] sm:$0xff]
        %v881 = vld [vmem:[%s278 + $0x70] sm:$0xff]
        %v882 = vld [vmem:[%s278 + $0x78] sm:$0xff]
        %v883 = vld [vmem:[%s278 + $0x80] sm:$0xff]
        %v884 = vld [vmem:[%s278 + $0x88] sm:$0xff]
        %v885 = vld [vmem:[%s278 + $0x90] sm:$0xff]
        %v886 = vld [vmem:[%s278 + $0x98] sm:$0xff]
        %v887 = vld [vmem:[%s278 + $0xa0] sm:$0xff]
        %v888 = vld [vmem:[%s278 + $0xa8] sm:$0xff]
        %v889 = vld [vmem:[%s278 + $0xb0] sm:$0xff]
        %v890 = vld [vmem:[%s278 + $0xb8] sm:$0xff]
        %v891 = vld [vmem:[%s278 + $0xc0] sm:$0xff]
        %v892 = vld [vmem:[%s278 + $0xc8] sm:$0xff]
        %v893 = vld [vmem:[%s278 + $0xd0] sm:$0xff]
        %v894 = vld [vmem:[%s278 + $0xd8] sm:$0xff]
        %v895 = vld [vmem:[%s278 + $0xe0] sm:$0xff]
        %v896 = vld [vmem:[%s278 + $0xe8] sm:$0xff]
        %v897 = vld [vmem:[%s278 + $0xf0] sm:$0xff]
        %v898 = vld [vmem:[%s278 + $0xf8] sm:$0xff]
        %v899 = vld [vmem:[%s278 + $0x100] sm:$0xff]
        %v900 = vld [vmem:[%s278 + $0x108] sm:$0xff]
        %v901 = vld [vmem:[%s278 + $0x110] sm:$0xff]
        %v902 = vld [vmem:[%s278 + $0x118] sm:$0xff]
        %v903 = vld [vmem:[%s278 + $0x120] sm:$0xff]
        %v904 = vld [vmem:[%s278 + $0x128] sm:$0xff]
        %v905 = vld [vmem:[%s278 + $0x130] sm:$0xff]
        %v906 = vld [vmem:[%s278 + $0x138] sm:$0xff]
        %v907 = vld [vmem:[%s278 + $0x140] sm:$0xff]
        %v908 = vld [vmem:[%s278 + $0x148] sm:$0xff]
        %v909 = vld [vmem:[%s278 + $0x150] sm:$0xff]
        %v910 = vld [vmem:[%s278 + $0x158] sm:$0xff]
        %v911 = vld [vmem:[%s278 + $0x160] sm:$0xff]
        %v912 = vld [vmem:[%s278 + $0x168] sm:$0xff]
        %v913 = vld [vmem:[%s278 + $0x170] sm:$0xff]
        %v914 = vld [vmem:[%s278 + $0x178] sm:$0xff]
        %v915 = vld [vmem:[%s278 + $0x180] sm:$0xff]
        %v916 = vld [vmem:[%s278 + $0x188] sm:$0xff]
        %v917 = vld [vmem:[%s278 + $0x190] sm:$0xff]
        %v918 = vld [vmem:[%s278 + $0x198] sm:$0xff]
        %v919 = vld [vmem:[%s278 + $0x1a0] sm:$0xff]
        %v920 = vld [vmem:[%s278 + $0x1a8] sm:$0xff]
        %v921 = vld [vmem:[%s278 + $0x1b0] sm:$0xff]
        %v922 = vld [vmem:[%s278 + $0x1b8] sm:$0xff]
        %v923 = vld [vmem:[%s278 + $0x1c0] sm:$0xff]
        %v924 = vld [vmem:[%s278 + $0x1c8] sm:$0xff]
        %v925 = vld [vmem:[%s278 + $0x1d0] sm:$0xff]
        %v926 = vld [vmem:[%s278 + $0x1d8] sm:$0xff]
        %v927 = vld [vmem:[%s278 + $0x1e0] sm:$0xff]
        %v928 = vld [vmem:[%s278 + $0x1e8] sm:$0xff]
        %v929 = vld [vmem:[%s278 + $0x1f0] sm:$0xff]
        %v930 = vld [vmem:[%s278 + $0x1f8] sm:$0xff]
        %vm931 = vcmask 195584
        %v933 = vsel %vm931, %v866, 0
        %v936 = vsel %vm931, %v867, 0
        %v939 = vsel %vm931, %v868, 0
        %v942 = vsel %vm931, %v869, 0
        %v945 = vsel %vm931, %v870, 0
        %v948 = vsel %vm931, %v871, 0
        %v951 = vsel %vm931, %v872, 0
        %v954 = vsel %vm931, %v873, 0
        %v957 = vsel %vm931, %v874, 0
        %v960 = vsel %vm931, %v875, 0
        %v963 = vsel %vm931, %v876, 0
        %v966 = vsel %vm931, %v877, 0
        %v969 = vsel %vm931, %v878, 0
        %v972 = vsel %vm931, %v879, 0
        %v975 = vsel %vm931, %v880, 0
        %v978 = vsel %vm931, %v881, 0
        %v981 = vsel %vm931, %v882, 0
        %v984 = vsel %vm931, %v883, 0
        %v987 = vsel %vm931, %v884, 0
        %v990 = vsel %vm931, %v885, 0
        %v993 = vsel %vm931, %v886, 0
        %v996 = vsel %vm931, %v887, 0
        %v999 = vsel %vm931, %v888, 0
        %v1002 = vsel %vm931, %v889, 0
        %v1005 = vsel %vm931, %v890, 0
        %v1008 = vsel %vm931, %v891, 0
        %v1011 = vsel %vm931, %v892, 0
        %v1014 = vsel %vm931, %v893, 0
        %v1017 = vsel %vm931, %v894, 0
        %v1020 = vsel %vm931, %v895, 0
        %v1023 = vsel %vm931, %v896, 0
        %v1026 = vsel %vm931, %v897, 0
        %v1029 = vsel %vm931, %v898, 0
        %v1032 = vsel %vm931, %v899, 0
        %v1035 = vsel %vm931, %v900, 0
        %v1038 = vsel %vm931, %v901, 0
        %v1041 = vsel %vm931, %v902, 0
        %v1044 = vsel %vm931, %v903, 0
        %v1047 = vsel %vm931, %v904, 0
        %v1050 = vsel %vm931, %v905, 0
        %v1053 = vsel %vm931, %v906, 0
        %v1056 = vsel %vm931, %v907, 0
        %v1059 = vsel %vm931, %v908, 0
        %v1062 = vsel %vm931, %v909, 0
        %v1065 = vsel %vm931, %v910, 0
        %v1068 = vsel %vm931, %v911, 0
        %v1071 = vsel %vm931, %v912, 0
        %v1074 = vsel %vm931, %v913, 0
        %v1077 = vsel %vm931, %v914, 0
        %v1080 = vsel %vm931, %v915, 0
        %v1083 = vsel %vm931, %v916, 0
        %v1086 = vsel %vm931, %v917, 0
        %v1089 = vsel %vm931, %v918, 0
        %v1092 = vsel %vm931, %v919, 0
        %v1095 = vsel %vm931, %v920, 0
        %v1098 = vsel %vm931, %v921, 0
        %v1101 = vsel %vm931, %v922, 0
        %v1104 = vsel %vm931, %v923, 0
        %v1107 = vsel %vm931, %v924, 0
        %v1110 = vsel %vm931, %v925, 0
        %v1113 = vsel %vm931, %v926, 0
        %v1116 = vsel %vm931, %v927, 0
        %v1119 = vsel %vm931, %v928, 0
        %v1122 = vsel %vm931, %v929, 0
        %v1125 = vsel %vm931, %v930, 0
        %1127 = vmatpush.xpose.msra.mxu0 %v981
        %1128 = vmatpush.xpose.msra.mxu0 %v978
        %1129 = vmatpush.xpose.msra.mxu0 %v975
        %1130 = vmatpush.xpose.msra.mxu0 %v972
        %1131 = vmatpush.xpose.msra.mxu0 %v969
        %1132 = vmatpush.xpose.msra.mxu0 %v966
        %1133 = vmatpush.xpose.msra.mxu0 %v963
        %1134 = vmatpush.xpose.msra.mxu0 %v960
        %1135 = vmatpush.xpose.msra.mxu0 %v957
        %1136 = vmatpush.xpose.msra.mxu0 %v954
        %1137 = vmatpush.xpose.msra.mxu0 %v951
        %1138 = vmatpush.xpose.msra.mxu0 %v948
        %1139 = vmatpush.xpose.msra.mxu0 %v945
        %1140 = vmatpush.xpose.msra.mxu0 %v942
        %1141 = vmatpush.xpose.msra.mxu0 %v939
        %1142 = vmatpush.xpose.msra.mxu0 %v936
        %1143 = vmatmul.f32.gmra.mxu0 %v933
        %v1144 = vpop.f32.mrf.mxu0
        %v1145 = vadd.f32 0.0, %v1144
        %1146 = vdwg.mxu0
        %1147 = vmatpush.xpose.msra.mxu0 %v1029
        %1148 = vmatpush.xpose.msra.mxu0 %v1026
        %1149 = vmatpush.xpose.msra.mxu0 %v1023
        %1150 = vmatpush.xpose.msra.mxu0 %v1020
        %1151 = vmatpush.xpose.msra.mxu0 %v1017
        %1152 = vmatpush.xpose.msra.mxu0 %v1014
        %1153 = vmatpush.xpose.msra.mxu0 %v1011
        %1154 = vmatpush.xpose.msra.mxu0 %v1008
        %1155 = vmatpush.xpose.msra.mxu0 %v1005
        %1156 = vmatpush.xpose.msra.mxu0 %v1002
        %1157 = vmatpush.xpose.msra.mxu0 %v999
        %1158 = vmatpush.xpose.msra.mxu0 %v996
        %1159 = vmatpush.xpose.msra.mxu0 %v993
        %1160 = vmatpush.xpose.msra.mxu0 %v990
        %1161 = vmatpush.xpose.msra.mxu0 %v987
        %1162 = vmatpush.xpose.msra.mxu0 %v984
        %1163 = vmatmul.f32.gmra.mxu0 %v933
        %v1164 = vpop.f32.mrf.mxu0
        %v1165 = vadd.f32 0.0, %v1164
        %1166 = vdwg.mxu0
        %1167 = vmatpush.xpose.msra.mxu0 %v1077
        %1168 = vmatpush.xpose.msra.mxu0 %v1074
        %1169 = vmatpush.xpose.msra.mxu0 %v1071
        %1170 = vmatpush.xpose.msra.mxu0 %v1068
        %1171 = vmatpush.xpose.msra.mxu0 %v1065
        %1172 = vmatpush.xpose.msra.mxu0 %v1062
        %1173 = vmatpush.xpose.msra.mxu0 %v1059
        %1174 = vmatpush.xpose.msra.mxu0 %v1056
        %1175 = vmatpush.xpose.msra.mxu0 %v1053
        %1176 = vmatpush.xpose.msra.mxu0 %v1050
        %1177 = vmatpush.xpose.msra.mxu0 %v1047
        %1178 = vmatpush.xpose.msra.mxu0 %v1044
        %1179 = vmatpush.xpose.msra.mxu0 %v1041
        %1180 = vmatpush.xpose.msra.mxu0 %v1038
        %1181 = vmatpush.xpose.msra.mxu0 %v1035
        %1182 = vmatpush.xpose.msra.mxu0 %v1032
        %1183 = vmatmul.f32.gmra.mxu0 %v933
        %v1184 = vpop.f32.mrf.mxu0
        %v1185 = vadd.f32 0.0, %v1184
        %1186 = vdwg.mxu0
        %1187 = vmatpush.xpose.msra.mxu0 %v1125
        %1188 = vmatpush.xpose.msra.mxu0 %v1122
        %1189 = vmatpush.xpose.msra.mxu0 %v1119
        %1190 = vmatpush.xpose.msra.mxu0 %v1116
        %1191 = vmatpush.xpose.msra.mxu0 %v1113
        %1192 = vmatpush.xpose.msra.mxu0 %v1110
        %1193 = vmatpush.xpose.msra.mxu0 %v1107
        %1194 = vmatpush.xpose.msra.mxu0 %v1104
        %1195 = vmatpush.xpose.msra.mxu0 %v1101
        %1196 = vmatpush.xpose.msra.mxu0 %v1098
        %1197 = vmatpush.xpose.msra.mxu0 %v1095
        %1198 = vmatpush.xpose.msra.mxu0 %v1092
        %1199 = vmatpush.xpose.msra.mxu0 %v1089
        %1200 = vmatpush.xpose.msra.mxu0 %v1086
        %1201 = vmatpush.xpose.msra.mxu0 %v1083
        %1202 = vmatpush.xpose.msra.mxu0 %v1080
        %1203 = vmatmul.f32.gmra.mxu0 %v933
        %v1204 = vpop.f32.mrf.mxu0
        %v1205 = vadd.f32 0.0, %v1204
        %1206 = vdwg.mxu0
        %1207 = vst [vmem:[%s272] sm:$0xff] %v1145
        %1208 = vst [vmem:[%s272 + $0x8] sm:$0xff] %v1165
        %1209 = vst [vmem:[%s272 + $0x10] sm:$0xff] %v1185
        %1210 = vst [vmem:[%s272 + $0x18] sm:$0xff] %v1205
        %s1211 = sand.u32 %s128, 1
        %s1212 = scalar_lea.sflag [#allocation4], %s1211
        %s1213 = sand.u32 %s128, 1
        %s1214 = smul.addr %s1213, 32
        %s1215 = scalar_lea.vmem [#allocation5], %s1214
        %s1216 = sand.u32 %s154, 1
        %s1217 = scalar_lea.sflag [#allocation7], %s1216
        %s1218 = sand.u32 %s154, 1
        %s1219 = smul.addr %s1218, 32
        %s1220 = scalar_lea.vmem [#allocation6], %s1219
        // Predicated region
        $region41: #{spider_forward.3} parent=35 // pred_check
          %p1221 = pneg %p138
        $region42: #{spider_forward.3} parent=35 // pred_check_branch
          %1223 = sbr.rel (%p1221) target = $region44
        $region43: #{spider_forward.3} parent=35 // pred_region
          %s1224 = smul.u32 4, %s26
          %1226 = vsyncadd %s1212, 0
          %s1227 = smul.addr %s1224, 8
          %s1228 = scalar_lea.hbm %s4, %s1227
          %s1230 = sshll.u32 %s1215, 4
          %s1231 = int_to_ptr.vmem [resolvable:$true] %s1230
          %s1232 = sshll.u32 %s1228, 4
          %s1233 = int_to_ptr.hbm [resolvable:$true] %s1232
          %1235 = dma.vmem_to_hbm [thread:$0]  %s1231, 512, %s1233, %s1212
        $region44: #{spider_forward.3} parent=35 // pred_fallthru
          _
        // Predicated region
        $region45: #{spider_forward.3} parent=35 // pred_check
          %p1236 = pneg %p164
        $region46: #{spider_forward.3} parent=35 // pred_check_branch
          %1238 = sbr.rel (%p1236) target = $region48
        $region47: #{spider_forward.3} parent=35 // pred_region
          %s1239 = smul.u32 4, %s26
          %1241 = vsyncadd %s1217, 0
          %s1242 = smul.addr %s1239, 8
          %s1243 = scalar_lea.hbm %s5, %s1242
          %s1245 = sshll.u32 %s1220, 4
          %s1246 = int_to_ptr.vmem [resolvable:$true] %s1245
          %s1247 = sshll.u32 %s1243, 4
          %s1248 = int_to_ptr.hbm [resolvable:$true] %s1247
          %1250 = dma.vmem_to_hbm [thread:$0]  %s1246, 512, %s1248, %s1217
        $region48: #{spider_forward.3} parent=35 // pred_fallthru
          _
      $region36: #{spider_forward.3} parent=5 // pred_fallthru
        _
      %p1251 = scmp.le.s32.totalorder 2, %s21
      // Predicated region
      $region49: #{spider_forward.3} parent=5 // pred_check
        %p1252 = pneg %p1251
      $region50: #{spider_forward.3} parent=5 // pred_check_branch
        %1254 = sbr.rel (%p1252) target = $region52
      $region51: #{spider_forward.3} parent=5 // pred_region
        %s1255 = ssub.s32 %s21, 2
        // Predicated region
        $region53: #{spider_forward.3} parent=51 // pred_check
          %p1256 = pneg %p144
        $region54: #{spider_forward.3} parent=51 // pred_check_branch
          %1258 = sbr.rel (%p1256) target = $region56
        $region55: #{spider_forward.3} parent=51 // pred_region
          %s1259 = sand.u32 %s129, 1
          %s1260 = scalar_lea.sflag [#allocation4], %s1259
          %s1261 = sand.u32 %s129, 1
          %s1262 = smul.addr %s1261, 32
          %s1263 = scalar_lea.vmem [#allocation5], %s1262
          %1265 = dma.done %s1260, 512
        $region56: #{spider_forward.3} parent=51 // pred_fallthru
          _
        // Predicated region
        $region57: #{spider_forward.3} parent=51 // pred_check
          %p1266 = pneg %p170
        $region58: #{spider_forward.3} parent=51 // pred_check_branch
          %1268 = sbr.rel (%p1266) target = $region60
        $region59: #{spider_forward.3} parent=51 // pred_region
          %s1269 = sand.u32 %s155, 1
          %s1270 = scalar_lea.sflag [#allocation7], %s1269
          %s1271 = sand.u32 %s155, 1
          %s1272 = smul.addr %s1271, 32
          %s1273 = scalar_lea.vmem [#allocation6], %s1272
          %1275 = dma.done %s1270, 512
        $region60: #{spider_forward.3} parent=51 // pred_fallthru
          _
      $region52: #{spider_forward.3} parent=5 // pred_fallthru
        _
    $region6: #{spider_forward.3} parent=1 // loop_footer
      %s25 = sadd.s32 1, %s21
    $region7: #{spider_forward.3} parent=1 // loop_footer_branch
      %20 = sbr.rel target = $region3
    $region8: #{spider_forward.3} parent=1 // loop_exit
      _
    %1276 = vsyncpa [#allocation3], 1
    %s1277 = scalar_lea.sflag [#allocation3], 1
    %1278 = vsyncpa %s1277, 1
    %1279 = vsyncpa [#allocation4], 1
    %s1280 = scalar_lea.sflag [#allocation4], 1
    %1281 = vsyncpa %s1280, 1
    %1282 = vsyncpa [#allocation7], 1
    %s1283 = scalar_lea.sflag [#allocation7], 1
    %1284 = vsyncpa %s1283, 1

</llo_original>
